<compile_context>
chip_gen: v7x
topology: tpu7x:2x2x1
jax: 0.10.0
libtpu: 0.0.40
codegen_flags: <defaults>
</compile_context>

<pallas_src>
import math

import jax
import jax.numpy as jnp
from jax.experimental import pallas as pl
from jax.experimental.pallas import tpu as pltpu

# ----------------------------- model config (small) -------------------------
B = 2            # batch
S = 8            # sequence length
H = 32           # hidden size
NH = 4           # attention heads
D = H // NH      # head dim
I = 64           # FFN intermediate size
L = 2            # encoder layers
VOCAB = 100
TYPE_VOCAB = 2
TOPIC_DIM = 5
NUM_LABELS = 3
LN_EPS = 1e-12

TOPIC_PAD = 8    # topic features padded to 8 lanes (matmul friendly)
OUT_PAD = 128    # classifier output padded to 128 lanes (lane-dense stores)
MISC_W = 128     # packed (mask | topic) row width

# Packed bias / LayerNorm-parameter table row layout.
ROW_EMB_G, ROW_EMB_B = 0, 1
ROW_LAYER0 = 2
ROWS_PER_LAYER = 8           # bqkv, bo, ln1_g, ln1_b, b1, b2, ln2_g, ln2_b
ROW_POOLER_B = ROW_LAYER0 + L * ROWS_PER_LAYER       # 18
ROW_BC = ROW_POOLER_B + 1                            # 19
VEC_ROWS = 24                # padded to a multiple of 8 sublanes


# ----------------------------- in-kernel helpers ----------------------------
def _gelu_tanh(x):
    # TODO(synk): HF BertModel defaults to exact (erf) GELU; tanh approximation
    # is used here (EUP-friendly), differences are ~1e-3 level.
    c = 0.7978845608028654  # sqrt(2/pi)
    return 0.5 * x * (1.0 + jnp.tanh(c * (x + 0.044715 * x * x * x)))


def _layernorm(x, g, b):
    # E[x^2] - mean^2 keeps the two cross-lane reductions independent (XLU overlap).
    mean = jnp.mean(x, axis=-1, keepdims=True)
    var = jnp.maximum(jnp.mean(x * x, axis=-1, keepdims=True) - mean * mean, 0.0)
    return (x - mean) * jax.lax.rsqrt(var + LN_EPS) * g + b


# ----------------------------- fused model kernel ---------------------------
def fused_bert_kernel(x_ref, misc_ref, vec_ref,
                      wqkv_ref, wo_ref, w1_ref, w2_ref,
                      pw_ref, wcp_ref, wct_ref, o_ref):
    """Single invocation, whole model.  Everything stays VMEM/vreg resident."""

    def vrow(r, width):
        return vec_ref[r:r + 1, :width]             # (1, width) f32 slice

    def bf(v):
        return v.astype(jnp.bfloat16)

    x = x_ref[...]                                  # (B*S, H) summed embeddings, f32
    h = _layernorm(x, vrow(ROW_EMB_G, H), vrow(ROW_EMB_B, H))

    for l in range(L):                              # static unroll over layers
        base = ROW_LAYER0 + l * ROWS_PER_LAYER

        # ---- fused QKV projection over the whole flattened batch -----------
        qkv = (jnp.dot(bf(h), wqkv_ref[l], preferred_element_type=jnp.float32)
               + vrow(base + 0, 3 * H))             # (B*S, 3H) f32

        # ---- attention: per (batch-row, head) softmax, heads re-packed along
        #      lanes, batch rows along sublanes, then ONE Wo matmul ----------
        ctx_rows = []
        for b in range(B):
            r0 = b * S
            mask_b = misc_ref[b:b + 1, 0:S]         # (1, S) additive mask
            head_ctx = []
            for hd in range(NH):
                lo = hd * D
                qh = qkv[r0:r0 + S, lo:lo + D]              # (S, D); 1/sqrt(D) pre-folded
                kh = qkv[r0:r0 + S, H + lo:H + lo + D]      # (S, D)
                vh = qkv[r0:r0 + S, 2 * H + lo:2 * H + lo + D]
                s = jax.lax.dot_general(                    # q @ k^T without transpose
                    bf(qh), bf(kh), (((1,), (1,)), ((), ())),
                    preferred_element_type=jnp.float32)     # (S, S)
                s = s + mask_b
                # No max-subtraction: logits stay << 88 at this scale and
                # exp(-1e4) underflows cleanly to 0 in f32.
                p = jnp.exp(s)
                p = p * pl.reciprocal(jnp.sum(p, axis=-1, keepdims=True), approx=True)
                head_ctx.append(jnp.dot(bf(p), bf(vh),
                                        preferred_element_type=jnp.float32))  # (S, D)
            ctx_rows.append(jnp.concatenate(head_ctx, axis=1))                # (S, H)
        ctx = jnp.concatenate(ctx_rows, axis=0)                               # (B*S, H)

        attn_out = (jnp.dot(bf(ctx), wo_ref[l], preferred_element_type=jnp.float32)
                    + vrow(base + 1, H))
        # dropout(0.1) inside BERT: identity in eval mode.
        h = _layernorm(attn_out + h, vrow(base + 2, H), vrow(base + 3, H))

        # ---- feed-forward ----------------------------------------------------
        ff = (jnp.dot(bf(h), w1_ref[l], preferred_element_type=jnp.float32)
              + vrow(base + 4, I))
        ff = _gelu_tanh(ff)
        ff = (jnp.dot(bf(ff), w2_ref[l], preferred_element_type=jnp.float32)
              + vrow(base + 5, H))
        h = _layernorm(ff + h, vrow(base + 6, H), vrow(base + 7, H))

    # ---- pooler (CLS token per batch row) + split-weight classifier ----------
    cls = jnp.concatenate([h[b * S:b * S + 1, :] for b in range(B)], axis=0)   # (B, H)
    pooled = jnp.tanh(jnp.dot(bf(cls), pw_ref[...],
                              preferred_element_type=jnp.float32)
                      + vrow(ROW_POOLER_B, H))
    topic = misc_ref[:, S:S + TOPIC_PAD]                                       # (B, TOPIC_PAD)
    # dropout(0.1) on concat(pooled, topic): identity in eval mode.
    logits = (jnp.dot(bf(pooled), wcp_ref[...], preferred_element_type=jnp.float32)
              + jnp.dot(bf(topic), wct_ref[...], preferred_element_type=jnp.float32)
              + vrow(ROW_BC, OUT_PAD))                                         # (B, OUT_PAD)
    o_ref[...] = logits.astype(o_ref.dtype)


def _full_spec(shape):
    """Full-array block (no grid -> index_map takes no args)."""
    nd = len(shape)
    return pl.BlockSpec(shape, lambda: (0,) * nd)


# ----------------------------- parameter init --------------------------------
def init_params(key):
    ks = iter(jax.random.split(key, 16))

    def w(shape):
        return (0.02 * jax.random.normal(next(ks), shape)).astype(jnp.float32)

    word_emb = w((VOCAB, H))
    pos_emb = w((S, H))
    type_emb = w((TYPE_VOCAB, H))

    wqkv = w((L, H, 3 * H))
    # Fold the 1/sqrt(D) attention scale into the Q columns (once, host-side).
    wqkv = wqkv.at[:, :, :H].multiply(1.0 / math.sqrt(D))
    wo = w((L, H, H))
    w1 = w((L, H, I))
    w2 = w((L, I, H))
    pooler_w = w((H, H))

    cls_w = w((H + TOPIC_DIM, NUM_LABELS))
    cls_b = jnp.zeros((NUM_LABELS,), jnp.float32)
    # Split-weight classifier (equivalent to concat(pooled, topic) @ cls_w + cls_b),
    # padded to OUT_PAD lanes once here (hoisted out of the forward pass).
    wc_p = jnp.zeros((H, OUT_PAD), jnp.float32).at[:, :NUM_LABELS].set(cls_w[:H])
    wc_t = (jnp.zeros((TOPIC_PAD, OUT_PAD), jnp.float32)
            .at[:TOPIC_DIM, :NUM_LABELS].set(cls_w[H:]))

    # Packed bias / LayerNorm table: one lane-dense (VEC_ROWS, 128) DMA instead
    # of ~15 sub-KB transfers.  Biases zero-init, LN gammas = 1 (synthetic init).
    vecs = jnp.zeros((VEC_ROWS, 128), jnp.float32)
    vecs = vecs.at[ROW_EMB_G, :H].set(1.0)
    for l in range(L):
        base = ROW_LAYER0 + l * ROWS_PER_LAYER
        vecs = vecs.at[base + 2, :H].set(1.0)   # ln1 gamma
        vecs = vecs.at[base + 6, :H].set(1.0)   # ln2 gamma
    vecs = vecs.at[ROW_BC, :NUM_LABELS].set(cls_b)

    return {
        "word_emb": word_emb,
        "pos_emb": pos_emb,
        "type_emb": type_emb,
        "vecs": vecs,                                   # f32 packed biases / LN params
        # MXU operands stored as bf16 (single MXU pass; ~1e-3-level drift vs f32).
        "wqkv": wqkv.astype(jnp.bfloat16),
        "wo": wo.astype(jnp.bfloat16),
        "w1": w1.astype(jnp.bfloat16),
        "w2": w2.astype(jnp.bfloat16),
        "pooler_w": pooler_w.astype(jnp.bfloat16),
        "cls_wp": wc_p.astype(jnp.bfloat16),
        "cls_wt": wc_t.astype(jnp.bfloat16),
    }


# ----------------------------- forward pass ----------------------------------
def bert_bias_classifier_forward(params, input_ids, attention_mask, topic_embedding):
    b, s = input_ids.shape
    assert (b, s) == (B, S)

    # Embedding gathers + sum are glue (data-dependent gather); LN is in-kernel.
    word = jnp.take(params["word_emb"], input_ids, axis=0)              # (B,S,H)
    emb = (word + params["pos_emb"][None, :, :]
           + params["type_emb"][0][None, None, :]).astype(jnp.float32)
    emb_flat = emb.reshape(b * s, H)                                    # (B*S, H)

    # Additive mask + padded topic packed into one lane-dense (B, 128) input.
    mask_add = (1.0 - attention_mask.astype(jnp.float32)) * -10000.0    # (B, S)
    misc = jnp.zeros((b, MISC_W), jnp.float32)
    misc = misc.at[:, :s].set(mask_add)
    misc = misc.at[:, S:S + TOPIC_DIM].set(topic_embedding.astype(jnp.float32))

    inputs = (emb_flat, misc, params["vecs"],
              params["wqkv"], params["wo"], params["w1"], params["w2"],
              params["pooler_w"], params["cls_wp"], params["cls_wt"])

    # Single invocation (no grid): the former grid=(B,) was a serial loop on
    # single-TC v5e/v6e.  (On v7x a grid=(B,) "parallel" split would engage the
    # second TensorCore; total resident footprint ~0.2 MiB, VMEM never binds.)
    out = pl.pallas_call(
        fused_bert_kernel,
        out_shape=jax.ShapeDtypeStruct((b, OUT_PAD), jnp.float32),
        in_specs=[_full_spec(a.shape) for a in inputs],
        out_specs=_full_spec((b, OUT_PAD)),
        compiler_params=pltpu.CompilerParams(),
    )(*inputs)

    return out[:, :NUM_LABELS]


# ----------------------------- main ------------------------------------------
if __name__ == "__main__":
    key = jax.random.PRNGKey(0)
    k_param, k_ids, k_topic = jax.random.split(key, 3)

    params = init_params(k_param)
    input_ids = jax.random.randint(k_ids, (B, S), 0, VOCAB, dtype=jnp.int32)
    attention_mask = jnp.array([[1, 1, 1, 1, 1, 1, 0, 0],
                                [1, 1, 1, 1, 1, 1, 1, 1]], dtype=jnp.int32)
    topic_embedding = jax.random.normal(k_topic, (B, TOPIC_DIM), dtype=jnp.float32)

    forward = jax.jit(bert_bias_classifier_forward)
    logits = forward(params, input_ids, attention_mask, topic_embedding)
    logits = jax.block_until_ready(logits)
    assert logits.shape == (B, NUM_LABELS)
    assert bool(jnp.all(jnp.isfinite(logits)))
    print("KERNEL_OK")
</pallas_src>

<mosaic_0001>
module attributes {stable_mosaic.version = 11 : i64} {
  func.func @fused_bert_kernel(%arg0: memref<16x32xf32, #tpu.memory_space<vmem>>, %arg1: memref<2x128xf32, #tpu.memory_space<vmem>>, %arg2: memref<24x128xf32, #tpu.memory_space<vmem>>, %arg3: memref<2x32x96xbf16, #tpu.memory_space<vmem>>, %arg4: memref<2x32x32xbf16, #tpu.memory_space<vmem>>, %arg5: memref<2x32x64xbf16, #tpu.memory_space<vmem>>, %arg6: memref<2x64x32xbf16, #tpu.memory_space<vmem>>, %arg7: memref<32x32xbf16, #tpu.memory_space<vmem>>, %arg8: memref<32x128xbf16, #tpu.memory_space<vmem>>, %arg9: memref<8x128xbf16, #tpu.memory_space<vmem>>, %arg10: memref<2x128xf32, #tpu.memory_space<vmem>>) attributes {dimension_semantics = [], scalar_prefetch = 0 : i64, scratch_operands = 0 : i64, tpu.core_type = #tpu.core_type<tc>} {
    %c0 = arith.constant 0 : index
    %c0_0 = arith.constant 0 : index
    %0 = vector.load %arg0[%c0, %c0_0] : memref<16x32xf32, #tpu.memory_space<vmem>>, vector<16x32xf32>
    %c0_1 = arith.constant 0 : index
    %c0_2 = arith.constant 0 : index
    %1 = vector.load %arg2[%c0_1, %c0_2] : memref<24x128xf32, #tpu.memory_space<vmem>>, vector<1x32xf32>
    %c1 = arith.constant 1 : index
    %c0_3 = arith.constant 0 : index
    %2 = vector.load %arg2[%c1, %c0_3] : memref<24x128xf32, #tpu.memory_space<vmem>>, vector<1x32xf32>
    %cst = arith.constant dense<0.000000e+00> : vector<16xf32>
    %3 = vector.multi_reduction <add>, %0, %cst [1] : vector<16x32xf32> to vector<16xf32>
    %4 = vector.shape_cast %3 : vector<16xf32> to vector<16x1xf32>
    %cst_4 = arith.constant 3.200000e+01 : f32
    %5 = vector.broadcast %cst_4 : f32 to vector<16x1xf32>
    %6 = arith.divf %4, %5 : vector<16x1xf32>
    %7 = arith.mulf %0, %0 : vector<16x32xf32>
    %cst_5 = arith.constant dense<0.000000e+00> : vector<16xf32>
    %8 = vector.multi_reduction <add>, %7, %cst_5 [1] : vector<16x32xf32> to vector<16xf32>
    %9 = vector.shape_cast %8 : vector<16xf32> to vector<16x1xf32>
    %cst_6 = arith.constant 3.200000e+01 : f32
    %10 = vector.broadcast %cst_6 : f32 to vector<16x1xf32>
    %11 = arith.divf %9, %10 : vector<16x1xf32>
    %12 = arith.mulf %6, %6 : vector<16x1xf32>
    %13 = arith.subf %11, %12 : vector<16x1xf32>
    %cst_7 = arith.constant 0.000000e+00 : f32
    %14 = vector.broadcast %cst_7 : f32 to vector<16x1xf32>
    %15 = arith.maximumf %13, %14 : vector<16x1xf32>
    %16 = vector.broadcast %6 : vector<16x1xf32> to vector<16x32xf32>
    %17 = arith.subf %0, %16 : vector<16x32xf32>
    %cst_8 = arith.constant 9.99999996E-13 : f32
    %18 = vector.broadcast %cst_8 : f32 to vector<16x1xf32>
    %19 = arith.addf %15, %18 : vector<16x1xf32>
    %20 = math.rsqrt %19 : vector<16x1xf32>
    %21 = vector.broadcast %20 : vector<16x1xf32> to vector<16x32xf32>
    %22 = arith.mulf %17, %21 : vector<16x32xf32>
    %23 = vector.broadcast %1 : vector<1x32xf32> to vector<16x32xf32>
    %24 = arith.mulf %22, %23 : vector<16x32xf32>
    %25 = vector.broadcast %2 : vector<1x32xf32> to vector<16x32xf32>
    %26 = arith.addf %24, %25 : vector<16x32xf32>
    %27 = arith.truncf %26 : vector<16x32xf32> to vector<16x32xbf16>
    %c0_9 = arith.constant 0 : index
    %c0_10 = arith.constant 0 : index
    %c0_11 = arith.constant 0 : index
    %28 = vector.load %arg3[%c0_9, %c0_10, %c0_11] : memref<2x32x96xbf16, #tpu.memory_space<vmem>>, vector<1x32x96xbf16>
    %29 = vector.shape_cast %28 : vector<1x32x96xbf16> to vector<32x96xbf16>
    %cst_12 = arith.constant dense<0.000000e+00> : vector<16x96xf32>
    %30 = tpu.matmul %27, %29, %cst_12 {dimension_numbers = #tpu.dot_dimension_numbers<[1], [0], [0], [1], [0, 0, 1, 1], [], []>} : vector<16x32xbf16>, vector<32x96xbf16>, vector<16x96xf32> -> vector<16x96xf32>
    %c2 = arith.constant 2 : index
    %c0_13 = arith.constant 0 : index
    %31 = vector.load %arg2[%c2, %c0_13] : memref<24x128xf32, #tpu.memory_space<vmem>>, vector<1x96xf32>
    %32 = vector.broadcast %31 : vector<1x96xf32> to vector<16x96xf32>
    %33 = arith.addf %30, %32 : vector<16x96xf32>
    %c0_14 = arith.constant 0 : index
    %c0_15 = arith.constant 0 : index
    %34 = vector.load %arg1[%c0_14, %c0_15] : memref<2x128xf32, #tpu.memory_space<vmem>>, vector<1x8xf32>
    %35 = vector.extract_strided_slice %33 {offsets = [0, 0], sizes = [8, 8], strides = [1, 1]} : vector<16x96xf32> to vector<8x8xf32>
    %36 = vector.extract_strided_slice %33 {offsets = [0, 32], sizes = [8, 8], strides = [1, 1]} : vector<16x96xf32> to vector<8x8xf32>
    %37 = vector.extract_strided_slice %33 {offsets = [0, 64], sizes = [8, 8], strides = [1, 1]} : vector<16x96xf32> to vector<8x8xf32>
    %38 = arith.truncf %35 : vector<8x8xf32> to vector<8x8xbf16>
    %39 = arith.truncf %36 : vector<8x8xf32> to vector<8x8xbf16>
    %cst_16 = arith.constant dense<0.000000e+00> : vector<8x8xf32>
    %40 = tpu.matmul %38, %39, %cst_16 {dimension_numbers = #tpu.dot_dimension_numbers<[1], [1], [0], [0], [0, 0, 1, 0], [], []>} : vector<8x8xbf16>, vector<8x8xbf16>, vector<8x8xf32> -> vector<8x8xf32>
    %41 = vector.broadcast %34 : vector<1x8xf32> to vector<8x8xf32>
    %42 = arith.addf %40, %41 : vector<8x8xf32>
    %43 = math.exp %42 : vector<8x8xf32>
    %cst_17 = arith.constant dense<0.000000e+00> : vector<8xf32>
    %44 = vector.multi_reduction <add>, %43, %cst_17 [1] : vector<8x8xf32> to vector<8xf32>
    %45 = vector.shape_cast %44 : vector<8xf32> to vector<8x1xf32>
    %46 = tpu.reciprocal %45 {approx = true} : vector<8x1xf32> -> vector<8x1xf32>
    %47 = vector.broadcast %46 : vector<8x1xf32> to vector<8x8xf32>
    %48 = arith.mulf %43, %47 : vector<8x8xf32>
    %49 = arith.truncf %48 : vector<8x8xf32> to vector<8x8xbf16>
    %50 = arith.truncf %37 : vector<8x8xf32> to vector<8x8xbf16>
    %cst_18 = arith.constant dense<0.000000e+00> : vector<8x8xf32>
    %51 = tpu.matmul %49, %50, %cst_18 {dimension_numbers = #tpu.dot_dimension_numbers<[1], [0], [0], [1], [0, 0, 1, 1], [], []>} : vector<8x8xbf16>, vector<8x8xbf16>, vector<8x8xf32> -> vector<8x8xf32>
    %52 = vector.extract_strided_slice %33 {offsets = [0, 8], sizes = [8, 8], strides = [1, 1]} : vector<16x96xf32> to vector<8x8xf32>
    %53 = vector.extract_strided_slice %33 {offsets = [0, 40], sizes = [8, 8], strides = [1, 1]} : vector<16x96xf32> to vector<8x8xf32>
    %54 = vector.extract_strided_slice %33 {offsets = [0, 72], sizes = [8, 8], strides = [1, 1]} : vector<16x96xf32> to vector<8x8xf32>
    %55 = arith.truncf %52 : vector<8x8xf32> to vector<8x8xbf16>
    %56 = arith.truncf %53 : vector<8x8xf32> to vector<8x8xbf16>
    %cst_19 = arith.constant dense<0.000000e+00> : vector<8x8xf32>
    %57 = tpu.matmul %55, %56, %cst_19 {dimension_numbers = #tpu.dot_dimension_numbers<[1], [1], [0], [0], [0, 0, 1, 0], [], []>} : vector<8x8xbf16>, vector<8x8xbf16>, vector<8x8xf32> -> vector<8x8xf32>
    %58 = vector.broadcast %34 : vector<1x8xf32> to vector<8x8xf32>
    %59 = arith.addf %57, %58 : vector<8x8xf32>
    %60 = math.exp %59 : vector<8x8xf32>
    %cst_20 = arith.constant dense<0.000000e+00> : vector<8xf32>
    %61 = vector.multi_reduction <add>, %60, %cst_20 [1] : vector<8x8xf32> to vector<8xf32>
    %62 = vector.shape_cast %61 : vector<8xf32> to vector<8x1xf32>
    %63 = tpu.reciprocal %62 {approx = true} : vector<8x1xf32> -> vector<8x1xf32>
    %64 = vector.broadcast %63 : vector<8x1xf32> to vector<8x8xf32>
    %65 = arith.mulf %60, %64 : vector<8x8xf32>
    %66 = arith.truncf %65 : vector<8x8xf32> to vector<8x8xbf16>
    %67 = arith.truncf %54 : vector<8x8xf32> to vector<8x8xbf16>
    %cst_21 = arith.constant dense<0.000000e+00> : vector<8x8xf32>
    %68 = tpu.matmul %66, %67, %cst_21 {dimension_numbers = #tpu.dot_dimension_numbers<[1], [0], [0], [1], [0, 0, 1, 1], [], []>} : vector<8x8xbf16>, vector<8x8xbf16>, vector<8x8xf32> -> vector<8x8xf32>
    %69 = vector.extract_strided_slice %33 {offsets = [0, 16], sizes = [8, 8], strides = [1, 1]} : vector<16x96xf32> to vector<8x8xf32>
    %70 = vector.extract_strided_slice %33 {offsets = [0, 48], sizes = [8, 8], strides = [1, 1]} : vector<16x96xf32> to vector<8x8xf32>
    %71 = vector.extract_strided_slice %33 {offsets = [0, 80], sizes = [8, 8], strides = [1, 1]} : vector<16x96xf32> to vector<8x8xf32>
    %72 = arith.truncf %69 : vector<8x8xf32> to vector<8x8xbf16>
    %73 = arith.truncf %70 : vector<8x8xf32> to vector<8x8xbf16>
    %cst_22 = arith.constant dense<0.000000e+00> : vector<8x8xf32>
    %74 = tpu.matmul %72, %73, %cst_22 {dimension_numbers = #tpu.dot_dimension_numbers<[1], [1], [0], [0], [0, 0, 1, 0], [], []>} : vector<8x8xbf16>, vector<8x8xbf16>, vector<8x8xf32> -> vector<8x8xf32>
    %75 = vector.broadcast %34 : vector<1x8xf32> to vector<8x8xf32>
    %76 = arith.addf %74, %75 : vector<8x8xf32>
    %77 = math.exp %76 : vector<8x8xf32>
    %cst_23 = arith.constant dense<0.000000e+00> : vector<8xf32>
    %78 = vector.multi_reduction <add>, %77, %cst_23 [1] : vector<8x8xf32> to vector<8xf32>
    %79 = vector.shape_cast %78 : vector<8xf32> to vector<8x1xf32>
    %80 = tpu.reciprocal %79 {approx = true} : vector<8x1xf32> -> vector<8x1xf32>
    %81 = vector.broadcast %80 : vector<8x1xf32> to vector<8x8xf32>
    %82 = arith.mulf %77, %81 : vector<8x8xf32>
    %83 = arith.truncf %82 : vector<8x8xf32> to vector<8x8xbf16>
    %84 = arith.truncf %71 : vector<8x8xf32> to vector<8x8xbf16>
    %cst_24 = arith.constant dense<0.000000e+00> : vector<8x8xf32>
    %85 = tpu.matmul %83, %84, %cst_24 {dimension_numbers = #tpu.dot_dimension_numbers<[1], [0], [0], [1], [0, 0, 1, 1], [], []>} : vector<8x8xbf16>, vector<8x8xbf16>, vector<8x8xf32> -> vector<8x8xf32>
    %86 = vector.extract_strided_slice %33 {offsets = [0, 24], sizes = [8, 8], strides = [1, 1]} : vector<16x96xf32> to vector<8x8xf32>
    %87 = vector.extract_strided_slice %33 {offsets = [0, 56], sizes = [8, 8], strides = [1, 1]} : vector<16x96xf32> to vector<8x8xf32>
    %88 = vector.extract_strided_slice %33 {offsets = [0, 88], sizes = [8, 8], strides = [1, 1]} : vector<16x96xf32> to vector<8x8xf32>
    %89 = arith.truncf %86 : vector<8x8xf32> to vector<8x8xbf16>
    %90 = arith.truncf %87 : vector<8x8xf32> to vector<8x8xbf16>
    %cst_25 = arith.constant dense<0.000000e+00> : vector<8x8xf32>
    %91 = tpu.matmul %89, %90, %cst_25 {dimension_numbers = #tpu.dot_dimension_numbers<[1], [1], [0], [0], [0, 0, 1, 0], [], []>} : vector<8x8xbf16>, vector<8x8xbf16>, vector<8x8xf32> -> vector<8x8xf32>
    %92 = vector.broadcast %34 : vector<1x8xf32> to vector<8x8xf32>
    %93 = arith.addf %91, %92 : vector<8x8xf32>
    %94 = math.exp %93 : vector<8x8xf32>
    %cst_26 = arith.constant dense<0.000000e+00> : vector<8xf32>
    %95 = vector.multi_reduction <add>, %94, %cst_26 [1] : vector<8x8xf32> to vector<8xf32>
    %96 = vector.shape_cast %95 : vector<8xf32> to vector<8x1xf32>
    %97 = tpu.reciprocal %96 {approx = true} : vector<8x1xf32> -> vector<8x1xf32>
    %98 = vector.broadcast %97 : vector<8x1xf32> to vector<8x8xf32>
    %99 = arith.mulf %94, %98 : vector<8x8xf32>
    %100 = arith.truncf %99 : vector<8x8xf32> to vector<8x8xbf16>
    %101 = arith.truncf %88 : vector<8x8xf32> to vector<8x8xbf16>
    %cst_27 = arith.constant dense<0.000000e+00> : vector<8x8xf32>
    %102 = tpu.matmul %100, %101, %cst_27 {dimension_numbers = #tpu.dot_dimension_numbers<[1], [0], [0], [1], [0, 0, 1, 1], [], []>} : vector<8x8xbf16>, vector<8x8xbf16>, vector<8x8xf32> -> vector<8x8xf32>
    %103 = tpu.concatenate %51, %68, %85, %102 in 1 : vector<8x8xf32>, vector<8x8xf32>, vector<8x8xf32>, vector<8x8xf32> -> vector<8x32xf32>
    %c1_28 = arith.constant 1 : index
    %c0_29 = arith.constant 0 : index
    %104 = vector.load %arg1[%c1_28, %c0_29] : memref<2x128xf32, #tpu.memory_space<vmem>>, vector<1x8xf32>
    %105 = vector.extract_strided_slice %33 {offsets = [8, 0], sizes = [8, 8], strides = [1, 1]} : vector<16x96xf32> to vector<8x8xf32>
    %106 = vector.extract_strided_slice %33 {offsets = [8, 32], sizes = [8, 8], strides = [1, 1]} : vector<16x96xf32> to vector<8x8xf32>
    %107 = vector.extract_strided_slice %33 {offsets = [8, 64], sizes = [8, 8], strides = [1, 1]} : vector<16x96xf32> to vector<8x8xf32>
    %108 = arith.truncf %105 : vector<8x8xf32> to vector<8x8xbf16>
    %109 = arith.truncf %106 : vector<8x8xf32> to vector<8x8xbf16>
    %cst_30 = arith.constant dense<0.000000e+00> : vector<8x8xf32>
    %110 = tpu.matmul %108, %109, %cst_30 {dimension_numbers = #tpu.dot_dimension_numbers<[1], [1], [0], [0], [0, 0, 1, 0], [], []>} : vector<8x8xbf16>, vector<8x8xbf16>, vector<8x8xf32> -> vector<8x8xf32>
    %111 = vector.broadcast %104 : vector<1x8xf32> to vector<8x8xf32>
    %112 = arith.addf %110, %111 : vector<8x8xf32>
    %113 = math.exp %112 : vector<8x8xf32>
    %cst_31 = arith.constant dense<0.000000e+00> : vector<8xf32>
    %114 = vector.multi_reduction <add>, %113, %cst_31 [1] : vector<8x8xf32> to vector<8xf32>
    %115 = vector.shape_cast %114 : vector<8xf32> to vector<8x1xf32>
    %116 = tpu.reciprocal %115 {approx = true} : vector<8x1xf32> -> vector<8x1xf32>
    %117 = vector.broadcast %116 : vector<8x1xf32> to vector<8x8xf32>
    %118 = arith.mulf %113, %117 : vector<8x8xf32>
    %119 = arith.truncf %118 : vector<8x8xf32> to vector<8x8xbf16>
    %120 = arith.truncf %107 : vector<8x8xf32> to vector<8x8xbf16>
    %cst_32 = arith.constant dense<0.000000e+00> : vector<8x8xf32>
    %121 = tpu.matmul %119, %120, %cst_32 {dimension_numbers = #tpu.dot_dimension_numbers<[1], [0], [0], [1], [0, 0, 1, 1], [], []>} : vector<8x8xbf16>, vector<8x8xbf16>, vector<8x8xf32> -> vector<8x8xf32>
    %122 = vector.extract_strided_slice %33 {offsets = [8, 8], sizes = [8, 8], strides = [1, 1]} : vector<16x96xf32> to vector<8x8xf32>
    %123 = vector.extract_strided_slice %33 {offsets = [8, 40], sizes = [8, 8], strides = [1, 1]} : vector<16x96xf32> to vector<8x8xf32>
    %124 = vector.extract_strided_slice %33 {offsets = [8, 72], sizes = [8, 8], strides = [1, 1]} : vector<16x96xf32> to vector<8x8xf32>
    %125 = arith.truncf %122 : vector<8x8xf32> to vector<8x8xbf16>
    %126 = arith.truncf %123 : vector<8x8xf32> to vector<8x8xbf16>
    %cst_33 = arith.constant dense<0.000000e+00> : vector<8x8xf32>
    %127 = tpu.matmul %125, %126, %cst_33 {dimension_numbers = #tpu.dot_dimension_numbers<[1], [1], [0], [0], [0, 0, 1, 0], [], []>} : vector<8x8xbf16>, vector<8x8xbf16>, vector<8x8xf32> -> vector<8x8xf32>
    %128 = vector.broadcast %104 : vector<1x8xf32> to vector<8x8xf32>
    %129 = arith.addf %127, %128 : vector<8x8xf32>
    %130 = math.exp %129 : vector<8x8xf32>
    %cst_34 = arith.constant dense<0.000000e+00> : vector<8xf32>
    %131 = vector.multi_reduction <add>, %130, %cst_34 [1] : vector<8x8xf32> to vector<8xf32>
    %132 = vector.shape_cast %131 : vector<8xf32> to vector<8x1xf32>
    %133 = tpu.reciprocal %132 {approx = true} : vector<8x1xf32> -> vector<8x1xf32>
    %134 = vector.broadcast %133 : vector<8x1xf32> to vector<8x8xf32>
    %135 = arith.mulf %130, %134 : vector<8x8xf32>
    %136 = arith.truncf %135 : vector<8x8xf32> to vector<8x8xbf16>
    %137 = arith.truncf %124 : vector<8x8xf32> to vector<8x8xbf16>
    %cst_35 = arith.constant dense<0.000000e+00> : vector<8x8xf32>
    %138 = tpu.matmul %136, %137, %cst_35 {dimension_numbers = #tpu.dot_dimension_numbers<[1], [0], [0], [1], [0, 0, 1, 1], [], []>} : vector<8x8xbf16>, vector<8x8xbf16>, vector<8x8xf32> -> vector<8x8xf32>
    %139 = vector.extract_strided_slice %33 {offsets = [8, 16], sizes = [8, 8], strides = [1, 1]} : vector<16x96xf32> to vector<8x8xf32>
    %140 = vector.extract_strided_slice %33 {offsets = [8, 48], sizes = [8, 8], strides = [1, 1]} : vector<16x96xf32> to vector<8x8xf32>
    %141 = vector.extract_strided_slice %33 {offsets = [8, 80], sizes = [8, 8], strides = [1, 1]} : vector<16x96xf32> to vector<8x8xf32>
    %142 = arith.truncf %139 : vector<8x8xf32> to vector<8x8xbf16>
    %143 = arith.truncf %140 : vector<8x8xf32> to vector<8x8xbf16>
    %cst_36 = arith.constant dense<0.000000e+00> : vector<8x8xf32>
    %144 = tpu.matmul %142, %143, %cst_36 {dimension_numbers = #tpu.dot_dimension_numbers<[1], [1], [0], [0], [0, 0, 1, 0], [], []>} : vector<8x8xbf16>, vector<8x8xbf16>, vector<8x8xf32> -> vector<8x8xf32>
    %145 = vector.broadcast %104 : vector<1x8xf32> to vector<8x8xf32>
    %146 = arith.addf %144, %145 : vector<8x8xf32>
    %147 = math.exp %146 : vector<8x8xf32>
    %cst_37 = arith.constant dense<0.000000e+00> : vector<8xf32>
    %148 = vector.multi_reduction <add>, %147, %cst_37 [1] : vector<8x8xf32> to vector<8xf32>
    %149 = vector.shape_cast %148 : vector<8xf32> to vector<8x1xf32>
    %150 = tpu.reciprocal %149 {approx = true} : vector<8x1xf32> -> vector<8x1xf32>
    %151 = vector.broadcast %150 : vector<8x1xf32> to vector<8x8xf32>
    %152 = arith.mulf %147, %151 : vector<8x8xf32>
    %153 = arith.truncf %152 : vector<8x8xf32> to vector<8x8xbf16>
    %154 = arith.truncf %141 : vector<8x8xf32> to vector<8x8xbf16>
    %cst_38 = arith.constant dense<0.000000e+00> : vector<8x8xf32>
    %155 = tpu.matmul %153, %154, %cst_38 {dimension_numbers = #tpu.dot_dimension_numbers<[1], [0], [0], [1], [0, 0, 1, 1], [], []>} : vector<8x8xbf16>, vector<8x8xbf16>, vector<8x8xf32> -> vector<8x8xf32>
    %156 = vector.extract_strided_slice %33 {offsets = [8, 24], sizes = [8, 8], strides = [1, 1]} : vector<16x96xf32> to vector<8x8xf32>
    %157 = vector.extract_strided_slice %33 {offsets = [8, 56], sizes = [8, 8], strides = [1, 1]} : vector<16x96xf32> to vector<8x8xf32>
    %158 = vector.extract_strided_slice %33 {offsets = [8, 88], sizes = [8, 8], strides = [1, 1]} : vector<16x96xf32> to vector<8x8xf32>
    %159 = arith.truncf %156 : vector<8x8xf32> to vector<8x8xbf16>
    %160 = arith.truncf %157 : vector<8x8xf32> to vector<8x8xbf16>
    %cst_39 = arith.constant dense<0.000000e+00> : vector<8x8xf32>
    %161 = tpu.matmul %159, %160, %cst_39 {dimension_numbers = #tpu.dot_dimension_numbers<[1], [1], [0], [0], [0, 0, 1, 0], [], []>} : vector<8x8xbf16>, vector<8x8xbf16>, vector<8x8xf32> -> vector<8x8xf32>
    %162 = vector.broadcast %104 : vector<1x8xf32> to vector<8x8xf32>
    %163 = arith.addf %161, %162 : vector<8x8xf32>
    %164 = math.exp %163 : vector<8x8xf32>
    %cst_40 = arith.constant dense<0.000000e+00> : vector<8xf32>
    %165 = vector.multi_reduction <add>, %164, %cst_40 [1] : vector<8x8xf32> to vector<8xf32>
    %166 = vector.shape_cast %165 : vector<8xf32> to vector<8x1xf32>
    %167 = tpu.reciprocal %166 {approx = true} : vector<8x1xf32> -> vector<8x1xf32>
    %168 = vector.broadcast %167 : vector<8x1xf32> to vector<8x8xf32>
    %169 = arith.mulf %164, %168 : vector<8x8xf32>
    %170 = arith.truncf %169 : vector<8x8xf32> to vector<8x8xbf16>
    %171 = arith.truncf %158 : vector<8x8xf32> to vector<8x8xbf16>
    %cst_41 = arith.constant dense<0.000000e+00> : vector<8x8xf32>
    %172 = tpu.matmul %170, %171, %cst_41 {dimension_numbers = #tpu.dot_dimension_numbers<[1], [0], [0], [1], [0, 0, 1, 1], [], []>} : vector<8x8xbf16>, vector<8x8xbf16>, vector<8x8xf32> -> vector<8x8xf32>
    %173 = tpu.concatenate %121, %138, %155, %172 in 1 : vector<8x8xf32>, vector<8x8xf32>, vector<8x8xf32>, vector<8x8xf32> -> vector<8x32xf32>
    %174 = tpu.concatenate %103, %173 in 0 : vector<8x32xf32>, vector<8x32xf32> -> vector<16x32xf32>
    %175 = arith.truncf %174 : vector<16x32xf32> to vector<16x32xbf16>
    %c0_42 = arith.constant 0 : index
    %c0_43 = arith.constant 0 : index
    %c0_44 = arith.constant 0 : index
    %176 = vector.load %arg4[%c0_42, %c0_43, %c0_44] : memref<2x32x32xbf16, #tpu.memory_space<vmem>>, vector<1x32x32xbf16>
    %177 = vector.shape_cast %176 : vector<1x32x32xbf16> to vector<32x32xbf16>
    %cst_45 = arith.constant dense<0.000000e+00> : vector<16x32xf32>
    %178 = tpu.matmul %175, %177, %cst_45 {dimension_numbers = #tpu.dot_dimension_numbers<[1], [0], [0], [1], [0, 0, 1, 1], [], []>} : vector<16x32xbf16>, vector<32x32xbf16>, vector<16x32xf32> -> vector<16x32xf32>
    %c3 = arith.constant 3 : index
    %c0_46 = arith.constant 0 : index
    %179 = vector.load %arg2[%c3, %c0_46] : memref<24x128xf32, #tpu.memory_space<vmem>>, vector<1x32xf32>
    %180 = vector.broadcast %179 : vector<1x32xf32> to vector<16x32xf32>
    %181 = arith.addf %178, %180 : vector<16x32xf32>
    %182 = arith.addf %181, %26 : vector<16x32xf32>
    %c4 = arith.constant 4 : index
    %c0_47 = arith.constant 0 : index
    %183 = vector.load %arg2[%c4, %c0_47] : memref<24x128xf32, #tpu.memory_space<vmem>>, vector<1x32xf32>
    %c5 = arith.constant 5 : index
    %c0_48 = arith.constant 0 : index
    %184 = vector.load %arg2[%c5, %c0_48] : memref<24x128xf32, #tpu.memory_space<vmem>>, vector<1x32xf32>
    %cst_49 = arith.constant dense<0.000000e+00> : vector<16xf32>
    %185 = vector.multi_reduction <add>, %182, %cst_49 [1] : vector<16x32xf32> to vector<16xf32>
    %186 = vector.shape_cast %185 : vector<16xf32> to vector<16x1xf32>
    %cst_50 = arith.constant 3.200000e+01 : f32
    %187 = vector.broadcast %cst_50 : f32 to vector<16x1xf32>
    %188 = arith.divf %186, %187 : vector<16x1xf32>
    %189 = arith.mulf %182, %182 : vector<16x32xf32>
    %cst_51 = arith.constant dense<0.000000e+00> : vector<16xf32>
    %190 = vector.multi_reduction <add>, %189, %cst_51 [1] : vector<16x32xf32> to vector<16xf32>
    %191 = vector.shape_cast %190 : vector<16xf32> to vector<16x1xf32>
    %cst_52 = arith.constant 3.200000e+01 : f32
    %192 = vector.broadcast %cst_52 : f32 to vector<16x1xf32>
    %193 = arith.divf %191, %192 : vector<16x1xf32>
    %194 = arith.mulf %188, %188 : vector<16x1xf32>
    %195 = arith.subf %193, %194 : vector<16x1xf32>
    %cst_53 = arith.constant 0.000000e+00 : f32
    %196 = vector.broadcast %cst_53 : f32 to vector<16x1xf32>
    %197 = arith.maximumf %195, %196 : vector<16x1xf32>
    %198 = vector.broadcast %188 : vector<16x1xf32> to vector<16x32xf32>
    %199 = arith.subf %182, %198 : vector<16x32xf32>
    %cst_54 = arith.constant 9.99999996E-13 : f32
    %200 = vector.broadcast %cst_54 : f32 to vector<16x1xf32>
    %201 = arith.addf %197, %200 : vector<16x1xf32>
    %202 = math.rsqrt %201 : vector<16x1xf32>
    %203 = vector.broadcast %202 : vector<16x1xf32> to vector<16x32xf32>
    %204 = arith.mulf %199, %203 : vector<16x32xf32>
    %205 = vector.broadcast %183 : vector<1x32xf32> to vector<16x32xf32>
    %206 = arith.mulf %204, %205 : vector<16x32xf32>
    %207 = vector.broadcast %184 : vector<1x32xf32> to vector<16x32xf32>
    %208 = arith.addf %206, %207 : vector<16x32xf32>
    %209 = arith.truncf %208 : vector<16x32xf32> to vector<16x32xbf16>
    %c0_55 = arith.constant 0 : index
    %c0_56 = arith.constant 0 : index
    %c0_57 = arith.constant 0 : index
    %210 = vector.load %arg5[%c0_55, %c0_56, %c0_57] : memref<2x32x64xbf16, #tpu.memory_space<vmem>>, vector<1x32x64xbf16>
    %211 = vector.shape_cast %210 : vector<1x32x64xbf16> to vector<32x64xbf16>
    %cst_58 = arith.constant dense<0.000000e+00> : vector<16x64xf32>
    %212 = tpu.matmul %209, %211, %cst_58 {dimension_numbers = #tpu.dot_dimension_numbers<[1], [0], [0], [1], [0, 0, 1, 1], [], []>} : vector<16x32xbf16>, vector<32x64xbf16>, vector<16x64xf32> -> vector<16x64xf32>
    %c6 = arith.constant 6 : index
    %c0_59 = arith.constant 0 : index
    %213 = vector.load %arg2[%c6, %c0_59] : memref<24x128xf32, #tpu.memory_space<vmem>>, vector<1x64xf32>
    %214 = vector.broadcast %213 : vector<1x64xf32> to vector<16x64xf32>
    %215 = arith.addf %212, %214 : vector<16x64xf32>
    %cst_60 = arith.constant 5.000000e-01 : f32
    %216 = vector.broadcast %cst_60 : f32 to vector<16x64xf32>
    %217 = arith.mulf %216, %215 : vector<16x64xf32>
    %cst_61 = arith.constant 4.471500e-02 : f32
    %218 = vector.broadcast %cst_61 : f32 to vector<16x64xf32>
    %219 = arith.mulf %218, %215 : vector<16x64xf32>
    %220 = arith.mulf %219, %215 : vector<16x64xf32>
    %221 = arith.mulf %220, %215 : vector<16x64xf32>
    %222 = arith.addf %215, %221 : vector<16x64xf32>
    %cst_62 = arith.constant 0.797884583 : f32
    %223 = vector.broadcast %cst_62 : f32 to vector<16x64xf32>
    %224 = arith.mulf %223, %222 : vector<16x64xf32>
    %225 = math.tanh %224 : vector<16x64xf32>
    %cst_63 = arith.constant 1.000000e+00 : f32
    %226 = vector.broadcast %cst_63 : f32 to vector<16x64xf32>
    %227 = arith.addf %226, %225 : vector<16x64xf32>
    %228 = arith.mulf %217, %227 : vector<16x64xf32>
    %229 = arith.truncf %228 : vector<16x64xf32> to vector<16x64xbf16>
    %c0_64 = arith.constant 0 : index
    %c0_65 = arith.constant 0 : index
    %c0_66 = arith.constant 0 : index
    %230 = vector.load %arg6[%c0_64, %c0_65, %c0_66] : memref<2x64x32xbf16, #tpu.memory_space<vmem>>, vector<1x64x32xbf16>
    %231 = vector.shape_cast %230 : vector<1x64x32xbf16> to vector<64x32xbf16>
    %cst_67 = arith.constant dense<0.000000e+00> : vector<16x32xf32>
    %232 = tpu.matmul %229, %231, %cst_67 {dimension_numbers = #tpu.dot_dimension_numbers<[1], [0], [0], [1], [0, 0, 1, 1], [], []>} : vector<16x64xbf16>, vector<64x32xbf16>, vector<16x32xf32> -> vector<16x32xf32>
    %c7 = arith.constant 7 : index
    %c0_68 = arith.constant 0 : index
    %233 = vector.load %arg2[%c7, %c0_68] : memref<24x128xf32, #tpu.memory_space<vmem>>, vector<1x32xf32>
    %234 = vector.broadcast %233 : vector<1x32xf32> to vector<16x32xf32>
    %235 = arith.addf %232, %234 : vector<16x32xf32>
    %236 = arith.addf %235, %208 : vector<16x32xf32>
    %c8 = arith.constant 8 : index
    %c0_69 = arith.constant 0 : index
    %237 = vector.load %arg2[%c8, %c0_69] : memref<24x128xf32, #tpu.memory_space<vmem>>, vector<1x32xf32>
    %c9 = arith.constant 9 : index
    %c0_70 = arith.constant 0 : index
    %238 = vector.load %arg2[%c9, %c0_70] : memref<24x128xf32, #tpu.memory_space<vmem>>, vector<1x32xf32>
    %cst_71 = arith.constant dense<0.000000e+00> : vector<16xf32>
    %239 = vector.multi_reduction <add>, %236, %cst_71 [1] : vector<16x32xf32> to vector<16xf32>
    %240 = vector.shape_cast %239 : vector<16xf32> to vector<16x1xf32>
    %cst_72 = arith.constant 3.200000e+01 : f32
    %241 = vector.broadcast %cst_72 : f32 to vector<16x1xf32>
    %242 = arith.divf %240, %241 : vector<16x1xf32>
    %243 = arith.mulf %236, %236 : vector<16x32xf32>
    %cst_73 = arith.constant dense<0.000000e+00> : vector<16xf32>
    %244 = vector.multi_reduction <add>, %243, %cst_73 [1] : vector<16x32xf32> to vector<16xf32>
    %245 = vector.shape_cast %244 : vector<16xf32> to vector<16x1xf32>
    %cst_74 = arith.constant 3.200000e+01 : f32
    %246 = vector.broadcast %cst_74 : f32 to vector<16x1xf32>
    %247 = arith.divf %245, %246 : vector<16x1xf32>
    %248 = arith.mulf %242, %242 : vector<16x1xf32>
    %249 = arith.subf %247, %248 : vector<16x1xf32>
    %cst_75 = arith.constant 0.000000e+00 : f32
    %250 = vector.broadcast %cst_75 : f32 to vector<16x1xf32>
    %251 = arith.maximumf %249, %250 : vector<16x1xf32>
    %252 = vector.broadcast %242 : vector<16x1xf32> to vector<16x32xf32>
    %253 = arith.subf %236, %252 : vector<16x32xf32>
    %cst_76 = arith.constant 9.99999996E-13 : f32
    %254 = vector.broadcast %cst_76 : f32 to vector<16x1xf32>
    %255 = arith.addf %251, %254 : vector<16x1xf32>
    %256 = math.rsqrt %255 : vector<16x1xf32>
    %257 = vector.broadcast %256 : vector<16x1xf32> to vector<16x32xf32>
    %258 = arith.mulf %253, %257 : vector<16x32xf32>
    %259 = vector.broadcast %237 : vector<1x32xf32> to vector<16x32xf32>
    %260 = arith.mulf %258, %259 : vector<16x32xf32>
    %261 = vector.broadcast %238 : vector<1x32xf32> to vector<16x32xf32>
    %262 = arith.addf %260, %261 : vector<16x32xf32>
    %263 = arith.truncf %262 : vector<16x32xf32> to vector<16x32xbf16>
    %c1_77 = arith.constant 1 : index
    %c0_78 = arith.constant 0 : index
    %c0_79 = arith.constant 0 : index
    %264 = vector.load %arg3[%c1_77, %c0_78, %c0_79] : memref<2x32x96xbf16, #tpu.memory_space<vmem>>, vector<1x32x96xbf16>
    %265 = vector.shape_cast %264 : vector<1x32x96xbf16> to vector<32x96xbf16>
    %cst_80 = arith.constant dense<0.000000e+00> : vector<16x96xf32>
    %266 = tpu.matmul %263, %265, %cst_80 {dimension_numbers = #tpu.dot_dimension_numbers<[1], [0], [0], [1], [0, 0, 1, 1], [], []>} : vector<16x32xbf16>, vector<32x96xbf16>, vector<16x96xf32> -> vector<16x96xf32>
    %c10 = arith.constant 10 : index
    %c0_81 = arith.constant 0 : index
    %267 = vector.load %arg2[%c10, %c0_81] : memref<24x128xf32, #tpu.memory_space<vmem>>, vector<1x96xf32>
    %268 = vector.broadcast %267 : vector<1x96xf32> to vector<16x96xf32>
    %269 = arith.addf %266, %268 : vector<16x96xf32>
    %c0_82 = arith.constant 0 : index
    %c0_83 = arith.constant 0 : index
    %270 = vector.load %arg1[%c0_82, %c0_83] : memref<2x128xf32, #tpu.memory_space<vmem>>, vector<1x8xf32>
    %271 = vector.extract_strided_slice %269 {offsets = [0, 0], sizes = [8, 8], strides = [1, 1]} : vector<16x96xf32> to vector<8x8xf32>
    %272 = vector.extract_strided_slice %269 {offsets = [0, 32], sizes = [8, 8], strides = [1, 1]} : vector<16x96xf32> to vector<8x8xf32>
    %273 = vector.extract_strided_slice %269 {offsets = [0, 64], sizes = [8, 8], strides = [1, 1]} : vector<16x96xf32> to vector<8x8xf32>
    %274 = arith.truncf %271 : vector<8x8xf32> to vector<8x8xbf16>
    %275 = arith.truncf %272 : vector<8x8xf32> to vector<8x8xbf16>
    %cst_84 = arith.constant dense<0.000000e+00> : vector<8x8xf32>
    %276 = tpu.matmul %274, %275, %cst_84 {dimension_numbers = #tpu.dot_dimension_numbers<[1], [1], [0], [0], [0, 0, 1, 0], [], []>} : vector<8x8xbf16>, vector<8x8xbf16>, vector<8x8xf32> -> vector<8x8xf32>
    %277 = vector.broadcast %270 : vector<1x8xf32> to vector<8x8xf32>
    %278 = arith.addf %276, %277 : vector<8x8xf32>
    %279 = math.exp %278 : vector<8x8xf32>
    %cst_85 = arith.constant dense<0.000000e+00> : vector<8xf32>
    %280 = vector.multi_reduction <add>, %279, %cst_85 [1] : vector<8x8xf32> to vector<8xf32>
    %281 = vector.shape_cast %280 : vector<8xf32> to vector<8x1xf32>
    %282 = tpu.reciprocal %281 {approx = true} : vector<8x1xf32> -> vector<8x1xf32>
    %283 = vector.broadcast %282 : vector<8x1xf32> to vector<8x8xf32>
    %284 = arith.mulf %279, %283 : vector<8x8xf32>
    %285 = arith.truncf %284 : vector<8x8xf32> to vector<8x8xbf16>
    %286 = arith.truncf %273 : vector<8x8xf32> to vector<8x8xbf16>
    %cst_86 = arith.constant dense<0.000000e+00> : vector<8x8xf32>
    %287 = tpu.matmul %285, %286, %cst_86 {dimension_numbers = #tpu.dot_dimension_numbers<[1], [0], [0], [1], [0, 0, 1, 1], [], []>} : vector<8x8xbf16>, vector<8x8xbf16>, vector<8x8xf32> -> vector<8x8xf32>
    %288 = vector.extract_strided_slice %269 {offsets = [0, 8], sizes = [8, 8], strides = [1, 1]} : vector<16x96xf32> to vector<8x8xf32>
    %289 = vector.extract_strided_slice %269 {offsets = [0, 40], sizes = [8, 8], strides = [1, 1]} : vector<16x96xf32> to vector<8x8xf32>
    %290 = vector.extract_strided_slice %269 {offsets = [0, 72], sizes = [8, 8], strides = [1, 1]} : vector<16x96xf32> to vector<8x8xf32>
    %291 = arith.truncf %288 : vector<8x8xf32> to vector<8x8xbf16>
    %292 = arith.truncf %289 : vector<8x8xf32> to vector<8x8xbf16>
    %cst_87 = arith.constant dense<0.000000e+00> : vector<8x8xf32>
    %293 = tpu.matmul %291, %292, %cst_87 {dimension_numbers = #tpu.dot_dimension_numbers<[1], [1], [0], [0], [0, 0, 1, 0], [], []>} : vector<8x8xbf16>, vector<8x8xbf16>, vector<8x8xf32> -> vector<8x8xf32>
    %294 = vector.broadcast %270 : vector<1x8xf32> to vector<8x8xf32>
    %295 = arith.addf %293, %294 : vector<8x8xf32>
    %296 = math.exp %295 : vector<8x8xf32>
    %cst_88 = arith.constant dense<0.000000e+00> : vector<8xf32>
    %297 = vector.multi_reduction <add>, %296, %cst_88 [1] : vector<8x8xf32> to vector<8xf32>
    %298 = vector.shape_cast %297 : vector<8xf32> to vector<8x1xf32>
    %299 = tpu.reciprocal %298 {approx = true} : vector<8x1xf32> -> vector<8x1xf32>
    %300 = vector.broadcast %299 : vector<8x1xf32> to vector<8x8xf32>
    %301 = arith.mulf %296, %300 : vector<8x8xf32>
    %302 = arith.truncf %301 : vector<8x8xf32> to vector<8x8xbf16>
    %303 = arith.truncf %290 : vector<8x8xf32> to vector<8x8xbf16>
    %cst_89 = arith.constant dense<0.000000e+00> : vector<8x8xf32>
    %304 = tpu.matmul %302, %303, %cst_89 {dimension_numbers = #tpu.dot_dimension_numbers<[1], [0], [0], [1], [0, 0, 1, 1], [], []>} : vector<8x8xbf16>, vector<8x8xbf16>, vector<8x8xf32> -> vector<8x8xf32>
    %305 = vector.extract_strided_slice %269 {offsets = [0, 16], sizes = [8, 8], strides = [1, 1]} : vector<16x96xf32> to vector<8x8xf32>
    %306 = vector.extract_strided_slice %269 {offsets = [0, 48], sizes = [8, 8], strides = [1, 1]} : vector<16x96xf32> to vector<8x8xf32>
    %307 = vector.extract_strided_slice %269 {offsets = [0, 80], sizes = [8, 8], strides = [1, 1]} : vector<16x96xf32> to vector<8x8xf32>
    %308 = arith.truncf %305 : vector<8x8xf32> to vector<8x8xbf16>
    %309 = arith.truncf %306 : vector<8x8xf32> to vector<8x8xbf16>
    %cst_90 = arith.constant dense<0.000000e+00> : vector<8x8xf32>
    %310 = tpu.matmul %308, %309, %cst_90 {dimension_numbers = #tpu.dot_dimension_numbers<[1], [1], [0], [0], [0, 0, 1, 0], [], []>} : vector<8x8xbf16>, vector<8x8xbf16>, vector<8x8xf32> -> vector<8x8xf32>
    %311 = vector.broadcast %270 : vector<1x8xf32> to vector<8x8xf32>
    %312 = arith.addf %310, %311 : vector<8x8xf32>
    %313 = math.exp %312 : vector<8x8xf32>
    %cst_91 = arith.constant dense<0.000000e+00> : vector<8xf32>
    %314 = vector.multi_reduction <add>, %313, %cst_91 [1] : vector<8x8xf32> to vector<8xf32>
    %315 = vector.shape_cast %314 : vector<8xf32> to vector<8x1xf32>
    %316 = tpu.reciprocal %315 {approx = true} : vector<8x1xf32> -> vector<8x1xf32>
    %317 = vector.broadcast %316 : vector<8x1xf32> to vector<8x8xf32>
    %318 = arith.mulf %313, %317 : vector<8x8xf32>
    %319 = arith.truncf %318 : vector<8x8xf32> to vector<8x8xbf16>
    %320 = arith.truncf %307 : vector<8x8xf32> to vector<8x8xbf16>
    %cst_92 = arith.constant dense<0.000000e+00> : vector<8x8xf32>
    %321 = tpu.matmul %319, %320, %cst_92 {dimension_numbers = #tpu.dot_dimension_numbers<[1], [0], [0], [1], [0, 0, 1, 1], [], []>} : vector<8x8xbf16>, vector<8x8xbf16>, vector<8x8xf32> -> vector<8x8xf32>
    %322 = vector.extract_strided_slice %269 {offsets = [0, 24], sizes = [8, 8], strides = [1, 1]} : vector<16x96xf32> to vector<8x8xf32>
    %323 = vector.extract_strided_slice %269 {offsets = [0, 56], sizes = [8, 8], strides = [1, 1]} : vector<16x96xf32> to vector<8x8xf32>
    %324 = vector.extract_strided_slice %269 {offsets = [0, 88], sizes = [8, 8], strides = [1, 1]} : vector<16x96xf32> to vector<8x8xf32>
    %325 = arith.truncf %322 : vector<8x8xf32> to vector<8x8xbf16>
    %326 = arith.truncf %323 : vector<8x8xf32> to vector<8x8xbf16>
    %cst_93 = arith.constant dense<0.000000e+00> : vector<8x8xf32>
    %327 = tpu.matmul %325, %326, %cst_93 {dimension_numbers = #tpu.dot_dimension_numbers<[1], [1], [0], [0], [0, 0, 1, 0], [], []>} : vector<8x8xbf16>, vector<8x8xbf16>, vector<8x8xf32> -> vector<8x8xf32>
    %328 = vector.broadcast %270 : vector<1x8xf32> to vector<8x8xf32>
    %329 = arith.addf %327, %328 : vector<8x8xf32>
    %330 = math.exp %329 : vector<8x8xf32>
    %cst_94 = arith.constant dense<0.000000e+00> : vector<8xf32>
    %331 = vector.multi_reduction <add>, %330, %cst_94 [1] : vector<8x8xf32> to vector<8xf32>
    %332 = vector.shape_cast %331 : vector<8xf32> to vector<8x1xf32>
    %333 = tpu.reciprocal %332 {approx = true} : vector<8x1xf32> -> vector<8x1xf32>
    %334 = vector.broadcast %333 : vector<8x1xf32> to vector<8x8xf32>
    %335 = arith.mulf %330, %334 : vector<8x8xf32>
    %336 = arith.truncf %335 : vector<8x8xf32> to vector<8x8xbf16>
    %337 = arith.truncf %324 : vector<8x8xf32> to vector<8x8xbf16>
    %cst_95 = arith.constant dense<0.000000e+00> : vector<8x8xf32>
    %338 = tpu.matmul %336, %337, %cst_95 {dimension_numbers = #tpu.dot_dimension_numbers<[1], [0], [0], [1], [0, 0, 1, 1], [], []>} : vector<8x8xbf16>, vector<8x8xbf16>, vector<8x8xf32> -> vector<8x8xf32>
    %339 = tpu.concatenate %287, %304, %321, %338 in 1 : vector<8x8xf32>, vector<8x8xf32>, vector<8x8xf32>, vector<8x8xf32> -> vector<8x32xf32>
    %c1_96 = arith.constant 1 : index
    %c0_97 = arith.constant 0 : index
    %340 = vector.load %arg1[%c1_96, %c0_97] : memref<2x128xf32, #tpu.memory_space<vmem>>, vector<1x8xf32>
    %341 = vector.extract_strided_slice %269 {offsets = [8, 0], sizes = [8, 8], strides = [1, 1]} : vector<16x96xf32> to vector<8x8xf32>
    %342 = vector.extract_strided_slice %269 {offsets = [8, 32], sizes = [8, 8], strides = [1, 1]} : vector<16x96xf32> to vector<8x8xf32>
    %343 = vector.extract_strided_slice %269 {offsets = [8, 64], sizes = [8, 8], strides = [1, 1]} : vector<16x96xf32> to vector<8x8xf32>
    %344 = arith.truncf %341 : vector<8x8xf32> to vector<8x8xbf16>
    %345 = arith.truncf %342 : vector<8x8xf32> to vector<8x8xbf16>
    %cst_98 = arith.constant dense<0.000000e+00> : vector<8x8xf32>
    %346 = tpu.matmul %344, %345, %cst_98 {dimension_numbers = #tpu.dot_dimension_numbers<[1], [1], [0], [0], [0, 0, 1, 0], [], []>} : vector<8x8xbf16>, vector<8x8xbf16>, vector<8x8xf32> -> vector<8x8xf32>
    %347 = vector.broadcast %340 : vector<1x8xf32> to vector<8x8xf32>
    %348 = arith.addf %346, %347 : vector<8x8xf32>
    %349 = math.exp %348 : vector<8x8xf32>
    %cst_99 = arith.constant dense<0.000000e+00> : vector<8xf32>
    %350 = vector.multi_reduction <add>, %349, %cst_99 [1] : vector<8x8xf32> to vector<8xf32>
    %351 = vector.shape_cast %350 : vector<8xf32> to vector<8x1xf32>
    %352 = tpu.reciprocal %351 {approx = true} : vector<8x1xf32> -> vector<8x1xf32>
    %353 = vector.broadcast %352 : vector<8x1xf32> to vector<8x8xf32>
    %354 = arith.mulf %349, %353 : vector<8x8xf32>
    %355 = arith.truncf %354 : vector<8x8xf32> to vector<8x8xbf16>
    %356 = arith.truncf %343 : vector<8x8xf32> to vector<8x8xbf16>
    %cst_100 = arith.constant dense<0.000000e+00> : vector<8x8xf32>
    %357 = tpu.matmul %355, %356, %cst_100 {dimension_numbers = #tpu.dot_dimension_numbers<[1], [0], [0], [1], [0, 0, 1, 1], [], []>} : vector<8x8xbf16>, vector<8x8xbf16>, vector<8x8xf32> -> vector<8x8xf32>
    %358 = vector.extract_strided_slice %269 {offsets = [8, 8], sizes = [8, 8], strides = [1, 1]} : vector<16x96xf32> to vector<8x8xf32>
    %359 = vector.extract_strided_slice %269 {offsets = [8, 40], sizes = [8, 8], strides = [1, 1]} : vector<16x96xf32> to vector<8x8xf32>
    %360 = vector.extract_strided_slice %269 {offsets = [8, 72], sizes = [8, 8], strides = [1, 1]} : vector<16x96xf32> to vector<8x8xf32>
    %361 = arith.truncf %358 : vector<8x8xf32> to vector<8x8xbf16>
    %362 = arith.truncf %359 : vector<8x8xf32> to vector<8x8xbf16>
    %cst_101 = arith.constant dense<0.000000e+00> : vector<8x8xf32>
    %363 = tpu.matmul %361, %362, %cst_101 {dimension_numbers = #tpu.dot_dimension_numbers<[1], [1], [0], [0], [0, 0, 1, 0], [], []>} : vector<8x8xbf16>, vector<8x8xbf16>, vector<8x8xf32> -> vector<8x8xf32>
    %364 = vector.broadcast %340 : vector<1x8xf32> to vector<8x8xf32>
    %365 = arith.addf %363, %364 : vector<8x8xf32>
    %366 = math.exp %365 : vector<8x8xf32>
    %cst_102 = arith.constant dense<0.000000e+00> : vector<8xf32>
    %367 = vector.multi_reduction <add>, %366, %cst_102 [1] : vector<8x8xf32> to vector<8xf32>
    %368 = vector.shape_cast %367 : vector<8xf32> to vector<8x1xf32>
    %369 = tpu.reciprocal %368 {approx = true} : vector<8x1xf32> -> vector<8x1xf32>
    %370 = vector.broadcast %369 : vector<8x1xf32> to vector<8x8xf32>
    %371 = arith.mulf %366, %370 : vector<8x8xf32>
    %372 = arith.truncf %371 : vector<8x8xf32> to vector<8x8xbf16>
    %373 = arith.truncf %360 : vector<8x8xf32> to vector<8x8xbf16>
    %cst_103 = arith.constant dense<0.000000e+00> : vector<8x8xf32>
    %374 = tpu.matmul %372, %373, %cst_103 {dimension_numbers = #tpu.dot_dimension_numbers<[1], [0], [0], [1], [0, 0, 1, 1], [], []>} : vector<8x8xbf16>, vector<8x8xbf16>, vector<8x8xf32> -> vector<8x8xf32>
    %375 = vector.extract_strided_slice %269 {offsets = [8, 16], sizes = [8, 8], strides = [1, 1]} : vector<16x96xf32> to vector<8x8xf32>
    %376 = vector.extract_strided_slice %269 {offsets = [8, 48], sizes = [8, 8], strides = [1, 1]} : vector<16x96xf32> to vector<8x8xf32>
    %377 = vector.extract_strided_slice %269 {offsets = [8, 80], sizes = [8, 8], strides = [1, 1]} : vector<16x96xf32> to vector<8x8xf32>
    %378 = arith.truncf %375 : vector<8x8xf32> to vector<8x8xbf16>
    %379 = arith.truncf %376 : vector<8x8xf32> to vector<8x8xbf16>
    %cst_104 = arith.constant dense<0.000000e+00> : vector<8x8xf32>
    %380 = tpu.matmul %378, %379, %cst_104 {dimension_numbers = #tpu.dot_dimension_numbers<[1], [1], [0], [0], [0, 0, 1, 0], [], []>} : vector<8x8xbf16>, vector<8x8xbf16>, vector<8x8xf32> -> vector<8x8xf32>
    %381 = vector.broadcast %340 : vector<1x8xf32> to vector<8x8xf32>
    %382 = arith.addf %380, %381 : vector<8x8xf32>
    %383 = math.exp %382 : vector<8x8xf32>
    %cst_105 = arith.constant dense<0.000000e+00> : vector<8xf32>
    %384 = vector.multi_reduction <add>, %383, %cst_105 [1] : vector<8x8xf32> to vector<8xf32>
    %385 = vector.shape_cast %384 : vector<8xf32> to vector<8x1xf32>
    %386 = tpu.reciprocal %385 {approx = true} : vector<8x1xf32> -> vector<8x1xf32>
    %387 = vector.broadcast %386 : vector<8x1xf32> to vector<8x8xf32>
    %388 = arith.mulf %383, %387 : vector<8x8xf32>
    %389 = arith.truncf %388 : vector<8x8xf32> to vector<8x8xbf16>
    %390 = arith.truncf %377 : vector<8x8xf32> to vector<8x8xbf16>
    %cst_106 = arith.constant dense<0.000000e+00> : vector<8x8xf32>
    %391 = tpu.matmul %389, %390, %cst_106 {dimension_numbers = #tpu.dot_dimension_numbers<[1], [0], [0], [1], [0, 0, 1, 1], [], []>} : vector<8x8xbf16>, vector<8x8xbf16>, vector<8x8xf32> -> vector<8x8xf32>
    %392 = vector.extract_strided_slice %269 {offsets = [8, 24], sizes = [8, 8], strides = [1, 1]} : vector<16x96xf32> to vector<8x8xf32>
    %393 = vector.extract_strided_slice %269 {offsets = [8, 56], sizes = [8, 8], strides = [1, 1]} : vector<16x96xf32> to vector<8x8xf32>
    %394 = vector.extract_strided_slice %269 {offsets = [8, 88], sizes = [8, 8], strides = [1, 1]} : vector<16x96xf32> to vector<8x8xf32>
    %395 = arith.truncf %392 : vector<8x8xf32> to vector<8x8xbf16>
    %396 = arith.truncf %393 : vector<8x8xf32> to vector<8x8xbf16>
    %cst_107 = arith.constant dense<0.000000e+00> : vector<8x8xf32>
    %397 = tpu.matmul %395, %396, %cst_107 {dimension_numbers = #tpu.dot_dimension_numbers<[1], [1], [0], [0], [0, 0, 1, 0], [], []>} : vector<8x8xbf16>, vector<8x8xbf16>, vector<8x8xf32> -> vector<8x8xf32>
    %398 = vector.broadcast %340 : vector<1x8xf32> to vector<8x8xf32>
    %399 = arith.addf %397, %398 : vector<8x8xf32>
    %400 = math.exp %399 : vector<8x8xf32>
    %cst_108 = arith.constant dense<0.000000e+00> : vector<8xf32>
    %401 = vector.multi_reduction <add>, %400, %cst_108 [1] : vector<8x8xf32> to vector<8xf32>
    %402 = vector.shape_cast %401 : vector<8xf32> to vector<8x1xf32>
    %403 = tpu.reciprocal %402 {approx = true} : vector<8x1xf32> -> vector<8x1xf32>
    %404 = vector.broadcast %403 : vector<8x1xf32> to vector<8x8xf32>
    %405 = arith.mulf %400, %404 : vector<8x8xf32>
    %406 = arith.truncf %405 : vector<8x8xf32> to vector<8x8xbf16>
    %407 = arith.truncf %394 : vector<8x8xf32> to vector<8x8xbf16>
    %cst_109 = arith.constant dense<0.000000e+00> : vector<8x8xf32>
    %408 = tpu.matmul %406, %407, %cst_109 {dimension_numbers = #tpu.dot_dimension_numbers<[1], [0], [0], [1], [0, 0, 1, 1], [], []>} : vector<8x8xbf16>, vector<8x8xbf16>, vector<8x8xf32> -> vector<8x8xf32>
    %409 = tpu.concatenate %357, %374, %391, %408 in 1 : vector<8x8xf32>, vector<8x8xf32>, vector<8x8xf32>, vector<8x8xf32> -> vector<8x32xf32>
    %410 = tpu.concatenate %339, %409 in 0 : vector<8x32xf32>, vector<8x32xf32> -> vector<16x32xf32>
    %411 = arith.truncf %410 : vector<16x32xf32> to vector<16x32xbf16>
    %c1_110 = arith.constant 1 : index
    %c0_111 = arith.constant 0 : index
    %c0_112 = arith.constant 0 : index
    %412 = vector.load %arg4[%c1_110, %c0_111, %c0_112] : memref<2x32x32xbf16, #tpu.memory_space<vmem>>, vector<1x32x32xbf16>
    %413 = vector.shape_cast %412 : vector<1x32x32xbf16> to vector<32x32xbf16>
    %cst_113 = arith.constant dense<0.000000e+00> : vector<16x32xf32>
    %414 = tpu.matmul %411, %413, %cst_113 {dimension_numbers = #tpu.dot_dimension_numbers<[1], [0], [0], [1], [0, 0, 1, 1], [], []>} : vector<16x32xbf16>, vector<32x32xbf16>, vector<16x32xf32> -> vector<16x32xf32>
    %c11 = arith.constant 11 : index
    %c0_114 = arith.constant 0 : index
    %415 = vector.load %arg2[%c11, %c0_114] : memref<24x128xf32, #tpu.memory_space<vmem>>, vector<1x32xf32>
    %416 = vector.broadcast %415 : vector<1x32xf32> to vector<16x32xf32>
    %417 = arith.addf %414, %416 : vector<16x32xf32>
    %418 = arith.addf %417, %262 : vector<16x32xf32>
    %c12 = arith.constant 12 : index
    %c0_115 = arith.constant 0 : index
    %419 = vector.load %arg2[%c12, %c0_115] : memref<24x128xf32, #tpu.memory_space<vmem>>, vector<1x32xf32>
    %c13 = arith.constant 13 : index
    %c0_116 = arith.constant 0 : index
    %420 = vector.load %arg2[%c13, %c0_116] : memref<24x128xf32, #tpu.memory_space<vmem>>, vector<1x32xf32>
    %cst_117 = arith.constant dense<0.000000e+00> : vector<16xf32>
    %421 = vector.multi_reduction <add>, %418, %cst_117 [1] : vector<16x32xf32> to vector<16xf32>
    %422 = vector.shape_cast %421 : vector<16xf32> to vector<16x1xf32>
    %cst_118 = arith.constant 3.200000e+01 : f32
    %423 = vector.broadcast %cst_118 : f32 to vector<16x1xf32>
    %424 = arith.divf %422, %423 : vector<16x1xf32>
    %425 = arith.mulf %418, %418 : vector<16x32xf32>
    %cst_119 = arith.constant dense<0.000000e+00> : vector<16xf32>
    %426 = vector.multi_reduction <add>, %425, %cst_119 [1] : vector<16x32xf32> to vector<16xf32>
    %427 = vector.shape_cast %426 : vector<16xf32> to vector<16x1xf32>
    %cst_120 = arith.constant 3.200000e+01 : f32
    %428 = vector.broadcast %cst_120 : f32 to vector<16x1xf32>
    %429 = arith.divf %427, %428 : vector<16x1xf32>
    %430 = arith.mulf %424, %424 : vector<16x1xf32>
    %431 = arith.subf %429, %430 : vector<16x1xf32>
    %cst_121 = arith.constant 0.000000e+00 : f32
    %432 = vector.broadcast %cst_121 : f32 to vector<16x1xf32>
    %433 = arith.maximumf %431, %432 : vector<16x1xf32>
    %434 = vector.broadcast %424 : vector<16x1xf32> to vector<16x32xf32>
    %435 = arith.subf %418, %434 : vector<16x32xf32>
    %cst_122 = arith.constant 9.99999996E-13 : f32
    %436 = vector.broadcast %cst_122 : f32 to vector<16x1xf32>
    %437 = arith.addf %433, %436 : vector<16x1xf32>
    %438 = math.rsqrt %437 : vector<16x1xf32>
    %439 = vector.broadcast %438 : vector<16x1xf32> to vector<16x32xf32>
    %440 = arith.mulf %435, %439 : vector<16x32xf32>
    %441 = vector.broadcast %419 : vector<1x32xf32> to vector<16x32xf32>
    %442 = arith.mulf %440, %441 : vector<16x32xf32>
    %443 = vector.broadcast %420 : vector<1x32xf32> to vector<16x32xf32>
    %444 = arith.addf %442, %443 : vector<16x32xf32>
    %445 = arith.truncf %444 : vector<16x32xf32> to vector<16x32xbf16>
    %c1_123 = arith.constant 1 : index
    %c0_124 = arith.constant 0 : index
    %c0_125 = arith.constant 0 : index
    %446 = vector.load %arg5[%c1_123, %c0_124, %c0_125] : memref<2x32x64xbf16, #tpu.memory_space<vmem>>, vector<1x32x64xbf16>
    %447 = vector.shape_cast %446 : vector<1x32x64xbf16> to vector<32x64xbf16>
    %cst_126 = arith.constant dense<0.000000e+00> : vector<16x64xf32>
    %448 = tpu.matmul %445, %447, %cst_126 {dimension_numbers = #tpu.dot_dimension_numbers<[1], [0], [0], [1], [0, 0, 1, 1], [], []>} : vector<16x32xbf16>, vector<32x64xbf16>, vector<16x64xf32> -> vector<16x64xf32>
    %c14 = arith.constant 14 : index
    %c0_127 = arith.constant 0 : index
    %449 = vector.load %arg2[%c14, %c0_127] : memref<24x128xf32, #tpu.memory_space<vmem>>, vector<1x64xf32>
    %450 = vector.broadcast %449 : vector<1x64xf32> to vector<16x64xf32>
    %451 = arith.addf %448, %450 : vector<16x64xf32>
    %cst_128 = arith.constant 5.000000e-01 : f32
    %452 = vector.broadcast %cst_128 : f32 to vector<16x64xf32>
    %453 = arith.mulf %452, %451 : vector<16x64xf32>
    %cst_129 = arith.constant 4.471500e-02 : f32
    %454 = vector.broadcast %cst_129 : f32 to vector<16x64xf32>
    %455 = arith.mulf %454, %451 : vector<16x64xf32>
    %456 = arith.mulf %455, %451 : vector<16x64xf32>
    %457 = arith.mulf %456, %451 : vector<16x64xf32>
    %458 = arith.addf %451, %457 : vector<16x64xf32>
    %cst_130 = arith.constant 0.797884583 : f32
    %459 = vector.broadcast %cst_130 : f32 to vector<16x64xf32>
    %460 = arith.mulf %459, %458 : vector<16x64xf32>
    %461 = math.tanh %460 : vector<16x64xf32>
    %cst_131 = arith.constant 1.000000e+00 : f32
    %462 = vector.broadcast %cst_131 : f32 to vector<16x64xf32>
    %463 = arith.addf %462, %461 : vector<16x64xf32>
    %464 = arith.mulf %453, %463 : vector<16x64xf32>
    %465 = arith.truncf %464 : vector<16x64xf32> to vector<16x64xbf16>
    %c1_132 = arith.constant 1 : index
    %c0_133 = arith.constant 0 : index
    %c0_134 = arith.constant 0 : index
    %466 = vector.load %arg6[%c1_132, %c0_133, %c0_134] : memref<2x64x32xbf16, #tpu.memory_space<vmem>>, vector<1x64x32xbf16>
    %467 = vector.shape_cast %466 : vector<1x64x32xbf16> to vector<64x32xbf16>
    %cst_135 = arith.constant dense<0.000000e+00> : vector<16x32xf32>
    %468 = tpu.matmul %465, %467, %cst_135 {dimension_numbers = #tpu.dot_dimension_numbers<[1], [0], [0], [1], [0, 0, 1, 1], [], []>} : vector<16x64xbf16>, vector<64x32xbf16>, vector<16x32xf32> -> vector<16x32xf32>
    %c15 = arith.constant 15 : index
    %c0_136 = arith.constant 0 : index
    %469 = vector.load %arg2[%c15, %c0_136] : memref<24x128xf32, #tpu.memory_space<vmem>>, vector<1x32xf32>
    %470 = vector.broadcast %469 : vector<1x32xf32> to vector<16x32xf32>
    %471 = arith.addf %468, %470 : vector<16x32xf32>
    %472 = arith.addf %471, %444 : vector<16x32xf32>
    %c16 = arith.constant 16 : index
    %c0_137 = arith.constant 0 : index
    %473 = vector.load %arg2[%c16, %c0_137] : memref<24x128xf32, #tpu.memory_space<vmem>>, vector<1x32xf32>
    %c17 = arith.constant 17 : index
    %c0_138 = arith.constant 0 : index
    %474 = vector.load %arg2[%c17, %c0_138] : memref<24x128xf32, #tpu.memory_space<vmem>>, vector<1x32xf32>
    %cst_139 = arith.constant dense<0.000000e+00> : vector<16xf32>
    %475 = vector.multi_reduction <add>, %472, %cst_139 [1] : vector<16x32xf32> to vector<16xf32>
    %476 = vector.shape_cast %475 : vector<16xf32> to vector<16x1xf32>
    %cst_140 = arith.constant 3.200000e+01 : f32
    %477 = vector.broadcast %cst_140 : f32 to vector<16x1xf32>
    %478 = arith.divf %476, %477 : vector<16x1xf32>
    %479 = arith.mulf %472, %472 : vector<16x32xf32>
    %cst_141 = arith.constant dense<0.000000e+00> : vector<16xf32>
    %480 = vector.multi_reduction <add>, %479, %cst_141 [1] : vector<16x32xf32> to vector<16xf32>
    %481 = vector.shape_cast %480 : vector<16xf32> to vector<16x1xf32>
    %cst_142 = arith.constant 3.200000e+01 : f32
    %482 = vector.broadcast %cst_142 : f32 to vector<16x1xf32>
    %483 = arith.divf %481, %482 : vector<16x1xf32>
    %484 = arith.mulf %478, %478 : vector<16x1xf32>
    %485 = arith.subf %483, %484 : vector<16x1xf32>
    %cst_143 = arith.constant 0.000000e+00 : f32
    %486 = vector.broadcast %cst_143 : f32 to vector<16x1xf32>
    %487 = arith.maximumf %485, %486 : vector<16x1xf32>
    %488 = vector.broadcast %478 : vector<16x1xf32> to vector<16x32xf32>
    %489 = arith.subf %472, %488 : vector<16x32xf32>
    %cst_144 = arith.constant 9.99999996E-13 : f32
    %490 = vector.broadcast %cst_144 : f32 to vector<16x1xf32>
    %491 = arith.addf %487, %490 : vector<16x1xf32>
    %492 = math.rsqrt %491 : vector<16x1xf32>
    %493 = vector.broadcast %492 : vector<16x1xf32> to vector<16x32xf32>
    %494 = arith.mulf %489, %493 : vector<16x32xf32>
    %495 = vector.broadcast %473 : vector<1x32xf32> to vector<16x32xf32>
    %496 = arith.mulf %494, %495 : vector<16x32xf32>
    %497 = vector.broadcast %474 : vector<1x32xf32> to vector<16x32xf32>
    %498 = arith.addf %496, %497 : vector<16x32xf32>
    %499 = vector.extract_strided_slice %498 {offsets = [0, 0], sizes = [1, 32], strides = [1, 1]} : vector<16x32xf32> to vector<1x32xf32>
    %500 = vector.extract_strided_slice %498 {offsets = [8, 0], sizes = [1, 32], strides = [1, 1]} : vector<16x32xf32> to vector<1x32xf32>
    %501 = tpu.concatenate %499, %500 in 0 : vector<1x32xf32>, vector<1x32xf32> -> vector<2x32xf32>
    %502 = arith.truncf %501 : vector<2x32xf32> to vector<2x32xbf16>
    %c0_145 = arith.constant 0 : index
    %c0_146 = arith.constant 0 : index
    %503 = vector.load %arg7[%c0_145, %c0_146] : memref<32x32xbf16, #tpu.memory_space<vmem>>, vector<32x32xbf16>
    %cst_147 = arith.constant dense<0.000000e+00> : vector<2x32xf32>
    %504 = tpu.matmul %502, %503, %cst_147 {dimension_numbers = #tpu.dot_dimension_numbers<[1], [0], [0], [1], [0, 0, 1, 1], [], []>} : vector<2x32xbf16>, vector<32x32xbf16>, vector<2x32xf32> -> vector<2x32xf32>
    %c18 = arith.constant 18 : index
    %c0_148 = arith.constant 0 : index
    %505 = vector.load %arg2[%c18, %c0_148] : memref<24x128xf32, #tpu.memory_space<vmem>>, vector<1x32xf32>
    %506 = vector.broadcast %505 : vector<1x32xf32> to vector<2x32xf32>
    %507 = arith.addf %504, %506 : vector<2x32xf32>
    %508 = math.tanh %507 : vector<2x32xf32>
    %c0_149 = arith.constant 0 : index
    %c8_150 = arith.constant 8 : index
    %509 = vector.load %arg1[%c0_149, %c8_150] : memref<2x128xf32, #tpu.memory_space<vmem>>, vector<2x8xf32>
    %510 = arith.truncf %508 : vector<2x32xf32> to vector<2x32xbf16>
    %c0_151 = arith.constant 0 : index
    %c0_152 = arith.constant 0 : index
    %511 = vector.load %arg8[%c0_151, %c0_152] : memref<32x128xbf16, #tpu.memory_space<vmem>>, vector<32x128xbf16>
    %cst_153 = arith.constant dense<0.000000e+00> : vector<2x128xf32>
    %512 = tpu.matmul %510, %511, %cst_153 {dimension_numbers = #tpu.dot_dimension_numbers<[1], [0], [0], [1], [0, 0, 1, 1], [], []>} : vector<2x32xbf16>, vector<32x128xbf16>, vector<2x128xf32> -> vector<2x128xf32>
    %513 = arith.truncf %509 : vector<2x8xf32> to vector<2x8xbf16>
    %c0_154 = arith.constant 0 : index
    %c0_155 = arith.constant 0 : index
    %514 = vector.load %arg9[%c0_154, %c0_155] : memref<8x128xbf16, #tpu.memory_space<vmem>>, vector<8x128xbf16>
    %cst_156 = arith.constant dense<0.000000e+00> : vector<2x128xf32>
    %515 = tpu.matmul %513, %514, %cst_156 {dimension_numbers = #tpu.dot_dimension_numbers<[1], [0], [0], [1], [0, 0, 1, 1], [], []>} : vector<2x8xbf16>, vector<8x128xbf16>, vector<2x128xf32> -> vector<2x128xf32>
    %516 = arith.addf %512, %515 : vector<2x128xf32>
    %c19 = arith.constant 19 : index
    %c0_157 = arith.constant 0 : index
    %517 = vector.load %arg2[%c19, %c0_157] : memref<24x128xf32, #tpu.memory_space<vmem>>, vector<1x128xf32>
    %518 = vector.broadcast %517 : vector<1x128xf32> to vector<2x128xf32>
    %519 = arith.addf %516, %518 : vector<2x128xf32>
    %c0_158 = arith.constant 0 : index
    %c0_159 = arith.constant 0 : index
    %520 = vector.load %arg10[%c0_158, %c0_159] : memref<2x128xf32, #tpu.memory_space<vmem>>, vector<2x128xf32>
    tpu.vector_store %arg10[%c0_158, %c0_159], %519 {strides = array<i32>} : memref<2x128xf32, #tpu.memory_space<vmem>>, vector<2x128xf32>,
    return
  }
}

</mosaic_0001>

<llo_original>
// kernel: bert_bias_classifier_forward.1
$region0: #{bert_bias_classifier_forward.1}
  #allocation0 [shape = 'u32[]', space=smem, size = 0x4, offset = 0x4, fixed_abs, tag = 'smem constant byte address 0x4 - core index']
  #allocation1 [shape = 'u32[144,128]{1,0:T(1,128)}', space=vmem, size = 0x12000, scoped, tag = 'internal scratch']
  %s0 = inlined_call_operand.vmem [shape: f32[16,32], index: 0, kind: input, shape index: {}]
  %s1 = inlined_call_operand.vmem [shape: f32[2,128], index: 1, kind: input, shape index: {}]
  %s2 = inlined_call_operand.vmem [shape: f32[24,128], index: 2, kind: input, shape index: {}]
  %s3 = inlined_call_operand.vmem [shape: bf16[2,32,96], index: 3, kind: input, shape index: {}]
  %s4 = inlined_call_operand.vmem [shape: bf16[2,32,32], index: 4, kind: input, shape index: {}]
  %s5 = inlined_call_operand.vmem [shape: bf16[2,32,64], index: 5, kind: input, shape index: {}]
  %s6 = inlined_call_operand.vmem [shape: bf16[2,64,32], index: 6, kind: input, shape index: {}]
  %s7 = inlined_call_operand.vmem [shape: bf16[32,32], index: 7, kind: input, shape index: {}]
  %s8 = inlined_call_operand.vmem [shape: bf16[32,128], index: 8, kind: input, shape index: {}]
  %s9 = inlined_call_operand.vmem [shape: bf16[8,128], index: 9, kind: input, shape index: {}]
  %s10 = inlined_call_operand.hbm [shape: f32[2,128], index: 10, kind: output, shape index: {}]
  %s11 = sld [smem:[#allocation0]]
  $region50: #{bert_bias_classifier_forward.1} parent=0
    _
  %s13 = ssub.s32 1, %s11
  %s14 = scalar_select 0, %s13, %s11
  $region1: #{bert_bias_classifier_forward.1} parent=0
    #allocation2 [shape = 'u8[1024]{0}', space=vmem, size = 0x400, scoped, tag = 'output window, operand 0, single buffered']
    #allocation3 [shape = 's32[1]{0}', space=sflag, size = 0x4, scoped, tag = 'scoped memory for bert_bias_classifier_forward.1']
    %15 = vsyncpa [#allocation3], 0
    // Predicated region
    $region2: #{bert_bias_classifier_forward.1} parent=1 // pred_check
      _
    $region3: #{bert_bias_classifier_forward.1} parent=1 // pred_check_branch
      %17 = sbr.rel (0) target = $region5
    $region4: #{bert_bias_classifier_forward.1} parent=1 // pred_region
      _
    $region5: #{bert_bias_classifier_forward.1} parent=1 // pred_fallthru
      _
    // Predicated region
    $region6: #{bert_bias_classifier_forward.1} parent=1 // pred_check
      _
    $region7: #{bert_bias_classifier_forward.1} parent=1 // pred_check_branch
      %19 = sbr.rel (0) target = $region9
    $region8: #{bert_bias_classifier_forward.1} parent=1 // pred_region
      _
    $region9: #{bert_bias_classifier_forward.1} parent=1 // pred_fallthru
      _
    // Predicated region
    $region10: #{bert_bias_classifier_forward.1} parent=1 // pred_check
      _
    $region11: #{bert_bias_classifier_forward.1} parent=1 // pred_check_branch
      %21 = sbr.rel (0) target = $region13
    $region12: #{bert_bias_classifier_forward.1} parent=1 // pred_region
      _
    $region13: #{bert_bias_classifier_forward.1} parent=1 // pred_fallthru
      _
    // Predicated region
    $region14: #{bert_bias_classifier_forward.1} parent=1 // pred_check
      _
    $region15: #{bert_bias_classifier_forward.1} parent=1 // pred_check_branch
      %23 = sbr.rel (0) target = $region17
    $region16: #{bert_bias_classifier_forward.1} parent=1 // pred_region
      _
    $region17: #{bert_bias_classifier_forward.1} parent=1 // pred_fallthru
      _
    // Predicated region
    $region18: #{bert_bias_classifier_forward.1} parent=1 // pred_check
      _
    $region19: #{bert_bias_classifier_forward.1} parent=1 // pred_check_branch
      %25 = sbr.rel (0) target = $region21
    $region20: #{bert_bias_classifier_forward.1} parent=1 // pred_region
      _
    $region21: #{bert_bias_classifier_forward.1} parent=1 // pred_fallthru
      _
    // Predicated region
    $region22: #{bert_bias_classifier_forward.1} parent=1 // pred_check
      _
    $region23: #{bert_bias_classifier_forward.1} parent=1 // pred_check_branch
      %27 = sbr.rel (0) target = $region25
    $region24: #{bert_bias_classifier_forward.1} parent=1 // pred_region
      _
    $region25: #{bert_bias_classifier_forward.1} parent=1 // pred_fallthru
      _
    // Predicated region
    $region26: #{bert_bias_classifier_forward.1} parent=1 // pred_check
      _
    $region27: #{bert_bias_classifier_forward.1} parent=1 // pred_check_branch
      %29 = sbr.rel (0) target = $region29
    $region28: #{bert_bias_classifier_forward.1} parent=1 // pred_region
      _
    $region29: #{bert_bias_classifier_forward.1} parent=1 // pred_fallthru
      _
    // Predicated region
    $region30: #{bert_bias_classifier_forward.1} parent=1 // pred_check
      _
    $region31: #{bert_bias_classifier_forward.1} parent=1 // pred_check_branch
      %31 = sbr.rel (0) target = $region33
    $region32: #{bert_bias_classifier_forward.1} parent=1 // pred_region
      _
    $region33: #{bert_bias_classifier_forward.1} parent=1 // pred_fallthru
      _
    // Predicated region
    $region34: #{bert_bias_classifier_forward.1} parent=1 // pred_check
      _
    $region35: #{bert_bias_classifier_forward.1} parent=1 // pred_check_branch
      %33 = sbr.rel (0) target = $region37
    $region36: #{bert_bias_classifier_forward.1} parent=1 // pred_region
      _
    $region37: #{bert_bias_classifier_forward.1} parent=1 // pred_fallthru
      _
    // Predicated region
    $region38: #{bert_bias_classifier_forward.1} parent=1 // pred_check
      _
    $region39: #{bert_bias_classifier_forward.1} parent=1 // pred_check_branch
      %35 = sbr.rel (0) target = $region41
    $region40: #{bert_bias_classifier_forward.1} parent=1 // pred_region
      _
    $region41: #{bert_bias_classifier_forward.1} parent=1 // pred_fallthru
      _
    %v37 = vld [vmem:[%s0] sm:$0xff]
    %v38 = vld [vmem:[%s0 + $0x8] sm:$0xff]
    %v39 = vld [vmem:[%s2] sm:$0x1]
    %v40 = vld [vmem:[%s2 + $0x1] sm:$0x1]
    %vm41 = vcmask 261120
    %v42 = vsel %vm41, %v37, 0.0
    %43 = vadd.xlane.f32.xlu0 %v42
    %v44 = vpop.xlane.xlu0 %43
    %v45 = vsel %vm41, %v38, 0.0
    %46 = vadd.xlane.f32.xlu0 %v45
    %v47 = vpop.xlane.xlu0 %46
    %v48 = vrcp.pop 32.0
    %v49 = vmul.f32 %v44, %v48
    %v50 = vmul.f32 %v47, %v48
    %v51 = vmul.f32 %v37, %v37
    %v52 = vmul.f32 %v38, %v38
    %v53 = vsel %vm41, %v51, 0.0
    %54 = vadd.xlane.f32.xlu0 %v53
    %v55 = vpop.xlane.xlu0 %54
    %v56 = vsel %vm41, %v52, 0.0
    %57 = vadd.xlane.f32.xlu0 %v56
    %v58 = vpop.xlane.xlu0 %57
    %v59 = vmul.f32 %v55, %v48
    %v60 = vmul.f32 %v58, %v48
    %v61 = vmul.f32 %v49, %v49
    %v62 = vmul.f32 %v50, %v50
    %v63 = vsub.f32 %v59, %v61
    %v64 = vsub.f32 %v60, %v62
    %v65 = vmax.f32 %v63, 0.0
    %v66 = vmax.f32 %v64, 0.0
    %v67 = vsub.f32 %v37, %v49
    %v68 = vsub.f32 %v38, %v50
    %v69 = vadd.f32 %v65, 1e-12
    %v70 = vadd.f32 %v66, 1e-12
    %v71 = vrsqrt.pop %v69
    %v72 = vrsqrt.pop %v70
    %v73 = vmul.f32 %v67, %v71
    %v74 = vmul.f32 %v68, %v72
    %v75 = vlaneseq
    %v76 = vshrl.u32 %v75, 7
    %v77 = vsub.s32 0, %v76
    %v78 = vrot.slane %v39, %v77
    %v79 = vmul.f32 %v73, %v78
    %v80 = vmul.f32 %v74, %v78
    %v81 = vlaneseq
    %v82 = vshrl.u32 %v81, 7
    %v83 = vsub.s32 0, %v82
    %v84 = vrot.slane %v40, %v83
    %v85 = vadd.f32 %v79, %v84
    %v86 = vadd.f32 %v80, %v84
    %v87 = vpack.c.bf16 %v86, %v85
    %v88 = vld [vmem:[%s3] sm:$0xf]
    %v89 = vld [vmem:[%s3 + $0x4] sm:$0xf]
    %v90 = vld [vmem:[%s3 + $0x8] sm:$0xf]
    %v91 = vld [vmem:[%s3 + $0xc] sm:$0xf]
    %v92 = vld [vmem:[%s2 + $0x2] sm:$0x1]
    %v93 = vlaneseq
    %v94 = vshrl.u32 %v93, 7
    %v95 = vsub.s32 0, %v94
    %v96 = vrot.slane %v92, %v95
    %v101 = vunpack.c.l.b16 %v88
    %v102 = vunpack.c.l.b16 %v89
    %v103 = vunpack.c.l.b16 %v90
    %v104 = vunpack.c.l.b16 %v91
    %v105 = vpack.c.b16 %v102, %v101
    %v106 = vpack.c.b16 %v104, %v103
    %v110 = vsel %vm41, %v87, 0
    %112 = vmatprep.subr.bf16.mxu0 0
    %113 = vmatpush1.bf16.msra.mxu0 %v105
    %114 = vmatprep.subr.bf16.mxu0 0
    %115 = vmatpush1.bf16.msra.mxu0 %v106
    %116 = vmatprep.subr.bf16.mxu0 0
    %117 = vmatpush1.bf16.msra.mxu0 0
    %118 = vmatprep.subr.bf16.mxu0 0
    %119 = vmatpush1.bf16.msra.mxu0 0
    %120 = vmatprep.subr.bf16.mxu0 0
    %121 = vmatpush1.bf16.msra.mxu0 0
    %122 = vmatprep.subr.bf16.mxu0 0
    %123 = vmatpush1.bf16.msra.mxu0 0
    %124 = vmatprep.subr.bf16.mxu0 0
    %125 = vmatpush1.bf16.msra.mxu0 0
    %126 = vmatprep.subr.bf16.mxu0 0
    %127 = vmatpush1.bf16.msra.mxu0 0
    %128 = vmatprep.subr.bf16.mxu0 0
    %129 = vmatpush1.bf16.msra.mxu0 0
    %130 = vmatprep.subr.bf16.mxu0 0
    %131 = vmatpush1.bf16.msra.mxu0 0
    %132 = vmatprep.subr.bf16.mxu0 0
    %133 = vmatpush1.bf16.msra.mxu0 0
    %134 = vmatprep.subr.bf16.mxu0 0
    %135 = vmatpush1.bf16.msra.mxu0 0
    %136 = vmatprep.subr.bf16.mxu0 0
    %137 = vmatpush1.bf16.msra.mxu0 0
    %138 = vmatprep.subr.bf16.mxu0 0
    %139 = vmatpush1.bf16.msra.mxu0 0
    %140 = vmatprep.subr.bf16.mxu0 0
    %141 = vmatpush1.bf16.msra.mxu0 0
    %142 = vmatprep.subr.bf16.mxu0 0
    %143 = vmatpush1.bf16.msra.mxu0 0
    %144 = vmatprep.mubr.bf16.mxu0 0
    %145 = vmatmul.mubr.bf16.gmra.mrb[0].mxu0 %v110
    %v146 = vpop.f32.mrb[0].mxu0
    %v147 = vadd.f32 %v96, %v146
    %v148 = vpop.f32.mrb[0].mxu0
    %v149 = vpop.f32.mrb[0].mxu0
    %v150 = vadd.f32 %v96, %v149
    %v151 = vpop.f32.mrb[0].mxu0
    %152 = vdwg.mxu0
    %v153 = vld [vmem:[%s1] sm:$0x1]
    %v154 = vpack.c.bf16 %v147, %v147
    %v155 = vlaneseq
    %v156 = vshrl.u32 %v155, 7
    %v157 = vsub.s32 0, %v156
    %v158 = vrot.slane %v153, %v157
    %160 = vrot.lane.b32.xlu0 %v154, 96
    %v161 = vpop.permute.xlu0 %160
    %vm162 = vcmask 64512
    %v164 = vsel %vm162, %v154, 0
    %v167 = vsel %vm162, %v161, 0
    %169 = vmatprep.subr.bf16.mxu0 0
    %170 = vmatpush1.bf16.xpose.msra.mxu0 %v167
    %171 = vmatprep.subr.bf16.mxu0 0
    %172 = vmatpush1.bf16.xpose.msra.mxu0 0
    %173 = vmatprep.subr.bf16.mxu0 0
    %174 = vmatpush1.bf16.xpose.msra.mxu0 0
    %175 = vmatprep.subr.bf16.mxu0 0
    %176 = vmatpush1.bf16.xpose.msra.mxu0 0
    %177 = vmatprep.subr.bf16.mxu0 0
    %178 = vmatpush1.bf16.xpose.msra.mxu0 0
    %179 = vmatprep.subr.bf16.mxu0 0
    %180 = vmatpush1.bf16.xpose.msra.mxu0 0
    %181 = vmatprep.subr.bf16.mxu0 0
    %182 = vmatpush1.bf16.xpose.msra.mxu0 0
    %183 = vmatprep.subr.bf16.mxu0 0
    %184 = vmatpush1.bf16.xpose.msra.mxu0 0
    %185 = vmatprep.subr.bf16.mxu0 0
    %186 = vmatpush1.bf16.xpose.msra.mxu0 0
    %187 = vmatprep.subr.bf16.mxu0 0
    %188 = vmatpush1.bf16.xpose.msra.mxu0 0
    %189 = vmatprep.subr.bf16.mxu0 0
    %190 = vmatpush1.bf16.xpose.msra.mxu0 0
    %191 = vmatprep.subr.bf16.mxu0 0
    %192 = vmatpush1.bf16.xpose.msra.mxu0 0
    %193 = vmatprep.subr.bf16.mxu0 0
    %194 = vmatpush1.bf16.xpose.msra.mxu0 0
    %195 = vmatprep.subr.bf16.mxu0 0
    %196 = vmatpush1.bf16.xpose.msra.mxu0 0
    %197 = vmatprep.subr.bf16.mxu0 0
    %198 = vmatpush1.bf16.xpose.msra.mxu0 0
    %199 = vmatprep.subr.bf16.mxu0 0
    %200 = vmatpush1.bf16.xpose.msra.mxu0 0
    %201 = vmatprep.mubr.bf16.mxu0 0
    %202 = vmatmul.mubr.bf16.gmra.mrb[0].mxu0 %v164
    %v203 = vpop.f32.mrb[0].mxu0
    %v204 = vadd.f32 %v158, %v203
    %v205 = vpop.f32.mrb[0].mxu0
    %v206 = vpop.f32.mrb[0].mxu0
    %v207 = vpop.f32.mrb[0].mxu0
    %208 = vdwg.mxu0
    %v209 = vmul.f32 %v204, 1.442695
    %v210 = vpow.pop %v209
    %v211 = vsel %vm162, %v210, 0.0
    %212 = vadd.xlane.f32.xlu0 %v211
    %v213 = vpop.xlane.xlu0 %212
    %v214 = vrcp.pop %v213
    %v215 = vmul.f32 %v210, %v214
    %v216 = vpack.c.bf16 %v215, %v215
    %217 = vrot.lane.b32.xlu0 %v154, 64
    %v218 = vpop.permute.xlu0 %217
    %v220 = vsel %vm162, %v216, 0
    %vm222 = vcmask 1043456
    %v224 = vsel %vm222, %v218, 0
    %226 = vmatprep.subr.bf16.mxu0 0
    %227 = vmatpush1.bf16.msra.mxu0 %v224
    %228 = vmatprep.subr.bf16.mxu0 0
    %229 = vmatpush1.bf16.msra.mxu0 0
    %230 = vmatprep.subr.bf16.mxu0 0
    %231 = vmatpush1.bf16.msra.mxu0 0
    %232 = vmatprep.subr.bf16.mxu0 0
    %233 = vmatpush1.bf16.msra.mxu0 0
    %234 = vmatprep.subr.bf16.mxu0 0
    %235 = vmatpush1.bf16.msra.mxu0 0
    %236 = vmatprep.subr.bf16.mxu0 0
    %237 = vmatpush1.bf16.msra.mxu0 0
    %238 = vmatprep.subr.bf16.mxu0 0
    %239 = vmatpush1.bf16.msra.mxu0 0
    %240 = vmatprep.subr.bf16.mxu0 0
    %241 = vmatpush1.bf16.msra.mxu0 0
    %242 = vmatprep.subr.bf16.mxu0 0
    %243 = vmatpush1.bf16.msra.mxu0 0
    %244 = vmatprep.subr.bf16.mxu0 0
    %245 = vmatpush1.bf16.msra.mxu0 0
    %246 = vmatprep.subr.bf16.mxu0 0
    %247 = vmatpush1.bf16.msra.mxu0 0
    %248 = vmatprep.subr.bf16.mxu0 0
    %249 = vmatpush1.bf16.msra.mxu0 0
    %250 = vmatprep.subr.bf16.mxu0 0
    %251 = vmatpush1.bf16.msra.mxu0 0
    %252 = vmatprep.subr.bf16.mxu0 0
    %253 = vmatpush1.bf16.msra.mxu0 0
    %254 = vmatprep.subr.bf16.mxu0 0
    %255 = vmatpush1.bf16.msra.mxu0 0
    %256 = vmatprep.subr.bf16.mxu0 0
    %257 = vmatpush1.bf16.msra.mxu0 0
    %258 = vmatprep.mubr.bf16.mxu0 0
    %259 = vmatmul.mubr.bf16.gmra.mrb[0].mxu0 %v220
    %v260 = vpop.f32.mrb[0].mxu0
    %v261 = vadd.f32 0.0, %v260
    %v262 = vpop.f32.mrb[0].mxu0
    %v263 = vpop.f32.mrb[0].mxu0
    %v264 = vpop.f32.mrb[0].mxu0
    %265 = vdwg.mxu0
    %266 = vrot.lane.b32.xlu0 %v154, 120
    %v267 = vpop.permute.xlu0 %266
    %268 = vrot.lane.b32.xlu0 %v154, 88
    %v269 = vpop.permute.xlu0 %268
    %v271 = vsel %vm162, %v267, 0
    %v274 = vsel %vm162, %v269, 0
    %276 = vmatprep.subr.bf16.mxu0 0
    %277 = vmatpush1.bf16.xpose.msra.mxu0 %v274
    %278 = vmatprep.subr.bf16.mxu0 0
    %279 = vmatpush1.bf16.xpose.msra.mxu0 0
    %280 = vmatprep.subr.bf16.mxu0 0
    %281 = vmatpush1.bf16.xpose.msra.mxu0 0
    %282 = vmatprep.subr.bf16.mxu0 0
    %283 = vmatpush1.bf16.xpose.msra.mxu0 0
    %284 = vmatprep.subr.bf16.mxu0 0
    %285 = vmatpush1.bf16.xpose.msra.mxu0 0
    %286 = vmatprep.subr.bf16.mxu0 0
    %287 = vmatpush1.bf16.xpose.msra.mxu0 0
    %288 = vmatprep.subr.bf16.mxu0 0
    %289 = vmatpush1.bf16.xpose.msra.mxu0 0
    %290 = vmatprep.subr.bf16.mxu0 0
    %291 = vmatpush1.bf16.xpose.msra.mxu0 0
    %292 = vmatprep.subr.bf16.mxu0 0
    %293 = vmatpush1.bf16.xpose.msra.mxu0 0
    %294 = vmatprep.subr.bf16.mxu0 0
    %295 = vmatpush1.bf16.xpose.msra.mxu0 0
    %296 = vmatprep.subr.bf16.mxu0 0
    %297 = vmatpush1.bf16.xpose.msra.mxu0 0
    %298 = vmatprep.subr.bf16.mxu0 0
    %299 = vmatpush1.bf16.xpose.msra.mxu0 0
    %300 = vmatprep.subr.bf16.mxu0 0
    %301 = vmatpush1.bf16.xpose.msra.mxu0 0
    %302 = vmatprep.subr.bf16.mxu0 0
    %303 = vmatpush1.bf16.xpose.msra.mxu0 0
    %304 = vmatprep.subr.bf16.mxu0 0
    %305 = vmatpush1.bf16.xpose.msra.mxu0 0
    %306 = vmatprep.subr.bf16.mxu0 0
    %307 = vmatpush1.bf16.xpose.msra.mxu0 0
    %308 = vmatprep.mubr.bf16.mxu0 0
    %309 = vmatmul.mubr.bf16.gmra.mrb[0].mxu0 %v271
    %v310 = vpop.f32.mrb[0].mxu0
    %v311 = vadd.f32 %v158, %v310
    %v312 = vpop.f32.mrb[0].mxu0
    %v313 = vpop.f32.mrb[0].mxu0
    %v314 = vpop.f32.mrb[0].mxu0
    %315 = vdwg.mxu0
    %v316 = vmul.f32 %v311, 1.442695
    %v317 = vpow.pop %v316
    %v318 = vsel %vm162, %v317, 0.0
    %319 = vadd.xlane.f32.xlu0 %v318
    %v320 = vpop.xlane.xlu0 %319
    %v321 = vrcp.pop %v320
    %v322 = vmul.f32 %v317, %v321
    %v323 = vpack.c.bf16 %v322, %v322
    %324 = vrot.lane.b32.xlu0 %v154, 56
    %v325 = vpop.permute.xlu0 %324
    %v327 = vsel %vm162, %v323, 0
    %v330 = vsel %vm222, %v325, 0
    %332 = vmatprep.subr.bf16.mxu0 0
    %333 = vmatpush1.bf16.msra.mxu0 %v330
    %334 = vmatprep.subr.bf16.mxu0 0
    %335 = vmatpush1.bf16.msra.mxu0 0
    %336 = vmatprep.subr.bf16.mxu0 0
    %337 = vmatpush1.bf16.msra.mxu0 0
    %338 = vmatprep.subr.bf16.mxu0 0
    %339 = vmatpush1.bf16.msra.mxu0 0
    %340 = vmatprep.subr.bf16.mxu0 0
    %341 = vmatpush1.bf16.msra.mxu0 0
    %342 = vmatprep.subr.bf16.mxu0 0
    %343 = vmatpush1.bf16.msra.mxu0 0
    %344 = vmatprep.subr.bf16.mxu0 0
    %345 = vmatpush1.bf16.msra.mxu0 0
    %346 = vmatprep.subr.bf16.mxu0 0
    %347 = vmatpush1.bf16.msra.mxu0 0
    %348 = vmatprep.subr.bf16.mxu0 0
    %349 = vmatpush1.bf16.msra.mxu0 0
    %350 = vmatprep.subr.bf16.mxu0 0
    %351 = vmatpush1.bf16.msra.mxu0 0
    %352 = vmatprep.subr.bf16.mxu0 0
    %353 = vmatpush1.bf16.msra.mxu0 0
    %354 = vmatprep.subr.bf16.mxu0 0
    %355 = vmatpush1.bf16.msra.mxu0 0
    %356 = vmatprep.subr.bf16.mxu0 0
    %357 = vmatpush1.bf16.msra.mxu0 0
    %358 = vmatprep.subr.bf16.mxu0 0
    %359 = vmatpush1.bf16.msra.mxu0 0
    %360 = vmatprep.subr.bf16.mxu0 0
    %361 = vmatpush1.bf16.msra.mxu0 0
    %362 = vmatprep.subr.bf16.mxu0 0
    %363 = vmatpush1.bf16.msra.mxu0 0
    %364 = vmatprep.mubr.bf16.mxu0 0
    %365 = vmatmul.mubr.bf16.gmra.mrb[0].mxu0 %v327
    %v366 = vpop.f32.mrb[0].mxu0
    %v367 = vadd.f32 0.0, %v366
    %v368 = vpop.f32.mrb[0].mxu0
    %v369 = vpop.f32.mrb[0].mxu0
    %v370 = vpop.f32.mrb[0].mxu0
    %371 = vdwg.mxu0
    %372 = vrot.lane.b32.xlu0 %v154, 112
    %v373 = vpop.permute.xlu0 %372
    %374 = vrot.lane.b32.xlu0 %v154, 80
    %v375 = vpop.permute.xlu0 %374
    %v377 = vsel %vm162, %v373, 0
    %v380 = vsel %vm162, %v375, 0
    %382 = vmatprep.subr.bf16.mxu0 0
    %383 = vmatpush1.bf16.xpose.msra.mxu0 %v380
    %384 = vmatprep.subr.bf16.mxu0 0
    %385 = vmatpush1.bf16.xpose.msra.mxu0 0
    %386 = vmatprep.subr.bf16.mxu0 0
    %387 = vmatpush1.bf16.xpose.msra.mxu0 0
    %388 = vmatprep.subr.bf16.mxu0 0
    %389 = vmatpush1.bf16.xpose.msra.mxu0 0
    %390 = vmatprep.subr.bf16.mxu0 0
    %391 = vmatpush1.bf16.xpose.msra.mxu0 0
    %392 = vmatprep.subr.bf16.mxu0 0
    %393 = vmatpush1.bf16.xpose.msra.mxu0 0
    %394 = vmatprep.subr.bf16.mxu0 0
    %395 = vmatpush1.bf16.xpose.msra.mxu0 0
    %396 = vmatprep.subr.bf16.mxu0 0
    %397 = vmatpush1.bf16.xpose.msra.mxu0 0
    %398 = vmatprep.subr.bf16.mxu0 0
    %399 = vmatpush1.bf16.xpose.msra.mxu0 0
    %400 = vmatprep.subr.bf16.mxu0 0
    %401 = vmatpush1.bf16.xpose.msra.mxu0 0
    %402 = vmatprep.subr.bf16.mxu0 0
    %403 = vmatpush1.bf16.xpose.msra.mxu0 0
    %404 = vmatprep.subr.bf16.mxu0 0
    %405 = vmatpush1.bf16.xpose.msra.mxu0 0
    %406 = vmatprep.subr.bf16.mxu0 0
    %407 = vmatpush1.bf16.xpose.msra.mxu0 0
    %408 = vmatprep.subr.bf16.mxu0 0
    %409 = vmatpush1.bf16.xpose.msra.mxu0 0
    %410 = vmatprep.subr.bf16.mxu0 0
    %411 = vmatpush1.bf16.xpose.msra.mxu0 0
    %412 = vmatprep.subr.bf16.mxu0 0
    %413 = vmatpush1.bf16.xpose.msra.mxu0 0
    %414 = vmatprep.mubr.bf16.mxu0 0
    %415 = vmatmul.mubr.bf16.gmra.mrb[0].mxu0 %v377
    %v416 = vpop.f32.mrb[0].mxu0
    %v417 = vadd.f32 %v158, %v416
    %v418 = vpop.f32.mrb[0].mxu0
    %v419 = vpop.f32.mrb[0].mxu0
    %v420 = vpop.f32.mrb[0].mxu0
    %421 = vdwg.mxu0
    %v422 = vmul.f32 %v417, 1.442695
    %v423 = vpow.pop %v422
    %v424 = vsel %vm162, %v423, 0.0
    %425 = vadd.xlane.f32.xlu0 %v424
    %v426 = vpop.xlane.xlu0 %425
    %v427 = vrcp.pop %v426
    %v428 = vmul.f32 %v423, %v427
    %v429 = vpack.c.bf16 %v428, %v428
    %430 = vrot.lane.b32.xlu0 %v154, 48
    %v431 = vpop.permute.xlu0 %430
    %v433 = vsel %vm162, %v429, 0
    %v436 = vsel %vm222, %v431, 0
    %438 = vmatprep.subr.bf16.mxu0 0
    %439 = vmatpush1.bf16.msra.mxu0 %v436
    %440 = vmatprep.subr.bf16.mxu0 0
    %441 = vmatpush1.bf16.msra.mxu0 0
    %442 = vmatprep.subr.bf16.mxu0 0
    %443 = vmatpush1.bf16.msra.mxu0 0
    %444 = vmatprep.subr.bf16.mxu0 0
    %445 = vmatpush1.bf16.msra.mxu0 0
    %446 = vmatprep.subr.bf16.mxu0 0
    %447 = vmatpush1.bf16.msra.mxu0 0
    %448 = vmatprep.subr.bf16.mxu0 0
    %449 = vmatpush1.bf16.msra.mxu0 0
    %450 = vmatprep.subr.bf16.mxu0 0
    %451 = vmatpush1.bf16.msra.mxu0 0
    %452 = vmatprep.subr.bf16.mxu0 0
    %453 = vmatpush1.bf16.msra.mxu0 0
    %454 = vmatprep.subr.bf16.mxu0 0
    %455 = vmatpush1.bf16.msra.mxu0 0
    %456 = vmatprep.subr.bf16.mxu0 0
    %457 = vmatpush1.bf16.msra.mxu0 0
    %458 = vmatprep.subr.bf16.mxu0 0
    %459 = vmatpush1.bf16.msra.mxu0 0
    %460 = vmatprep.subr.bf16.mxu0 0
    %461 = vmatpush1.bf16.msra.mxu0 0
    %462 = vmatprep.subr.bf16.mxu0 0
    %463 = vmatpush1.bf16.msra.mxu0 0
    %464 = vmatprep.subr.bf16.mxu0 0
    %465 = vmatpush1.bf16.msra.mxu0 0
    %466 = vmatprep.subr.bf16.mxu0 0
    %467 = vmatpush1.bf16.msra.mxu0 0
    %468 = vmatprep.subr.bf16.mxu0 0
    %469 = vmatpush1.bf16.msra.mxu0 0
    %470 = vmatprep.mubr.bf16.mxu0 0
    %471 = vmatmul.mubr.bf16.gmra.mrb[0].mxu0 %v433
    %v472 = vpop.f32.mrb[0].mxu0
    %v473 = vadd.f32 0.0, %v472
    %v474 = vpop.f32.mrb[0].mxu0
    %v475 = vpop.f32.mrb[0].mxu0
    %v476 = vpop.f32.mrb[0].mxu0
    %477 = vdwg.mxu0
    %478 = vrot.lane.b32.xlu0 %v154, 104
    %v479 = vpop.permute.xlu0 %478
    %480 = vrot.lane.b32.xlu0 %v154, 72
    %v481 = vpop.permute.xlu0 %480
    %v483 = vsel %vm162, %v479, 0
    %v486 = vsel %vm162, %v481, 0
    %488 = vmatprep.subr.bf16.mxu0 0
    %489 = vmatpush1.bf16.xpose.msra.mxu0 %v486
    %490 = vmatprep.subr.bf16.mxu0 0
    %491 = vmatpush1.bf16.xpose.msra.mxu0 0
    %492 = vmatprep.subr.bf16.mxu0 0
    %493 = vmatpush1.bf16.xpose.msra.mxu0 0
    %494 = vmatprep.subr.bf16.mxu0 0
    %495 = vmatpush1.bf16.xpose.msra.mxu0 0
    %496 = vmatprep.subr.bf16.mxu0 0
    %497 = vmatpush1.bf16.xpose.msra.mxu0 0
    %498 = vmatprep.subr.bf16.mxu0 0
    %499 = vmatpush1.bf16.xpose.msra.mxu0 0
    %500 = vmatprep.subr.bf16.mxu0 0
    %501 = vmatpush1.bf16.xpose.msra.mxu0 0
    %502 = vmatprep.subr.bf16.mxu0 0
    %503 = vmatpush1.bf16.xpose.msra.mxu0 0
    %504 = vmatprep.subr.bf16.mxu0 0
    %505 = vmatpush1.bf16.xpose.msra.mxu0 0
    %506 = vmatprep.subr.bf16.mxu0 0
    %507 = vmatpush1.bf16.xpose.msra.mxu0 0
    %508 = vmatprep.subr.bf16.mxu0 0
    %509 = vmatpush1.bf16.xpose.msra.mxu0 0
    %510 = vmatprep.subr.bf16.mxu0 0
    %511 = vmatpush1.bf16.xpose.msra.mxu0 0
    %512 = vmatprep.subr.bf16.mxu0 0
    %513 = vmatpush1.bf16.xpose.msra.mxu0 0
    %514 = vmatprep.subr.bf16.mxu0 0
    %515 = vmatpush1.bf16.xpose.msra.mxu0 0
    %516 = vmatprep.subr.bf16.mxu0 0
    %517 = vmatpush1.bf16.xpose.msra.mxu0 0
    %518 = vmatprep.subr.bf16.mxu0 0
    %519 = vmatpush1.bf16.xpose.msra.mxu0 0
    %520 = vmatprep.mubr.bf16.mxu0 0
    %521 = vmatmul.mubr.bf16.gmra.mrb[0].mxu0 %v483
    %v522 = vpop.f32.mrb[0].mxu0
    %v523 = vadd.f32 %v158, %v522
    %v524 = vpop.f32.mrb[0].mxu0
    %v525 = vpop.f32.mrb[0].mxu0
    %v526 = vpop.f32.mrb[0].mxu0
    %527 = vdwg.mxu0
    %v528 = vmul.f32 %v523, 1.442695
    %v529 = vpow.pop %v528
    %v530 = vsel %vm162, %v529, 0.0
    %531 = vadd.xlane.f32.xlu0 %v530
    %v532 = vpop.xlane.xlu0 %531
    %v533 = vrcp.pop %v532
    %v534 = vmul.f32 %v529, %v533
    %v535 = vpack.c.bf16 %v534, %v534
    %536 = vrot.lane.b32.xlu0 %v154, 40
    %v537 = vpop.permute.xlu0 %536
    %v539 = vsel %vm162, %v535, 0
    %v542 = vsel %vm222, %v537, 0
    %544 = vmatprep.subr.bf16.mxu0 0
    %545 = vmatpush1.bf16.msra.mxu0 %v542
    %546 = vmatprep.subr.bf16.mxu0 0
    %547 = vmatpush1.bf16.msra.mxu0 0
    %548 = vmatprep.subr.bf16.mxu0 0
    %549 = vmatpush1.bf16.msra.mxu0 0
    %550 = vmatprep.subr.bf16.mxu0 0
    %551 = vmatpush1.bf16.msra.mxu0 0
    %552 = vmatprep.subr.bf16.mxu0 0
    %553 = vmatpush1.bf16.msra.mxu0 0
    %554 = vmatprep.subr.bf16.mxu0 0
    %555 = vmatpush1.bf16.msra.mxu0 0
    %556 = vmatprep.subr.bf16.mxu0 0
    %557 = vmatpush1.bf16.msra.mxu0 0
    %558 = vmatprep.subr.bf16.mxu0 0
    %559 = vmatpush1.bf16.msra.mxu0 0
    %560 = vmatprep.subr.bf16.mxu0 0
    %561 = vmatpush1.bf16.msra.mxu0 0
    %562 = vmatprep.subr.bf16.mxu0 0
    %563 = vmatpush1.bf16.msra.mxu0 0
    %564 = vmatprep.subr.bf16.mxu0 0
    %565 = vmatpush1.bf16.msra.mxu0 0
    %566 = vmatprep.subr.bf16.mxu0 0
    %567 = vmatpush1.bf16.msra.mxu0 0
    %568 = vmatprep.subr.bf16.mxu0 0
    %569 = vmatpush1.bf16.msra.mxu0 0
    %570 = vmatprep.subr.bf16.mxu0 0
    %571 = vmatpush1.bf16.msra.mxu0 0
    %572 = vmatprep.subr.bf16.mxu0 0
    %573 = vmatpush1.bf16.msra.mxu0 0
    %574 = vmatprep.subr.bf16.mxu0 0
    %575 = vmatpush1.bf16.msra.mxu0 0
    %576 = vmatprep.mubr.bf16.mxu0 0
    %577 = vmatmul.mubr.bf16.gmra.mrb[0].mxu0 %v539
    %v578 = vpop.f32.mrb[0].mxu0
    %v579 = vadd.f32 0.0, %v578
    %v580 = vpop.f32.mrb[0].mxu0
    %v581 = vpop.f32.mrb[0].mxu0
    %v582 = vpop.f32.mrb[0].mxu0
    %583 = vdwg.mxu0
    %585 = vrot.lane.b32.xlu0 %v367, 8
    %v586 = vpop.permute.xlu0 %585
    %589 = vrot.lane.b32.xlu0 %v473, 16
    %v590 = vpop.permute.xlu0 %589
    %593 = vrot.lane.b32.xlu0 %v579, 24
    %v594 = vpop.permute.xlu0 %593
    %v596 = vsel %vm162, %v261, %v586
    %vm597 = vcmask 130048
    %v598 = vsel %vm597, %v596, %v590
    %vm599 = vcmask 195584
    %v600 = vsel %vm599, %v598, %v594
    %v601 = vld [vmem:[%s1 + $0x1] sm:$0x1]
    %v602 = vpack.c.bf16 %v150, %v150
    %v603 = vlaneseq
    %v604 = vshrl.u32 %v603, 7
    %v605 = vsub.s32 0, %v604
    %v606 = vrot.slane %v601, %v605
    %608 = vrot.lane.b32.xlu0 %v602, 96
    %v609 = vpop.permute.xlu0 %608
    %v611 = vsel %vm162, %v602, 0
    %v614 = vsel %vm162, %v609, 0
    %616 = vmatprep.subr.bf16.mxu0 0
    %617 = vmatpush1.bf16.xpose.msra.mxu0 %v614
    %618 = vmatprep.subr.bf16.mxu0 0
    %619 = vmatpush1.bf16.xpose.msra.mxu0 0
    %620 = vmatprep.subr.bf16.mxu0 0
    %621 = vmatpush1.bf16.xpose.msra.mxu0 0
    %622 = vmatprep.subr.bf16.mxu0 0
    %623 = vmatpush1.bf16.xpose.msra.mxu0 0
    %624 = vmatprep.subr.bf16.mxu0 0
    %625 = vmatpush1.bf16.xpose.msra.mxu0 0
    %626 = vmatprep.subr.bf16.mxu0 0
    %627 = vmatpush1.bf16.xpose.msra.mxu0 0
    %628 = vmatprep.subr.bf16.mxu0 0
    %629 = vmatpush1.bf16.xpose.msra.mxu0 0
    %630 = vmatprep.subr.bf16.mxu0 0
    %631 = vmatpush1.bf16.xpose.msra.mxu0 0
    %632 = vmatprep.subr.bf16.mxu0 0
    %633 = vmatpush1.bf16.xpose.msra.mxu0 0
    %634 = vmatprep.subr.bf16.mxu0 0
    %635 = vmatpush1.bf16.xpose.msra.mxu0 0
    %636 = vmatprep.subr.bf16.mxu0 0
    %637 = vmatpush1.bf16.xpose.msra.mxu0 0
    %638 = vmatprep.subr.bf16.mxu0 0
    %639 = vmatpush1.bf16.xpose.msra.mxu0 0
    %640 = vmatprep.subr.bf16.mxu0 0
    %641 = vmatpush1.bf16.xpose.msra.mxu0 0
    %642 = vmatprep.subr.bf16.mxu0 0
    %643 = vmatpush1.bf16.xpose.msra.mxu0 0
    %644 = vmatprep.subr.bf16.mxu0 0
    %645 = vmatpush1.bf16.xpose.msra.mxu0 0
    %646 = vmatprep.subr.bf16.mxu0 0
    %647 = vmatpush1.bf16.xpose.msra.mxu0 0
    %648 = vmatprep.mubr.bf16.mxu0 0
    %649 = vmatmul.mubr.bf16.gmra.mrb[0].mxu0 %v611
    %v650 = vpop.f32.mrb[0].mxu0
    %v651 = vadd.f32 %v606, %v650
    %v652 = vpop.f32.mrb[0].mxu0
    %v653 = vpop.f32.mrb[0].mxu0
    %v654 = vpop.f32.mrb[0].mxu0
    %655 = vdwg.mxu0
    %v656 = vmul.f32 %v651, 1.442695
    %v657 = vpow.pop %v656
    %v658 = vsel %vm162, %v657, 0.0
    %659 = vadd.xlane.f32.xlu0 %v658
    %v660 = vpop.xlane.xlu0 %659
    %v661 = vrcp.pop %v660
    %v662 = vmul.f32 %v657, %v661
    %v663 = vpack.c.bf16 %v662, %v662
    %664 = vrot.lane.b32.xlu0 %v602, 64
    %v665 = vpop.permute.xlu0 %664
    %v667 = vsel %vm162, %v663, 0
    %v670 = vsel %vm222, %v665, 0
    %672 = vmatprep.subr.bf16.mxu0 0
    %673 = vmatpush1.bf16.msra.mxu0 %v670
    %674 = vmatprep.subr.bf16.mxu0 0
    %675 = vmatpush1.bf16.msra.mxu0 0
    %676 = vmatprep.subr.bf16.mxu0 0
    %677 = vmatpush1.bf16.msra.mxu0 0
    %678 = vmatprep.subr.bf16.mxu0 0
    %679 = vmatpush1.bf16.msra.mxu0 0
    %680 = vmatprep.subr.bf16.mxu0 0
    %681 = vmatpush1.bf16.msra.mxu0 0
    %682 = vmatprep.subr.bf16.mxu0 0
    %683 = vmatpush1.bf16.msra.mxu0 0
    %684 = vmatprep.subr.bf16.mxu0 0
    %685 = vmatpush1.bf16.msra.mxu0 0
    %686 = vmatprep.subr.bf16.mxu0 0
    %687 = vmatpush1.bf16.msra.mxu0 0
    %688 = vmatprep.subr.bf16.mxu0 0
    %689 = vmatpush1.bf16.msra.mxu0 0
    %690 = vmatprep.subr.bf16.mxu0 0
    %691 = vmatpush1.bf16.msra.mxu0 0
    %692 = vmatprep.subr.bf16.mxu0 0
    %693 = vmatpush1.bf16.msra.mxu0 0
    %694 = vmatprep.subr.bf16.mxu0 0
    %695 = vmatpush1.bf16.msra.mxu0 0
    %696 = vmatprep.subr.bf16.mxu0 0
    %697 = vmatpush1.bf16.msra.mxu0 0
    %698 = vmatprep.subr.bf16.mxu0 0
    %699 = vmatpush1.bf16.msra.mxu0 0
    %700 = vmatprep.subr.bf16.mxu0 0
    %701 = vmatpush1.bf16.msra.mxu0 0
    %702 = vmatprep.subr.bf16.mxu0 0
    %703 = vmatpush1.bf16.msra.mxu0 0
    %704 = vmatprep.mubr.bf16.mxu0 0
    %705 = vmatmul.mubr.bf16.gmra.mrb[0].mxu0 %v667
    %v706 = vpop.f32.mrb[0].mxu0
    %v707 = vadd.f32 0.0, %v706
    %v708 = vpop.f32.mrb[0].mxu0
    %v709 = vpop.f32.mrb[0].mxu0
    %v710 = vpop.f32.mrb[0].mxu0
    %711 = vdwg.mxu0
    %712 = vrot.lane.b32.xlu0 %v602, 120
    %v713 = vpop.permute.xlu0 %712
    %714 = vrot.lane.b32.xlu0 %v602, 88
    %v715 = vpop.permute.xlu0 %714
    %v717 = vsel %vm162, %v713, 0
    %v720 = vsel %vm162, %v715, 0
    %722 = vmatprep.subr.bf16.mxu0 0
    %723 = vmatpush1.bf16.xpose.msra.mxu0 %v720
    %724 = vmatprep.subr.bf16.mxu0 0
    %725 = vmatpush1.bf16.xpose.msra.mxu0 0
    %726 = vmatprep.subr.bf16.mxu0 0
    %727 = vmatpush1.bf16.xpose.msra.mxu0 0
    %728 = vmatprep.subr.bf16.mxu0 0
    %729 = vmatpush1.bf16.xpose.msra.mxu0 0
    %730 = vmatprep.subr.bf16.mxu0 0
    %731 = vmatpush1.bf16.xpose.msra.mxu0 0
    %732 = vmatprep.subr.bf16.mxu0 0
    %733 = vmatpush1.bf16.xpose.msra.mxu0 0
    %734 = vmatprep.subr.bf16.mxu0 0
    %735 = vmatpush1.bf16.xpose.msra.mxu0 0
    %736 = vmatprep.subr.bf16.mxu0 0
    %737 = vmatpush1.bf16.xpose.msra.mxu0 0
    %738 = vmatprep.subr.bf16.mxu0 0
    %739 = vmatpush1.bf16.xpose.msra.mxu0 0
    %740 = vmatprep.subr.bf16.mxu0 0
    %741 = vmatpush1.bf16.xpose.msra.mxu0 0
    %742 = vmatprep.subr.bf16.mxu0 0
    %743 = vmatpush1.bf16.xpose.msra.mxu0 0
    %744 = vmatprep.subr.bf16.mxu0 0
    %745 = vmatpush1.bf16.xpose.msra.mxu0 0
    %746 = vmatprep.subr.bf16.mxu0 0
    %747 = vmatpush1.bf16.xpose.msra.mxu0 0
    %748 = vmatprep.subr.bf16.mxu0 0
    %749 = vmatpush1.bf16.xpose.msra.mxu0 0
    %750 = vmatprep.subr.bf16.mxu0 0
    %751 = vmatpush1.bf16.xpose.msra.mxu0 0
    %752 = vmatprep.subr.bf16.mxu0 0
    %753 = vmatpush1.bf16.xpose.msra.mxu0 0
    %754 = vmatprep.mubr.bf16.mxu0 0
    %755 = vmatmul.mubr.bf16.gmra.mrb[0].mxu0 %v717
    %v756 = vpop.f32.mrb[0].mxu0
    %v757 = vadd.f32 %v606, %v756
    %v758 = vpop.f32.mrb[0].mxu0
    %v759 = vpop.f32.mrb[0].mxu0
    %v760 = vpop.f32.mrb[0].mxu0
    %761 = vdwg.mxu0
    %v762 = vmul.f32 %v757, 1.442695
    %v763 = vpow.pop %v762
    %v764 = vsel %vm162, %v763, 0.0
    %765 = vadd.xlane.f32.xlu0 %v764
    %v766 = vpop.xlane.xlu0 %765
    %v767 = vrcp.pop %v766
    %v768 = vmul.f32 %v763, %v767
    %v769 = vpack.c.bf16 %v768, %v768
    %770 = vrot.lane.b32.xlu0 %v602, 56
    %v771 = vpop.permute.xlu0 %770
    %v773 = vsel %vm162, %v769, 0
    %v776 = vsel %vm222, %v771, 0
    %778 = vmatprep.subr.bf16.mxu0 0
    %779 = vmatpush1.bf16.msra.mxu0 %v776
    %780 = vmatprep.subr.bf16.mxu0 0
    %781 = vmatpush1.bf16.msra.mxu0 0
    %782 = vmatprep.subr.bf16.mxu0 0
    %783 = vmatpush1.bf16.msra.mxu0 0
    %784 = vmatprep.subr.bf16.mxu0 0
    %785 = vmatpush1.bf16.msra.mxu0 0
    %786 = vmatprep.subr.bf16.mxu0 0
    %787 = vmatpush1.bf16.msra.mxu0 0
    %788 = vmatprep.subr.bf16.mxu0 0
    %789 = vmatpush1.bf16.msra.mxu0 0
    %790 = vmatprep.subr.bf16.mxu0 0
    %791 = vmatpush1.bf16.msra.mxu0 0
    %792 = vmatprep.subr.bf16.mxu0 0
    %793 = vmatpush1.bf16.msra.mxu0 0
    %794 = vmatprep.subr.bf16.mxu0 0
    %795 = vmatpush1.bf16.msra.mxu0 0
    %796 = vmatprep.subr.bf16.mxu0 0
    %797 = vmatpush1.bf16.msra.mxu0 0
    %798 = vmatprep.subr.bf16.mxu0 0
    %799 = vmatpush1.bf16.msra.mxu0 0
    %800 = vmatprep.subr.bf16.mxu0 0
    %801 = vmatpush1.bf16.msra.mxu0 0
    %802 = vmatprep.subr.bf16.mxu0 0
    %803 = vmatpush1.bf16.msra.mxu0 0
    %804 = vmatprep.subr.bf16.mxu0 0
    %805 = vmatpush1.bf16.msra.mxu0 0
    %806 = vmatprep.subr.bf16.mxu0 0
    %807 = vmatpush1.bf16.msra.mxu0 0
    %808 = vmatprep.subr.bf16.mxu0 0
    %809 = vmatpush1.bf16.msra.mxu0 0
    %810 = vmatprep.mubr.bf16.mxu0 0
    %811 = vmatmul.mubr.bf16.gmra.mrb[0].mxu0 %v773
    %v812 = vpop.f32.mrb[0].mxu0
    %v813 = vadd.f32 0.0, %v812
    %v814 = vpop.f32.mrb[0].mxu0
    %v815 = vpop.f32.mrb[0].mxu0
    %v816 = vpop.f32.mrb[0].mxu0
    %817 = vdwg.mxu0
    %818 = vrot.lane.b32.xlu0 %v602, 112
    %v819 = vpop.permute.xlu0 %818
    %820 = vrot.lane.b32.xlu0 %v602, 80
    %v821 = vpop.permute.xlu0 %820
    %v823 = vsel %vm162, %v819, 0
    %v826 = vsel %vm162, %v821, 0
    %828 = vmatprep.subr.bf16.mxu0 0
    %829 = vmatpush1.bf16.xpose.msra.mxu0 %v826
    %830 = vmatprep.subr.bf16.mxu0 0
    %831 = vmatpush1.bf16.xpose.msra.mxu0 0
    %832 = vmatprep.subr.bf16.mxu0 0
    %833 = vmatpush1.bf16.xpose.msra.mxu0 0
    %834 = vmatprep.subr.bf16.mxu0 0
    %835 = vmatpush1.bf16.xpose.msra.mxu0 0
    %836 = vmatprep.subr.bf16.mxu0 0
    %837 = vmatpush1.bf16.xpose.msra.mxu0 0
    %838 = vmatprep.subr.bf16.mxu0 0
    %839 = vmatpush1.bf16.xpose.msra.mxu0 0
    %840 = vmatprep.subr.bf16.mxu0 0
    %841 = vmatpush1.bf16.xpose.msra.mxu0 0
    %842 = vmatprep.subr.bf16.mxu0 0
    %843 = vmatpush1.bf16.xpose.msra.mxu0 0
    %844 = vmatprep.subr.bf16.mxu0 0
    %845 = vmatpush1.bf16.xpose.msra.mxu0 0
    %846 = vmatprep.subr.bf16.mxu0 0
    %847 = vmatpush1.bf16.xpose.msra.mxu0 0
    %848 = vmatprep.subr.bf16.mxu0 0
    %849 = vmatpush1.bf16.xpose.msra.mxu0 0
    %850 = vmatprep.subr.bf16.mxu0 0
    %851 = vmatpush1.bf16.xpose.msra.mxu0 0
    %852 = vmatprep.subr.bf16.mxu0 0
    %853 = vmatpush1.bf16.xpose.msra.mxu0 0
    %854 = vmatprep.subr.bf16.mxu0 0
    %855 = vmatpush1.bf16.xpose.msra.mxu0 0
    %856 = vmatprep.subr.bf16.mxu0 0
    %857 = vmatpush1.bf16.xpose.msra.mxu0 0
    %858 = vmatprep.subr.bf16.mxu0 0
    %859 = vmatpush1.bf16.xpose.msra.mxu0 0
    %860 = vmatprep.mubr.bf16.mxu0 0
    %861 = vmatmul.mubr.bf16.gmra.mrb[0].mxu0 %v823
    %v862 = vpop.f32.mrb[0].mxu0
    %v863 = vadd.f32 %v606, %v862
    %v864 = vpop.f32.mrb[0].mxu0
    %v865 = vpop.f32.mrb[0].mxu0
    %v866 = vpop.f32.mrb[0].mxu0
    %867 = vdwg.mxu0
    %v868 = vmul.f32 %v863, 1.442695
    %v869 = vpow.pop %v868
    %v870 = vsel %vm162, %v869, 0.0
    %871 = vadd.xlane.f32.xlu0 %v870
    %v872 = vpop.xlane.xlu0 %871
    %v873 = vrcp.pop %v872
    %v874 = vmul.f32 %v869, %v873
    %v875 = vpack.c.bf16 %v874, %v874
    %876 = vrot.lane.b32.xlu0 %v602, 48
    %v877 = vpop.permute.xlu0 %876
    %v879 = vsel %vm162, %v875, 0
    %v882 = vsel %vm222, %v877, 0
    %884 = vmatprep.subr.bf16.mxu0 0
    %885 = vmatpush1.bf16.msra.mxu0 %v882
    %886 = vmatprep.subr.bf16.mxu0 0
    %887 = vmatpush1.bf16.msra.mxu0 0
    %888 = vmatprep.subr.bf16.mxu0 0
    %889 = vmatpush1.bf16.msra.mxu0 0
    %890 = vmatprep.subr.bf16.mxu0 0
    %891 = vmatpush1.bf16.msra.mxu0 0
    %892 = vmatprep.subr.bf16.mxu0 0
    %893 = vmatpush1.bf16.msra.mxu0 0
    %894 = vmatprep.subr.bf16.mxu0 0
    %895 = vmatpush1.bf16.msra.mxu0 0
    %896 = vmatprep.subr.bf16.mxu0 0
    %897 = vmatpush1.bf16.msra.mxu0 0
    %898 = vmatprep.subr.bf16.mxu0 0
    %899 = vmatpush1.bf16.msra.mxu0 0
    %900 = vmatprep.subr.bf16.mxu0 0
    %901 = vmatpush1.bf16.msra.mxu0 0
    %902 = vmatprep.subr.bf16.mxu0 0
    %903 = vmatpush1.bf16.msra.mxu0 0
    %904 = vmatprep.subr.bf16.mxu0 0
    %905 = vmatpush1.bf16.msra.mxu0 0
    %906 = vmatprep.subr.bf16.mxu0 0
    %907 = vmatpush1.bf16.msra.mxu0 0
    %908 = vmatprep.subr.bf16.mxu0 0
    %909 = vmatpush1.bf16.msra.mxu0 0
    %910 = vmatprep.subr.bf16.mxu0 0
    %911 = vmatpush1.bf16.msra.mxu0 0
    %912 = vmatprep.subr.bf16.mxu0 0
    %913 = vmatpush1.bf16.msra.mxu0 0
    %914 = vmatprep.subr.bf16.mxu0 0
    %915 = vmatpush1.bf16.msra.mxu0 0
    %916 = vmatprep.mubr.bf16.mxu0 0
    %917 = vmatmul.mubr.bf16.gmra.mrb[0].mxu0 %v879
    %v918 = vpop.f32.mrb[0].mxu0
    %v919 = vadd.f32 0.0, %v918
    %v920 = vpop.f32.mrb[0].mxu0
    %v921 = vpop.f32.mrb[0].mxu0
    %v922 = vpop.f32.mrb[0].mxu0
    %923 = vdwg.mxu0
    %924 = vrot.lane.b32.xlu0 %v602, 104
    %v925 = vpop.permute.xlu0 %924
    %926 = vrot.lane.b32.xlu0 %v602, 72
    %v927 = vpop.permute.xlu0 %926
    %v929 = vsel %vm162, %v925, 0
    %v932 = vsel %vm162, %v927, 0
    %934 = vmatprep.subr.bf16.mxu0 0
    %935 = vmatpush1.bf16.xpose.msra.mxu0 %v932
    %936 = vmatprep.subr.bf16.mxu0 0
    %937 = vmatpush1.bf16.xpose.msra.mxu0 0
    %938 = vmatprep.subr.bf16.mxu0 0
    %939 = vmatpush1.bf16.xpose.msra.mxu0 0
    %940 = vmatprep.subr.bf16.mxu0 0
    %941 = vmatpush1.bf16.xpose.msra.mxu0 0
    %942 = vmatprep.subr.bf16.mxu0 0
    %943 = vmatpush1.bf16.xpose.msra.mxu0 0
    %944 = vmatprep.subr.bf16.mxu0 0
    %945 = vmatpush1.bf16.xpose.msra.mxu0 0
    %946 = vmatprep.subr.bf16.mxu0 0
    %947 = vmatpush1.bf16.xpose.msra.mxu0 0
    %948 = vmatprep.subr.bf16.mxu0 0
    %949 = vmatpush1.bf16.xpose.msra.mxu0 0
    %950 = vmatprep.subr.bf16.mxu0 0
    %951 = vmatpush1.bf16.xpose.msra.mxu0 0
    %952 = vmatprep.subr.bf16.mxu0 0
    %953 = vmatpush1.bf16.xpose.msra.mxu0 0
    %954 = vmatprep.subr.bf16.mxu0 0
    %955 = vmatpush1.bf16.xpose.msra.mxu0 0
    %956 = vmatprep.subr.bf16.mxu0 0
    %957 = vmatpush1.bf16.xpose.msra.mxu0 0
    %958 = vmatprep.subr.bf16.mxu0 0
    %959 = vmatpush1.bf16.xpose.msra.mxu0 0
    %960 = vmatprep.subr.bf16.mxu0 0
    %961 = vmatpush1.bf16.xpose.msra.mxu0 0
    %962 = vmatprep.subr.bf16.mxu0 0
    %963 = vmatpush1.bf16.xpose.msra.mxu0 0
    %964 = vmatprep.subr.bf16.mxu0 0
    %965 = vmatpush1.bf16.xpose.msra.mxu0 0
    %966 = vmatprep.mubr.bf16.mxu0 0
    %967 = vmatmul.mubr.bf16.gmra.mrb[0].mxu0 %v929
    %v968 = vpop.f32.mrb[0].mxu0
    %v969 = vadd.f32 %v606, %v968
    %v970 = vpop.f32.mrb[0].mxu0
    %v971 = vpop.f32.mrb[0].mxu0
    %v972 = vpop.f32.mrb[0].mxu0
    %973 = vdwg.mxu0
    %v974 = vmul.f32 %v969, 1.442695
    %v975 = vpow.pop %v974
    %v976 = vsel %vm162, %v975, 0.0
    %977 = vadd.xlane.f32.xlu0 %v976
    %v978 = vpop.xlane.xlu0 %977
    %v979 = vrcp.pop %v978
    %v980 = vmul.f32 %v975, %v979
    %v981 = vpack.c.bf16 %v980, %v980
    %982 = vrot.lane.b32.xlu0 %v602, 40
    %v983 = vpop.permute.xlu0 %982
    %v985 = vsel %vm162, %v981, 0
    %v988 = vsel %vm222, %v983, 0
    %990 = vmatprep.subr.bf16.mxu0 0
    %991 = vmatpush1.bf16.msra.mxu0 %v988
    %992 = vmatprep.subr.bf16.mxu0 0
    %993 = vmatpush1.bf16.msra.mxu0 0
    %994 = vmatprep.subr.bf16.mxu0 0
    %995 = vmatpush1.bf16.msra.mxu0 0
    %996 = vmatprep.subr.bf16.mxu0 0
    %997 = vmatpush1.bf16.msra.mxu0 0
    %998 = vmatprep.subr.bf16.mxu0 0
    %999 = vmatpush1.bf16.msra.mxu0 0
    %1000 = vmatprep.subr.bf16.mxu0 0
    %1001 = vmatpush1.bf16.msra.mxu0 0
    %1002 = vmatprep.subr.bf16.mxu0 0
    %1003 = vmatpush1.bf16.msra.mxu0 0
    %1004 = vmatprep.subr.bf16.mxu0 0
    %1005 = vmatpush1.bf16.msra.mxu0 0
    %1006 = vmatprep.subr.bf16.mxu0 0
    %1007 = vmatpush1.bf16.msra.mxu0 0
    %1008 = vmatprep.subr.bf16.mxu0 0
    %1009 = vmatpush1.bf16.msra.mxu0 0
    %1010 = vmatprep.subr.bf16.mxu0 0
    %1011 = vmatpush1.bf16.msra.mxu0 0
    %1012 = vmatprep.subr.bf16.mxu0 0
    %1013 = vmatpush1.bf16.msra.mxu0 0
    %1014 = vmatprep.subr.bf16.mxu0 0
    %1015 = vmatpush1.bf16.msra.mxu0 0
    %1016 = vmatprep.subr.bf16.mxu0 0
    %1017 = vmatpush1.bf16.msra.mxu0 0
    %1018 = vmatprep.subr.bf16.mxu0 0
    %1019 = vmatpush1.bf16.msra.mxu0 0
    %1020 = vmatprep.subr.bf16.mxu0 0
    %1021 = vmatpush1.bf16.msra.mxu0 0
    %1022 = vmatprep.mubr.bf16.mxu0 0
    %1023 = vmatmul.mubr.bf16.gmra.mrb[0].mxu0 %v985
    %v1024 = vpop.f32.mrb[0].mxu0
    %v1025 = vadd.f32 0.0, %v1024
    %v1026 = vpop.f32.mrb[0].mxu0
    %v1027 = vpop.f32.mrb[0].mxu0
    %v1028 = vpop.f32.mrb[0].mxu0
    %1029 = vdwg.mxu0
    %1031 = vrot.lane.b32.xlu0 %v813, 8
    %v1032 = vpop.permute.xlu0 %1031
    %1035 = vrot.lane.b32.xlu0 %v919, 16
    %v1036 = vpop.permute.xlu0 %1035
    %1039 = vrot.lane.b32.xlu0 %v1025, 24
    %v1040 = vpop.permute.xlu0 %1039
    %v1042 = vsel %vm162, %v707, %v1032
    %v1043 = vsel %vm597, %v1042, %v1036
    %v1044 = vsel %vm599, %v1043, %v1040
    %v1045 = vpack.c.bf16 %v1044, %v600
    %v1046 = vld [vmem:[%s4] sm:$0xf]
    %v1047 = vld [vmem:[%s4 + $0x4] sm:$0xf]
    %v1048 = vld [vmem:[%s4 + $0x8] sm:$0xf]
    %v1049 = vld [vmem:[%s4 + $0xc] sm:$0xf]
    %v1050 = vld [vmem:[%s2 + $0x3] sm:$0x1]
    %v1051 = vlaneseq
    %v1052 = vshrl.u32 %v1051, 7
    %v1053 = vsub.s32 0, %v1052
    %v1054 = vrot.slane %v1050, %v1053
    %v1059 = vunpack.c.l.b16 %v1046
    %v1060 = vunpack.c.l.b16 %v1047
    %v1061 = vunpack.c.l.b16 %v1048
    %v1062 = vunpack.c.l.b16 %v1049
    %v1063 = vpack.c.b16 %v1060, %v1059
    %v1064 = vpack.c.b16 %v1062, %v1061
    %v1068 = vsel %vm41, %v1045, 0
    %1070 = vmatprep.subr.bf16.mxu0 0
    %1071 = vmatpush1.bf16.msra.mxu0 %v1063
    %1072 = vmatprep.subr.bf16.mxu0 0
    %1073 = vmatpush1.bf16.msra.mxu0 %v1064
    %1074 = vmatprep.subr.bf16.mxu0 0
    %1075 = vmatpush1.bf16.msra.mxu0 0
    %1076 = vmatprep.subr.bf16.mxu0 0
    %1077 = vmatpush1.bf16.msra.mxu0 0
    %1078 = vmatprep.subr.bf16.mxu0 0
    %1079 = vmatpush1.bf16.msra.mxu0 0
    %1080 = vmatprep.subr.bf16.mxu0 0
    %1081 = vmatpush1.bf16.msra.mxu0 0
    %1082 = vmatprep.subr.bf16.mxu0 0
    %1083 = vmatpush1.bf16.msra.mxu0 0
    %1084 = vmatprep.subr.bf16.mxu0 0
    %1085 = vmatpush1.bf16.msra.mxu0 0
    %1086 = vmatprep.subr.bf16.mxu0 0
    %1087 = vmatpush1.bf16.msra.mxu0 0
    %1088 = vmatprep.subr.bf16.mxu0 0
    %1089 = vmatpush1.bf16.msra.mxu0 0
    %1090 = vmatprep.subr.bf16.mxu0 0
    %1091 = vmatpush1.bf16.msra.mxu0 0
    %1092 = vmatprep.subr.bf16.mxu0 0
    %1093 = vmatpush1.bf16.msra.mxu0 0
    %1094 = vmatprep.subr.bf16.mxu0 0
    %1095 = vmatpush1.bf16.msra.mxu0 0
    %1096 = vmatprep.subr.bf16.mxu0 0
    %1097 = vmatpush1.bf16.msra.mxu0 0
    %1098 = vmatprep.subr.bf16.mxu0 0
    %1099 = vmatpush1.bf16.msra.mxu0 0
    %1100 = vmatprep.subr.bf16.mxu0 0
    %1101 = vmatpush1.bf16.msra.mxu0 0
    %1102 = vmatprep.mubr.bf16.mxu0 0
    %1103 = vmatmul.mubr.bf16.gmra.mrb[0].mxu0 %v1068
    %v1104 = vpop.f32.mrb[0].mxu0
    %v1105 = vadd.f32 %v1054, %v1104
    %v1106 = vpop.f32.mrb[0].mxu0
    %v1107 = vpop.f32.mrb[0].mxu0
    %v1108 = vadd.f32 %v1054, %v1107
    %v1109 = vpop.f32.mrb[0].mxu0
    %1110 = vdwg.mxu0
    %v1111 = vadd.f32 %v1105, %v85
    %v1112 = vadd.f32 %v1108, %v86
    %v1113 = vld [vmem:[%s2 + $0x4] sm:$0x1]
    %v1114 = vld [vmem:[%s2 + $0x5] sm:$0x1]
    %v1115 = vsel %vm41, %v1111, 0.0
    %1116 = vadd.xlane.f32.xlu0 %v1115
    %v1117 = vpop.xlane.xlu0 %1116
    %v1118 = vsel %vm41, %v1112, 0.0
    %1119 = vadd.xlane.f32.xlu0 %v1118
    %v1120 = vpop.xlane.xlu0 %1119
    %v1121 = vmul.f32 %v1117, %v48
    %v1122 = vmul.f32 %v1120, %v48
    %v1123 = vmul.f32 %v1111, %v1111
    %v1124 = vmul.f32 %v1112, %v1112
    %v1125 = vsel %vm41, %v1123, 0.0
    %1126 = vadd.xlane.f32.xlu0 %v1125
    %v1127 = vpop.xlane.xlu0 %1126
    %v1128 = vsel %vm41, %v1124, 0.0
    %1129 = vadd.xlane.f32.xlu0 %v1128
    %v1130 = vpop.xlane.xlu0 %1129
    %v1131 = vmul.f32 %v1127, %v48
    %v1132 = vmul.f32 %v1130, %v48
    %v1133 = vmul.f32 %v1121, %v1121
    %v1134 = vmul.f32 %v1122, %v1122
    %v1135 = vsub.f32 %v1131, %v1133
    %v1136 = vsub.f32 %v1132, %v1134
    %v1137 = vmax.f32 %v1135, 0.0
    %v1138 = vmax.f32 %v1136, 0.0
    %v1139 = vsub.f32 %v1111, %v1121
    %v1140 = vsub.f32 %v1112, %v1122
    %v1141 = vadd.f32 %v1137, 1e-12
    %v1142 = vadd.f32 %v1138, 1e-12
    %v1143 = vrsqrt.pop %v1141
    %v1144 = vrsqrt.pop %v1142
    %v1145 = vmul.f32 %v1139, %v1143
    %v1146 = vmul.f32 %v1140, %v1144
    %v1147 = vlaneseq
    %v1148 = vshrl.u32 %v1147, 7
    %v1149 = vsub.s32 0, %v1148
    %v1150 = vrot.slane %v1113, %v1149
    %v1151 = vmul.f32 %v1145, %v1150
    %v1152 = vmul.f32 %v1146, %v1150
    %v1153 = vlaneseq
    %v1154 = vshrl.u32 %v1153, 7
    %v1155 = vsub.s32 0, %v1154
    %v1156 = vrot.slane %v1114, %v1155
    %v1157 = vadd.f32 %v1151, %v1156
    %v1158 = vadd.f32 %v1152, %v1156
    %v1159 = vpack.c.bf16 %v1158, %v1157
    %v1160 = vld [vmem:[%s5] sm:$0xf]
    %v1161 = vld [vmem:[%s5 + $0x4] sm:$0xf]
    %v1162 = vld [vmem:[%s5 + $0x8] sm:$0xf]
    %v1163 = vld [vmem:[%s5 + $0xc] sm:$0xf]
    %v1164 = vld [vmem:[%s2 + $0x6] sm:$0x1]
    %v1165 = vlaneseq
    %v1166 = vshrl.u32 %v1165, 7
    %v1167 = vsub.s32 0, %v1166
    %v1168 = vrot.slane %v1164, %v1167
    %v1173 = vunpack.c.l.b16 %v1160
    %v1174 = vunpack.c.l.b16 %v1161
    %v1175 = vunpack.c.l.b16 %v1162
    %v1176 = vunpack.c.l.b16 %v1163
    %v1177 = vpack.c.b16 %v1174, %v1173
    %v1178 = vpack.c.b16 %v1176, %v1175
    %v1182 = vsel %vm41, %v1159, 0
    %1184 = vmatprep.subr.bf16.mxu0 0
    %1185 = vmatpush1.bf16.msra.mxu0 %v1177
    %1186 = vmatprep.subr.bf16.mxu0 0
    %1187 = vmatpush1.bf16.msra.mxu0 %v1178
    %1188 = vmatprep.subr.bf16.mxu0 0
    %1189 = vmatpush1.bf16.msra.mxu0 0
    %1190 = vmatprep.subr.bf16.mxu0 0
    %1191 = vmatpush1.bf16.msra.mxu0 0
    %1192 = vmatprep.subr.bf16.mxu0 0
    %1193 = vmatpush1.bf16.msra.mxu0 0
    %1194 = vmatprep.subr.bf16.mxu0 0
    %1195 = vmatpush1.bf16.msra.mxu0 0
    %1196 = vmatprep.subr.bf16.mxu0 0
    %1197 = vmatpush1.bf16.msra.mxu0 0
    %1198 = vmatprep.subr.bf16.mxu0 0
    %1199 = vmatpush1.bf16.msra.mxu0 0
    %1200 = vmatprep.subr.bf16.mxu0 0
    %1201 = vmatpush1.bf16.msra.mxu0 0
    %1202 = vmatprep.subr.bf16.mxu0 0
    %1203 = vmatpush1.bf16.msra.mxu0 0
    %1204 = vmatprep.subr.bf16.mxu0 0
    %1205 = vmatpush1.bf16.msra.mxu0 0
    %1206 = vmatprep.subr.bf16.mxu0 0
    %1207 = vmatpush1.bf16.msra.mxu0 0
    %1208 = vmatprep.subr.bf16.mxu0 0
    %1209 = vmatpush1.bf16.msra.mxu0 0
    %1210 = vmatprep.subr.bf16.mxu0 0
    %1211 = vmatpush1.bf16.msra.mxu0 0
    %1212 = vmatprep.subr.bf16.mxu0 0
    %1213 = vmatpush1.bf16.msra.mxu0 0
    %1214 = vmatprep.subr.bf16.mxu0 0
    %1215 = vmatpush1.bf16.msra.mxu0 0
    %1216 = vmatprep.mubr.bf16.mxu0 0
    %1217 = vmatmul.mubr.bf16.gmra.mrb[0].mxu0 %v1182
    %v1218 = vpop.f32.mrb[0].mxu0
    %v1219 = vadd.f32 %v1168, %v1218
    %v1220 = vpop.f32.mrb[0].mxu0
    %v1221 = vpop.f32.mrb[0].mxu0
    %v1222 = vadd.f32 %v1168, %v1221
    %v1223 = vpop.f32.mrb[0].mxu0
    %1224 = vdwg.mxu0
    %v1225 = vmul.f32 %v1219, 0.5
    %v1226 = vmul.f32 %v1222, 0.5
    %v1227 = vmul.f32 %v1219, 0.044715
    %v1228 = vmul.f32 %v1222, 0.044715
    %v1229 = vmul.f32 %v1227, %v1219
    %v1230 = vmul.f32 %v1228, %v1222
    %v1231 = vmul.f32 %v1229, %v1219
    %v1232 = vmul.f32 %v1230, %v1222
    %v1233 = vadd.f32 %v1219, %v1231
    %v1234 = vadd.f32 %v1222, %v1232
    %v1235 = vmul.f32 %v1233, 0.7978846
    %v1236 = vmul.f32 %v1234, 0.7978846
    %v1237 = vtanh.pop %v1235
    %v1238 = vtanh.pop %v1236
    %v1239 = vadd.f32 %v1237, 1.0
    %v1240 = vadd.f32 %v1238, 1.0
    %v1241 = vmul.f32 %v1225, %v1239
    %v1242 = vmul.f32 %v1226, %v1240
    %v1243 = vpack.c.bf16 %v1242, %v1241
    %v1244 = vld [vmem:[%s6] sm:$0xf]
    %v1245 = vld [vmem:[%s6 + $0x4] sm:$0xf]
    %v1246 = vld [vmem:[%s6 + $0x8] sm:$0xf]
    %v1247 = vld [vmem:[%s6 + $0xc] sm:$0xf]
    %v1248 = vld [vmem:[%s6 + $0x10] sm:$0xf]
    %v1249 = vld [vmem:[%s6 + $0x14] sm:$0xf]
    %v1250 = vld [vmem:[%s6 + $0x18] sm:$0xf]
    %v1251 = vld [vmem:[%s6 + $0x1c] sm:$0xf]
    %v1252 = vld [vmem:[%s2 + $0x7] sm:$0x1]
    %v1253 = vlaneseq
    %v1254 = vshrl.u32 %v1253, 7
    %v1255 = vsub.s32 0, %v1254
    %v1256 = vrot.slane %v1252, %v1255
    %v1265 = vunpack.c.l.b16 %v1244
    %v1266 = vunpack.c.l.b16 %v1245
    %v1267 = vunpack.c.l.b16 %v1246
    %v1268 = vunpack.c.l.b16 %v1247
    %v1269 = vunpack.c.l.b16 %v1248
    %v1270 = vunpack.c.l.b16 %v1249
    %v1271 = vunpack.c.l.b16 %v1250
    %v1272 = vunpack.c.l.b16 %v1251
    %v1273 = vpack.c.b16 %v1266, %v1265
    %v1274 = vpack.c.b16 %v1268, %v1267
    %v1275 = vpack.c.b16 %v1270, %v1269
    %v1276 = vpack.c.b16 %v1272, %v1271
    %vm1281 = vcmask 523264
    %v1283 = vsel %vm1281, %v1243, 0
    %1285 = vmatprep.subr.bf16.mxu0 0
    %1286 = vmatpush1.bf16.msra.mxu0 %v1273
    %1287 = vmatprep.subr.bf16.mxu0 0
    %1288 = vmatpush1.bf16.msra.mxu0 %v1274
    %1289 = vmatprep.subr.bf16.mxu0 0
    %1290 = vmatpush1.bf16.msra.mxu0 %v1275
    %1291 = vmatprep.subr.bf16.mxu0 0
    %1292 = vmatpush1.bf16.msra.mxu0 %v1276
    %1293 = vmatprep.subr.bf16.mxu0 0
    %1294 = vmatpush1.bf16.msra.mxu0 0
    %1295 = vmatprep.subr.bf16.mxu0 0
    %1296 = vmatpush1.bf16.msra.mxu0 0
    %1297 = vmatprep.subr.bf16.mxu0 0
    %1298 = vmatpush1.bf16.msra.mxu0 0
    %1299 = vmatprep.subr.bf16.mxu0 0
    %1300 = vmatpush1.bf16.msra.mxu0 0
    %1301 = vmatprep.subr.bf16.mxu0 0
    %1302 = vmatpush1.bf16.msra.mxu0 0
    %1303 = vmatprep.subr.bf16.mxu0 0
    %1304 = vmatpush1.bf16.msra.mxu0 0
    %1305 = vmatprep.subr.bf16.mxu0 0
    %1306 = vmatpush1.bf16.msra.mxu0 0
    %1307 = vmatprep.subr.bf16.mxu0 0
    %1308 = vmatpush1.bf16.msra.mxu0 0
    %1309 = vmatprep.subr.bf16.mxu0 0
    %1310 = vmatpush1.bf16.msra.mxu0 0
    %1311 = vmatprep.subr.bf16.mxu0 0
    %1312 = vmatpush1.bf16.msra.mxu0 0
    %1313 = vmatprep.subr.bf16.mxu0 0
    %1314 = vmatpush1.bf16.msra.mxu0 0
    %1315 = vmatprep.subr.bf16.mxu0 0
    %1316 = vmatpush1.bf16.msra.mxu0 0
    %1317 = vmatprep.mubr.bf16.mxu0 0
    %1318 = vmatmul.mubr.bf16.gmra.mrb[0].mxu0 %v1283
    %v1319 = vpop.f32.mrb[0].mxu0
    %v1320 = vadd.f32 %v1256, %v1319
    %v1321 = vpop.f32.mrb[0].mxu0
    %v1322 = vpop.f32.mrb[0].mxu0
    %v1323 = vadd.f32 %v1256, %v1322
    %v1324 = vpop.f32.mrb[0].mxu0
    %1325 = vdwg.mxu0
    %v1326 = vadd.f32 %v1320, %v1157
    %v1327 = vadd.f32 %v1323, %v1158
    %v1328 = vld [vmem:[%s2 + $0x8] sm:$0x1]
    %v1329 = vld [vmem:[%s2 + $0x9] sm:$0x1]
    %v1330 = vsel %vm41, %v1326, 0.0
    %1331 = vadd.xlane.f32.xlu0 %v1330
    %v1332 = vpop.xlane.xlu0 %1331
    %v1333 = vsel %vm41, %v1327, 0.0
    %1334 = vadd.xlane.f32.xlu0 %v1333
    %v1335 = vpop.xlane.xlu0 %1334
    %v1336 = vmul.f32 %v1332, %v48
    %v1337 = vmul.f32 %v1335, %v48
    %v1338 = vmul.f32 %v1326, %v1326
    %v1339 = vmul.f32 %v1327, %v1327
    %v1340 = vsel %vm41, %v1338, 0.0
    %1341 = vadd.xlane.f32.xlu0 %v1340
    %v1342 = vpop.xlane.xlu0 %1341
    %v1343 = vsel %vm41, %v1339, 0.0
    %1344 = vadd.xlane.f32.xlu0 %v1343
    %v1345 = vpop.xlane.xlu0 %1344
    %v1346 = vmul.f32 %v1342, %v48
    %v1347 = vmul.f32 %v1345, %v48
    %v1348 = vmul.f32 %v1336, %v1336
    %v1349 = vmul.f32 %v1337, %v1337
    %v1350 = vsub.f32 %v1346, %v1348
    %v1351 = vsub.f32 %v1347, %v1349
    %v1352 = vmax.f32 %v1350, 0.0
    %v1353 = vmax.f32 %v1351, 0.0
    %v1354 = vsub.f32 %v1326, %v1336
    %v1355 = vsub.f32 %v1327, %v1337
    %v1356 = vadd.f32 %v1352, 1e-12
    %v1357 = vadd.f32 %v1353, 1e-12
    %v1358 = vrsqrt.pop %v1356
    %v1359 = vrsqrt.pop %v1357
    %v1360 = vmul.f32 %v1354, %v1358
    %v1361 = vmul.f32 %v1355, %v1359
    %v1362 = vlaneseq
    %v1363 = vshrl.u32 %v1362, 7
    %v1364 = vsub.s32 0, %v1363
    %v1365 = vrot.slane %v1328, %v1364
    %v1366 = vmul.f32 %v1360, %v1365
    %v1367 = vmul.f32 %v1361, %v1365
    %v1368 = vlaneseq
    %v1369 = vshrl.u32 %v1368, 7
    %v1370 = vsub.s32 0, %v1369
    %v1371 = vrot.slane %v1329, %v1370
    %v1372 = vadd.f32 %v1366, %v1371
    %v1373 = vadd.f32 %v1367, %v1371
    %v1374 = vpack.c.bf16 %v1373, %v1372
    %s1375 = scalar_lea.vmem %s3, 16
    %v1376 = vld [vmem:[%s1375] sm:$0xf]
    %v1377 = vld [vmem:[%s1375 + $0x4] sm:$0xf]
    %v1378 = vld [vmem:[%s1375 + $0x8] sm:$0xf]
    %v1379 = vld [vmem:[%s1375 + $0xc] sm:$0xf]
    %v1380 = vld [vmem:[%s2 + $0xa] sm:$0x1]
    %v1381 = vlaneseq
    %v1382 = vshrl.u32 %v1381, 7
    %v1383 = vsub.s32 0, %v1382
    %v1384 = vrot.slane %v1380, %v1383
    %v1389 = vunpack.c.l.b16 %v1376
    %v1390 = vunpack.c.l.b16 %v1377
    %v1391 = vunpack.c.l.b16 %v1378
    %v1392 = vunpack.c.l.b16 %v1379
    %v1393 = vpack.c.b16 %v1390, %v1389
    %v1394 = vpack.c.b16 %v1392, %v1391
    %v1398 = vsel %vm41, %v1374, 0
    %1400 = vmatprep.subr.bf16.mxu0 0
    %1401 = vmatpush1.bf16.msra.mxu0 %v1393
    %1402 = vmatprep.subr.bf16.mxu0 0
    %1403 = vmatpush1.bf16.msra.mxu0 %v1394
    %1404 = vmatprep.subr.bf16.mxu0 0
    %1405 = vmatpush1.bf16.msra.mxu0 0
    %1406 = vmatprep.subr.bf16.mxu0 0
    %1407 = vmatpush1.bf16.msra.mxu0 0
    %1408 = vmatprep.subr.bf16.mxu0 0
    %1409 = vmatpush1.bf16.msra.mxu0 0
    %1410 = vmatprep.subr.bf16.mxu0 0
    %1411 = vmatpush1.bf16.msra.mxu0 0
    %1412 = vmatprep.subr.bf16.mxu0 0
    %1413 = vmatpush1.bf16.msra.mxu0 0
    %1414 = vmatprep.subr.bf16.mxu0 0
    %1415 = vmatpush1.bf16.msra.mxu0 0
    %1416 = vmatprep.subr.bf16.mxu0 0
    %1417 = vmatpush1.bf16.msra.mxu0 0
    %1418 = vmatprep.subr.bf16.mxu0 0
    %1419 = vmatpush1.bf16.msra.mxu0 0
    %1420 = vmatprep.subr.bf16.mxu0 0
    %1421 = vmatpush1.bf16.msra.mxu0 0
    %1422 = vmatprep.subr.bf16.mxu0 0
    %1423 = vmatpush1.bf16.msra.mxu0 0
    %1424 = vmatprep.subr.bf16.mxu0 0
    %1425 = vmatpush1.bf16.msra.mxu0 0
    %1426 = vmatprep.subr.bf16.mxu0 0
    %1427 = vmatpush1.bf16.msra.mxu0 0
    %1428 = vmatprep.subr.bf16.mxu0 0
    %1429 = vmatpush1.bf16.msra.mxu0 0
    %1430 = vmatprep.subr.bf16.mxu0 0
    %1431 = vmatpush1.bf16.msra.mxu0 0
    %1432 = vmatprep.mubr.bf16.mxu0 0
    %1433 = vmatmul.mubr.bf16.gmra.mrb[0].mxu0 %v1398
    %v1434 = vpop.f32.mrb[0].mxu0
    %v1435 = vadd.f32 %v1384, %v1434
    %v1436 = vpop.f32.mrb[0].mxu0
    %v1437 = vpop.f32.mrb[0].mxu0
    %v1438 = vadd.f32 %v1384, %v1437
    %v1439 = vpop.f32.mrb[0].mxu0
    %1440 = vdwg.mxu0
    %v1441 = vpack.c.bf16 %v1435, %v1435
    %1443 = vrot.lane.b32.xlu0 %v1441, 96
    %v1444 = vpop.permute.xlu0 %1443
    %v1446 = vsel %vm162, %v1441, 0
    %v1449 = vsel %vm162, %v1444, 0
    %1451 = vmatprep.subr.bf16.mxu0 0
    %1452 = vmatpush1.bf16.xpose.msra.mxu0 %v1449
    %1453 = vmatprep.subr.bf16.mxu0 0
    %1454 = vmatpush1.bf16.xpose.msra.mxu0 0
    %1455 = vmatprep.subr.bf16.mxu0 0
    %1456 = vmatpush1.bf16.xpose.msra.mxu0 0
    %1457 = vmatprep.subr.bf16.mxu0 0
    %1458 = vmatpush1.bf16.xpose.msra.mxu0 0
    %1459 = vmatprep.subr.bf16.mxu0 0
    %1460 = vmatpush1.bf16.xpose.msra.mxu0 0
    %1461 = vmatprep.subr.bf16.mxu0 0
    %1462 = vmatpush1.bf16.xpose.msra.mxu0 0
    %1463 = vmatprep.subr.bf16.mxu0 0
    %1464 = vmatpush1.bf16.xpose.msra.mxu0 0
    %1465 = vmatprep.subr.bf16.mxu0 0
    %1466 = vmatpush1.bf16.xpose.msra.mxu0 0
    %1467 = vmatprep.subr.bf16.mxu0 0
    %1468 = vmatpush1.bf16.xpose.msra.mxu0 0
    %1469 = vmatprep.subr.bf16.mxu0 0
    %1470 = vmatpush1.bf16.xpose.msra.mxu0 0
    %1471 = vmatprep.subr.bf16.mxu0 0
    %1472 = vmatpush1.bf16.xpose.msra.mxu0 0
    %1473 = vmatprep.subr.bf16.mxu0 0
    %1474 = vmatpush1.bf16.xpose.msra.mxu0 0
    %1475 = vmatprep.subr.bf16.mxu0 0
    %1476 = vmatpush1.bf16.xpose.msra.mxu0 0
    %1477 = vmatprep.subr.bf16.mxu0 0
    %1478 = vmatpush1.bf16.xpose.msra.mxu0 0
    %1479 = vmatprep.subr.bf16.mxu0 0
    %1480 = vmatpush1.bf16.xpose.msra.mxu0 0
    %1481 = vmatprep.subr.bf16.mxu0 0
    %1482 = vmatpush1.bf16.xpose.msra.mxu0 0
    %1483 = vmatprep.mubr.bf16.mxu0 0
    %1484 = vmatmul.mubr.bf16.gmra.mrb[0].mxu0 %v1446
    %v1485 = vpop.f32.mrb[0].mxu0
    %v1486 = vadd.f32 %v158, %v1485
    %v1487 = vpop.f32.mrb[0].mxu0
    %v1488 = vpop.f32.mrb[0].mxu0
    %v1489 = vpop.f32.mrb[0].mxu0
    %1490 = vdwg.mxu0
    %v1491 = vmul.f32 %v1486, 1.442695
    %v1492 = vpow.pop %v1491
    %v1493 = vsel %vm162, %v1492, 0.0
    %1494 = vadd.xlane.f32.xlu0 %v1493
    %v1495 = vpop.xlane.xlu0 %1494
    %v1496 = vrcp.pop %v1495
    %v1497 = vmul.f32 %v1492, %v1496
    %v1498 = vpack.c.bf16 %v1497, %v1497
    %1499 = vrot.lane.b32.xlu0 %v1441, 64
    %v1500 = vpop.permute.xlu0 %1499
    %v1502 = vsel %vm162, %v1498, 0
    %v1505 = vsel %vm222, %v1500, 0
    %1507 = vmatprep.subr.bf16.mxu0 0
    %1508 = vmatpush1.bf16.msra.mxu0 %v1505
    %1509 = vmatprep.subr.bf16.mxu0 0
    %1510 = vmatpush1.bf16.msra.mxu0 0
    %1511 = vmatprep.subr.bf16.mxu0 0
    %1512 = vmatpush1.bf16.msra.mxu0 0
    %1513 = vmatprep.subr.bf16.mxu0 0
    %1514 = vmatpush1.bf16.msra.mxu0 0
    %1515 = vmatprep.subr.bf16.mxu0 0
    %1516 = vmatpush1.bf16.msra.mxu0 0
    %1517 = vmatprep.subr.bf16.mxu0 0
    %1518 = vmatpush1.bf16.msra.mxu0 0
    %1519 = vmatprep.subr.bf16.mxu0 0
    %1520 = vmatpush1.bf16.msra.mxu0 0
    %1521 = vmatprep.subr.bf16.mxu0 0
    %1522 = vmatpush1.bf16.msra.mxu0 0
    %1523 = vmatprep.subr.bf16.mxu0 0
    %1524 = vmatpush1.bf16.msra.mxu0 0
    %1525 = vmatprep.subr.bf16.mxu0 0
    %1526 = vmatpush1.bf16.msra.mxu0 0
    %1527 = vmatprep.subr.bf16.mxu0 0
    %1528 = vmatpush1.bf16.msra.mxu0 0
    %1529 = vmatprep.subr.bf16.mxu0 0
    %1530 = vmatpush1.bf16.msra.mxu0 0
    %1531 = vmatprep.subr.bf16.mxu0 0
    %1532 = vmatpush1.bf16.msra.mxu0 0
    %1533 = vmatprep.subr.bf16.mxu0 0
    %1534 = vmatpush1.bf16.msra.mxu0 0
    %1535 = vmatprep.subr.bf16.mxu0 0
    %1536 = vmatpush1.bf16.msra.mxu0 0
    %1537 = vmatprep.subr.bf16.mxu0 0
    %1538 = vmatpush1.bf16.msra.mxu0 0
    %1539 = vmatprep.mubr.bf16.mxu0 0
    %1540 = vmatmul.mubr.bf16.gmra.mrb[0].mxu0 %v1502
    %v1541 = vpop.f32.mrb[0].mxu0
    %v1542 = vadd.f32 0.0, %v1541
    %v1543 = vpop.f32.mrb[0].mxu0
    %v1544 = vpop.f32.mrb[0].mxu0
    %v1545 = vpop.f32.mrb[0].mxu0
    %1546 = vdwg.mxu0
    %1547 = vrot.lane.b32.xlu0 %v1441, 120
    %v1548 = vpop.permute.xlu0 %1547
    %1549 = vrot.lane.b32.xlu0 %v1441, 88
    %v1550 = vpop.permute.xlu0 %1549
    %v1552 = vsel %vm162, %v1548, 0
    %v1555 = vsel %vm162, %v1550, 0
    %1557 = vmatprep.subr.bf16.mxu0 0
    %1558 = vmatpush1.bf16.xpose.msra.mxu0 %v1555
    %1559 = vmatprep.subr.bf16.mxu0 0
    %1560 = vmatpush1.bf16.xpose.msra.mxu0 0
    %1561 = vmatprep.subr.bf16.mxu0 0
    %1562 = vmatpush1.bf16.xpose.msra.mxu0 0
    %1563 = vmatprep.subr.bf16.mxu0 0
    %1564 = vmatpush1.bf16.xpose.msra.mxu0 0
    %1565 = vmatprep.subr.bf16.mxu0 0
    %1566 = vmatpush1.bf16.xpose.msra.mxu0 0
    %1567 = vmatprep.subr.bf16.mxu0 0
    %1568 = vmatpush1.bf16.xpose.msra.mxu0 0
    %1569 = vmatprep.subr.bf16.mxu0 0
    %1570 = vmatpush1.bf16.xpose.msra.mxu0 0
    %1571 = vmatprep.subr.bf16.mxu0 0
    %1572 = vmatpush1.bf16.xpose.msra.mxu0 0
    %1573 = vmatprep.subr.bf16.mxu0 0
    %1574 = vmatpush1.bf16.xpose.msra.mxu0 0
    %1575 = vmatprep.subr.bf16.mxu0 0
    %1576 = vmatpush1.bf16.xpose.msra.mxu0 0
    %1577 = vmatprep.subr.bf16.mxu0 0
    %1578 = vmatpush1.bf16.xpose.msra.mxu0 0
    %1579 = vmatprep.subr.bf16.mxu0 0
    %1580 = vmatpush1.bf16.xpose.msra.mxu0 0
    %1581 = vmatprep.subr.bf16.mxu0 0
    %1582 = vmatpush1.bf16.xpose.msra.mxu0 0
    %1583 = vmatprep.subr.bf16.mxu0 0
    %1584 = vmatpush1.bf16.xpose.msra.mxu0 0
    %1585 = vmatprep.subr.bf16.mxu0 0
    %1586 = vmatpush1.bf16.xpose.msra.mxu0 0
    %1587 = vmatprep.subr.bf16.mxu0 0
    %1588 = vmatpush1.bf16.xpose.msra.mxu0 0
    %1589 = vmatprep.mubr.bf16.mxu0 0
    %1590 = vmatmul.mubr.bf16.gmra.mrb[0].mxu0 %v1552
    %v1591 = vpop.f32.mrb[0].mxu0
    %v1592 = vadd.f32 %v158, %v1591
    %v1593 = vpop.f32.mrb[0].mxu0
    %v1594 = vpop.f32.mrb[0].mxu0
    %v1595 = vpop.f32.mrb[0].mxu0
    %1596 = vdwg.mxu0
    %v1597 = vmul.f32 %v1592, 1.442695
    %v1598 = vpow.pop %v1597
    %v1599 = vsel %vm162, %v1598, 0.0
    %1600 = vadd.xlane.f32.xlu0 %v1599
    %v1601 = vpop.xlane.xlu0 %1600
    %v1602 = vrcp.pop %v1601
    %v1603 = vmul.f32 %v1598, %v1602
    %v1604 = vpack.c.bf16 %v1603, %v1603
    %1605 = vrot.lane.b32.xlu0 %v1441, 56
    %v1606 = vpop.permute.xlu0 %1605
    %v1608 = vsel %vm162, %v1604, 0
    %v1611 = vsel %vm222, %v1606, 0
    %1613 = vmatprep.subr.bf16.mxu0 0
    %1614 = vmatpush1.bf16.msra.mxu0 %v1611
    %1615 = vmatprep.subr.bf16.mxu0 0
    %1616 = vmatpush1.bf16.msra.mxu0 0
    %1617 = vmatprep.subr.bf16.mxu0 0
    %1618 = vmatpush1.bf16.msra.mxu0 0
    %1619 = vmatprep.subr.bf16.mxu0 0
    %1620 = vmatpush1.bf16.msra.mxu0 0
    %1621 = vmatprep.subr.bf16.mxu0 0
    %1622 = vmatpush1.bf16.msra.mxu0 0
    %1623 = vmatprep.subr.bf16.mxu0 0
    %1624 = vmatpush1.bf16.msra.mxu0 0
    %1625 = vmatprep.subr.bf16.mxu0 0
    %1626 = vmatpush1.bf16.msra.mxu0 0
    %1627 = vmatprep.subr.bf16.mxu0 0
    %1628 = vmatpush1.bf16.msra.mxu0 0
    %1629 = vmatprep.subr.bf16.mxu0 0
    %1630 = vmatpush1.bf16.msra.mxu0 0
    %1631 = vmatprep.subr.bf16.mxu0 0
    %1632 = vmatpush1.bf16.msra.mxu0 0
    %1633 = vmatprep.subr.bf16.mxu0 0
    %1634 = vmatpush1.bf16.msra.mxu0 0
    %1635 = vmatprep.subr.bf16.mxu0 0
    %1636 = vmatpush1.bf16.msra.mxu0 0
    %1637 = vmatprep.subr.bf16.mxu0 0
    %1638 = vmatpush1.bf16.msra.mxu0 0
    %1639 = vmatprep.subr.bf16.mxu0 0
    %1640 = vmatpush1.bf16.msra.mxu0 0
    %1641 = vmatprep.subr.bf16.mxu0 0
    %1642 = vmatpush1.bf16.msra.mxu0 0
    %1643 = vmatprep.subr.bf16.mxu0 0
    %1644 = vmatpush1.bf16.msra.mxu0 0
    %1645 = vmatprep.mubr.bf16.mxu0 0
    %1646 = vmatmul.mubr.bf16.gmra.mrb[0].mxu0 %v1608
    %v1647 = vpop.f32.mrb[0].mxu0
    %v1648 = vadd.f32 0.0, %v1647
    %v1649 = vpop.f32.mrb[0].mxu0
    %v1650 = vpop.f32.mrb[0].mxu0
    %v1651 = vpop.f32.mrb[0].mxu0
    %1652 = vdwg.mxu0
    %1653 = vrot.lane.b32.xlu0 %v1441, 112
    %v1654 = vpop.permute.xlu0 %1653
    %1655 = vrot.lane.b32.xlu0 %v1441, 80
    %v1656 = vpop.permute.xlu0 %1655
    %v1658 = vsel %vm162, %v1654, 0
    %v1661 = vsel %vm162, %v1656, 0
    %1663 = vmatprep.subr.bf16.mxu0 0
    %1664 = vmatpush1.bf16.xpose.msra.mxu0 %v1661
    %1665 = vmatprep.subr.bf16.mxu0 0
    %1666 = vmatpush1.bf16.xpose.msra.mxu0 0
    %1667 = vmatprep.subr.bf16.mxu0 0
    %1668 = vmatpush1.bf16.xpose.msra.mxu0 0
    %1669 = vmatprep.subr.bf16.mxu0 0
    %1670 = vmatpush1.bf16.xpose.msra.mxu0 0
    %1671 = vmatprep.subr.bf16.mxu0 0
    %1672 = vmatpush1.bf16.xpose.msra.mxu0 0
    %1673 = vmatprep.subr.bf16.mxu0 0
    %1674 = vmatpush1.bf16.xpose.msra.mxu0 0
    %1675 = vmatprep.subr.bf16.mxu0 0
    %1676 = vmatpush1.bf16.xpose.msra.mxu0 0
    %1677 = vmatprep.subr.bf16.mxu0 0
    %1678 = vmatpush1.bf16.xpose.msra.mxu0 0
    %1679 = vmatprep.subr.bf16.mxu0 0
    %1680 = vmatpush1.bf16.xpose.msra.mxu0 0
    %1681 = vmatprep.subr.bf16.mxu0 0
    %1682 = vmatpush1.bf16.xpose.msra.mxu0 0
    %1683 = vmatprep.subr.bf16.mxu0 0
    %1684 = vmatpush1.bf16.xpose.msra.mxu0 0
    %1685 = vmatprep.subr.bf16.mxu0 0
    %1686 = vmatpush1.bf16.xpose.msra.mxu0 0
    %1687 = vmatprep.subr.bf16.mxu0 0
    %1688 = vmatpush1.bf16.xpose.msra.mxu0 0
    %1689 = vmatprep.subr.bf16.mxu0 0
    %1690 = vmatpush1.bf16.xpose.msra.mxu0 0
    %1691 = vmatprep.subr.bf16.mxu0 0
    %1692 = vmatpush1.bf16.xpose.msra.mxu0 0
    %1693 = vmatprep.subr.bf16.mxu0 0
    %1694 = vmatpush1.bf16.xpose.msra.mxu0 0
    %1695 = vmatprep.mubr.bf16.mxu0 0
    %1696 = vmatmul.mubr.bf16.gmra.mrb[0].mxu0 %v1658
    %v1697 = vpop.f32.mrb[0].mxu0
    %v1698 = vadd.f32 %v158, %v1697
    %v1699 = vpop.f32.mrb[0].mxu0
    %v1700 = vpop.f32.mrb[0].mxu0
    %v1701 = vpop.f32.mrb[0].mxu0
    %1702 = vdwg.mxu0
    %v1703 = vmul.f32 %v1698, 1.442695
    %v1704 = vpow.pop %v1703
    %v1705 = vsel %vm162, %v1704, 0.0
    %1706 = vadd.xlane.f32.xlu0 %v1705
    %v1707 = vpop.xlane.xlu0 %1706
    %v1708 = vrcp.pop %v1707
    %v1709 = vmul.f32 %v1704, %v1708
    %v1710 = vpack.c.bf16 %v1709, %v1709
    %1711 = vrot.lane.b32.xlu0 %v1441, 48
    %v1712 = vpop.permute.xlu0 %1711
    %v1714 = vsel %vm162, %v1710, 0
    %v1717 = vsel %vm222, %v1712, 0
    %1719 = vmatprep.subr.bf16.mxu0 0
    %1720 = vmatpush1.bf16.msra.mxu0 %v1717
    %1721 = vmatprep.subr.bf16.mxu0 0
    %1722 = vmatpush1.bf16.msra.mxu0 0
    %1723 = vmatprep.subr.bf16.mxu0 0
    %1724 = vmatpush1.bf16.msra.mxu0 0
    %1725 = vmatprep.subr.bf16.mxu0 0
    %1726 = vmatpush1.bf16.msra.mxu0 0
    %1727 = vmatprep.subr.bf16.mxu0 0
    %1728 = vmatpush1.bf16.msra.mxu0 0
    %1729 = vmatprep.subr.bf16.mxu0 0
    %1730 = vmatpush1.bf16.msra.mxu0 0
    %1731 = vmatprep.subr.bf16.mxu0 0
    %1732 = vmatpush1.bf16.msra.mxu0 0
    %1733 = vmatprep.subr.bf16.mxu0 0
    %1734 = vmatpush1.bf16.msra.mxu0 0
    %1735 = vmatprep.subr.bf16.mxu0 0
    %1736 = vmatpush1.bf16.msra.mxu0 0
    %1737 = vmatprep.subr.bf16.mxu0 0
    %1738 = vmatpush1.bf16.msra.mxu0 0
    %1739 = vmatprep.subr.bf16.mxu0 0
    %1740 = vmatpush1.bf16.msra.mxu0 0
    %1741 = vmatprep.subr.bf16.mxu0 0
    %1742 = vmatpush1.bf16.msra.mxu0 0
    %1743 = vmatprep.subr.bf16.mxu0 0
    %1744 = vmatpush1.bf16.msra.mxu0 0
    %1745 = vmatprep.subr.bf16.mxu0 0
    %1746 = vmatpush1.bf16.msra.mxu0 0
    %1747 = vmatprep.subr.bf16.mxu0 0
    %1748 = vmatpush1.bf16.msra.mxu0 0
    %1749 = vmatprep.subr.bf16.mxu0 0
    %1750 = vmatpush1.bf16.msra.mxu0 0
    %1751 = vmatprep.mubr.bf16.mxu0 0
    %1752 = vmatmul.mubr.bf16.gmra.mrb[0].mxu0 %v1714
    %v1753 = vpop.f32.mrb[0].mxu0
    %v1754 = vadd.f32 0.0, %v1753
    %v1755 = vpop.f32.mrb[0].mxu0
    %v1756 = vpop.f32.mrb[0].mxu0
    %v1757 = vpop.f32.mrb[0].mxu0
    %1758 = vdwg.mxu0
    %1759 = vrot.lane.b32.xlu0 %v1441, 104
    %v1760 = vpop.permute.xlu0 %1759
    %1761 = vrot.lane.b32.xlu0 %v1441, 72
    %v1762 = vpop.permute.xlu0 %1761
    %v1764 = vsel %vm162, %v1760, 0
    %v1767 = vsel %vm162, %v1762, 0
    %1769 = vmatprep.subr.bf16.mxu0 0
    %1770 = vmatpush1.bf16.xpose.msra.mxu0 %v1767
    %1771 = vmatprep.subr.bf16.mxu0 0
    %1772 = vmatpush1.bf16.xpose.msra.mxu0 0
    %1773 = vmatprep.subr.bf16.mxu0 0
    %1774 = vmatpush1.bf16.xpose.msra.mxu0 0
    %1775 = vmatprep.subr.bf16.mxu0 0
    %1776 = vmatpush1.bf16.xpose.msra.mxu0 0
    %1777 = vmatprep.subr.bf16.mxu0 0
    %1778 = vmatpush1.bf16.xpose.msra.mxu0 0
    %1779 = vmatprep.subr.bf16.mxu0 0
    %1780 = vmatpush1.bf16.xpose.msra.mxu0 0
    %1781 = vmatprep.subr.bf16.mxu0 0
    %1782 = vmatpush1.bf16.xpose.msra.mxu0 0
    %1783 = vmatprep.subr.bf16.mxu0 0
    %1784 = vmatpush1.bf16.xpose.msra.mxu0 0
    %1785 = vmatprep.subr.bf16.mxu0 0
    %1786 = vmatpush1.bf16.xpose.msra.mxu0 0
    %1787 = vmatprep.subr.bf16.mxu0 0
    %1788 = vmatpush1.bf16.xpose.msra.mxu0 0
    %1789 = vmatprep.subr.bf16.mxu0 0
    %1790 = vmatpush1.bf16.xpose.msra.mxu0 0
    %1791 = vmatprep.subr.bf16.mxu0 0
    %1792 = vmatpush1.bf16.xpose.msra.mxu0 0
    %1793 = vmatprep.subr.bf16.mxu0 0
    %1794 = vmatpush1.bf16.xpose.msra.mxu0 0
    %1795 = vmatprep.subr.bf16.mxu0 0
    %1796 = vmatpush1.bf16.xpose.msra.mxu0 0
    %1797 = vmatprep.subr.bf16.mxu0 0
    %1798 = vmatpush1.bf16.xpose.msra.mxu0 0
    %1799 = vmatprep.subr.bf16.mxu0 0
    %1800 = vmatpush1.bf16.xpose.msra.mxu0 0
    %1801 = vmatprep.mubr.bf16.mxu0 0
    %1802 = vmatmul.mubr.bf16.gmra.mrb[0].mxu0 %v1764
    %v1803 = vpop.f32.mrb[0].mxu0
    %v1804 = vadd.f32 %v158, %v1803
    %v1805 = vpop.f32.mrb[0].mxu0
    %v1806 = vpop.f32.mrb[0].mxu0
    %v1807 = vpop.f32.mrb[0].mxu0
    %1808 = vdwg.mxu0
    %v1809 = vmul.f32 %v1804, 1.442695
    %v1810 = vpow.pop %v1809
    %v1811 = vsel %vm162, %v1810, 0.0
    %1812 = vadd.xlane.f32.xlu0 %v1811
    %v1813 = vpop.xlane.xlu0 %1812
    %v1814 = vrcp.pop %v1813
    %v1815 = vmul.f32 %v1810, %v1814
    %v1816 = vpack.c.bf16 %v1815, %v1815
    %1817 = vrot.lane.b32.xlu0 %v1441, 40
    %v1818 = vpop.permute.xlu0 %1817
    %v1820 = vsel %vm162, %v1816, 0
    %v1823 = vsel %vm222, %v1818, 0
    %1825 = vmatprep.subr.bf16.mxu0 0
    %1826 = vmatpush1.bf16.msra.mxu0 %v1823
    %1827 = vmatprep.subr.bf16.mxu0 0
    %1828 = vmatpush1.bf16.msra.mxu0 0
    %1829 = vmatprep.subr.bf16.mxu0 0
    %1830 = vmatpush1.bf16.msra.mxu0 0
    %1831 = vmatprep.subr.bf16.mxu0 0
    %1832 = vmatpush1.bf16.msra.mxu0 0
    %1833 = vmatprep.subr.bf16.mxu0 0
    %1834 = vmatpush1.bf16.msra.mxu0 0
    %1835 = vmatprep.subr.bf16.mxu0 0
    %1836 = vmatpush1.bf16.msra.mxu0 0
    %1837 = vmatprep.subr.bf16.mxu0 0
    %1838 = vmatpush1.bf16.msra.mxu0 0
    %1839 = vmatprep.subr.bf16.mxu0 0
    %1840 = vmatpush1.bf16.msra.mxu0 0
    %1841 = vmatprep.subr.bf16.mxu0 0
    %1842 = vmatpush1.bf16.msra.mxu0 0
    %1843 = vmatprep.subr.bf16.mxu0 0
    %1844 = vmatpush1.bf16.msra.mxu0 0
    %1845 = vmatprep.subr.bf16.mxu0 0
    %1846 = vmatpush1.bf16.msra.mxu0 0
    %1847 = vmatprep.subr.bf16.mxu0 0
    %1848 = vmatpush1.bf16.msra.mxu0 0
    %1849 = vmatprep.subr.bf16.mxu0 0
    %1850 = vmatpush1.bf16.msra.mxu0 0
    %1851 = vmatprep.subr.bf16.mxu0 0
    %1852 = vmatpush1.bf16.msra.mxu0 0
    %1853 = vmatprep.subr.bf16.mxu0 0
    %1854 = vmatpush1.bf16.msra.mxu0 0
    %1855 = vmatprep.subr.bf16.mxu0 0
    %1856 = vmatpush1.bf16.msra.mxu0 0
    %1857 = vmatprep.mubr.bf16.mxu0 0
    %1858 = vmatmul.mubr.bf16.gmra.mrb[0].mxu0 %v1820
    %v1859 = vpop.f32.mrb[0].mxu0
    %v1860 = vadd.f32 0.0, %v1859
    %v1861 = vpop.f32.mrb[0].mxu0
    %v1862 = vpop.f32.mrb[0].mxu0
    %v1863 = vpop.f32.mrb[0].mxu0
    %1864 = vdwg.mxu0
    %1866 = vrot.lane.b32.xlu0 %v1648, 8
    %v1867 = vpop.permute.xlu0 %1866
    %1870 = vrot.lane.b32.xlu0 %v1754, 16
    %v1871 = vpop.permute.xlu0 %1870
    %1874 = vrot.lane.b32.xlu0 %v1860, 24
    %v1875 = vpop.permute.xlu0 %1874
    %v1877 = vsel %vm162, %v1542, %v1867
    %v1878 = vsel %vm597, %v1877, %v1871
    %v1879 = vsel %vm599, %v1878, %v1875
    %v1880 = vpack.c.bf16 %v1438, %v1438
    %1882 = vrot.lane.b32.xlu0 %v1880, 96
    %v1883 = vpop.permute.xlu0 %1882
    %v1885 = vsel %vm162, %v1880, 0
    %v1888 = vsel %vm162, %v1883, 0
    %1890 = vmatprep.subr.bf16.mxu0 0
    %1891 = vmatpush1.bf16.xpose.msra.mxu0 %v1888
    %1892 = vmatprep.subr.bf16.mxu0 0
    %1893 = vmatpush1.bf16.xpose.msra.mxu0 0
    %1894 = vmatprep.subr.bf16.mxu0 0
    %1895 = vmatpush1.bf16.xpose.msra.mxu0 0
    %1896 = vmatprep.subr.bf16.mxu0 0
    %1897 = vmatpush1.bf16.xpose.msra.mxu0 0
    %1898 = vmatprep.subr.bf16.mxu0 0
    %1899 = vmatpush1.bf16.xpose.msra.mxu0 0
    %1900 = vmatprep.subr.bf16.mxu0 0
    %1901 = vmatpush1.bf16.xpose.msra.mxu0 0
    %1902 = vmatprep.subr.bf16.mxu0 0
    %1903 = vmatpush1.bf16.xpose.msra.mxu0 0
    %1904 = vmatprep.subr.bf16.mxu0 0
    %1905 = vmatpush1.bf16.xpose.msra.mxu0 0
    %1906 = vmatprep.subr.bf16.mxu0 0
    %1907 = vmatpush1.bf16.xpose.msra.mxu0 0
    %1908 = vmatprep.subr.bf16.mxu0 0
    %1909 = vmatpush1.bf16.xpose.msra.mxu0 0
    %1910 = vmatprep.subr.bf16.mxu0 0
    %1911 = vmatpush1.bf16.xpose.msra.mxu0 0
    %1912 = vmatprep.subr.bf16.mxu0 0
    %1913 = vmatpush1.bf16.xpose.msra.mxu0 0
    %1914 = vmatprep.subr.bf16.mxu0 0
    %1915 = vmatpush1.bf16.xpose.msra.mxu0 0
    %1916 = vmatprep.subr.bf16.mxu0 0
    %1917 = vmatpush1.bf16.xpose.msra.mxu0 0
    %1918 = vmatprep.subr.bf16.mxu0 0
    %1919 = vmatpush1.bf16.xpose.msra.mxu0 0
    %1920 = vmatprep.subr.bf16.mxu0 0
    %1921 = vmatpush1.bf16.xpose.msra.mxu0 0
    %1922 = vmatprep.mubr.bf16.mxu0 0
    %1923 = vmatmul.mubr.bf16.gmra.mrb[0].mxu0 %v1885
    %v1924 = vpop.f32.mrb[0].mxu0
    %v1925 = vadd.f32 %v606, %v1924
    %v1926 = vpop.f32.mrb[0].mxu0
    %v1927 = vpop.f32.mrb[0].mxu0
    %v1928 = vpop.f32.mrb[0].mxu0
    %1929 = vdwg.mxu0
    %v1930 = vmul.f32 %v1925, 1.442695
    %v1931 = vpow.pop %v1930
    %v1932 = vsel %vm162, %v1931, 0.0
    %1933 = vadd.xlane.f32.xlu0 %v1932
    %v1934 = vpop.xlane.xlu0 %1933
    %v1935 = vrcp.pop %v1934
    %v1936 = vmul.f32 %v1931, %v1935
    %v1937 = vpack.c.bf16 %v1936, %v1936
    %1938 = vrot.lane.b32.xlu0 %v1880, 64
    %v1939 = vpop.permute.xlu0 %1938
    %v1941 = vsel %vm162, %v1937, 0
    %v1944 = vsel %vm222, %v1939, 0
    %1946 = vmatprep.subr.bf16.mxu0 0
    %1947 = vmatpush1.bf16.msra.mxu0 %v1944
    %1948 = vmatprep.subr.bf16.mxu0 0
    %1949 = vmatpush1.bf16.msra.mxu0 0
    %1950 = vmatprep.subr.bf16.mxu0 0
    %1951 = vmatpush1.bf16.msra.mxu0 0
    %1952 = vmatprep.subr.bf16.mxu0 0
    %1953 = vmatpush1.bf16.msra.mxu0 0
    %1954 = vmatprep.subr.bf16.mxu0 0
    %1955 = vmatpush1.bf16.msra.mxu0 0
    %1956 = vmatprep.subr.bf16.mxu0 0
    %1957 = vmatpush1.bf16.msra.mxu0 0
    %1958 = vmatprep.subr.bf16.mxu0 0
    %1959 = vmatpush1.bf16.msra.mxu0 0
    %1960 = vmatprep.subr.bf16.mxu0 0
    %1961 = vmatpush1.bf16.msra.mxu0 0
    %1962 = vmatprep.subr.bf16.mxu0 0
    %1963 = vmatpush1.bf16.msra.mxu0 0
    %1964 = vmatprep.subr.bf16.mxu0 0
    %1965 = vmatpush1.bf16.msra.mxu0 0
    %1966 = vmatprep.subr.bf16.mxu0 0
    %1967 = vmatpush1.bf16.msra.mxu0 0
    %1968 = vmatprep.subr.bf16.mxu0 0
    %1969 = vmatpush1.bf16.msra.mxu0 0
    %1970 = vmatprep.subr.bf16.mxu0 0
    %1971 = vmatpush1.bf16.msra.mxu0 0
    %1972 = vmatprep.subr.bf16.mxu0 0
    %1973 = vmatpush1.bf16.msra.mxu0 0
    %1974 = vmatprep.subr.bf16.mxu0 0
    %1975 = vmatpush1.bf16.msra.mxu0 0
    %1976 = vmatprep.subr.bf16.mxu0 0
    %1977 = vmatpush1.bf16.msra.mxu0 0
    %1978 = vmatprep.mubr.bf16.mxu0 0
    %1979 = vmatmul.mubr.bf16.gmra.mrb[0].mxu0 %v1941
    %v1980 = vpop.f32.mrb[0].mxu0
    %v1981 = vadd.f32 0.0, %v1980
    %v1982 = vpop.f32.mrb[0].mxu0
    %v1983 = vpop.f32.mrb[0].mxu0
    %v1984 = vpop.f32.mrb[0].mxu0
    %1985 = vdwg.mxu0
    %1986 = vrot.lane.b32.xlu0 %v1880, 120
    %v1987 = vpop.permute.xlu0 %1986
    %1988 = vrot.lane.b32.xlu0 %v1880, 88
    %v1989 = vpop.permute.xlu0 %1988
    %v1991 = vsel %vm162, %v1987, 0
    %v1994 = vsel %vm162, %v1989, 0
    %1996 = vmatprep.subr.bf16.mxu0 0
    %1997 = vmatpush1.bf16.xpose.msra.mxu0 %v1994
    %1998 = vmatprep.subr.bf16.mxu0 0
    %1999 = vmatpush1.bf16.xpose.msra.mxu0 0
    %2000 = vmatprep.subr.bf16.mxu0 0
    %2001 = vmatpush1.bf16.xpose.msra.mxu0 0
    %2002 = vmatprep.subr.bf16.mxu0 0
    %2003 = vmatpush1.bf16.xpose.msra.mxu0 0
    %2004 = vmatprep.subr.bf16.mxu0 0
    %2005 = vmatpush1.bf16.xpose.msra.mxu0 0
    %2006 = vmatprep.subr.bf16.mxu0 0
    %2007 = vmatpush1.bf16.xpose.msra.mxu0 0
    %2008 = vmatprep.subr.bf16.mxu0 0
    %2009 = vmatpush1.bf16.xpose.msra.mxu0 0
    %2010 = vmatprep.subr.bf16.mxu0 0
    %2011 = vmatpush1.bf16.xpose.msra.mxu0 0
    %2012 = vmatprep.subr.bf16.mxu0 0
    %2013 = vmatpush1.bf16.xpose.msra.mxu0 0
    %2014 = vmatprep.subr.bf16.mxu0 0
    %2015 = vmatpush1.bf16.xpose.msra.mxu0 0
    %2016 = vmatprep.subr.bf16.mxu0 0
    %2017 = vmatpush1.bf16.xpose.msra.mxu0 0
    %2018 = vmatprep.subr.bf16.mxu0 0
    %2019 = vmatpush1.bf16.xpose.msra.mxu0 0
    %2020 = vmatprep.subr.bf16.mxu0 0
    %2021 = vmatpush1.bf16.xpose.msra.mxu0 0
    %2022 = vmatprep.subr.bf16.mxu0 0
    %2023 = vmatpush1.bf16.xpose.msra.mxu0 0
    %2024 = vmatprep.subr.bf16.mxu0 0
    %2025 = vmatpush1.bf16.xpose.msra.mxu0 0
    %2026 = vmatprep.subr.bf16.mxu0 0
    %2027 = vmatpush1.bf16.xpose.msra.mxu0 0
    %2028 = vmatprep.mubr.bf16.mxu0 0
    %2029 = vmatmul.mubr.bf16.gmra.mrb[0].mxu0 %v1991
    %v2030 = vpop.f32.mrb[0].mxu0
    %v2031 = vadd.f32 %v606, %v2030
    %v2032 = vpop.f32.mrb[0].mxu0
    %v2033 = vpop.f32.mrb[0].mxu0
    %v2034 = vpop.f32.mrb[0].mxu0
    %2035 = vdwg.mxu0
    %v2036 = vmul.f32 %v2031, 1.442695
    %v2037 = vpow.pop %v2036
    %v2038 = vsel %vm162, %v2037, 0.0
    %2039 = vadd.xlane.f32.xlu0 %v2038
    %v2040 = vpop.xlane.xlu0 %2039
    %v2041 = vrcp.pop %v2040
    %v2042 = vmul.f32 %v2037, %v2041
    %v2043 = vpack.c.bf16 %v2042, %v2042
    %2044 = vrot.lane.b32.xlu0 %v1880, 56
    %v2045 = vpop.permute.xlu0 %2044
    %v2047 = vsel %vm162, %v2043, 0
    %v2050 = vsel %vm222, %v2045, 0
    %2052 = vmatprep.subr.bf16.mxu0 0
    %2053 = vmatpush1.bf16.msra.mxu0 %v2050
    %2054 = vmatprep.subr.bf16.mxu0 0
    %2055 = vmatpush1.bf16.msra.mxu0 0
    %2056 = vmatprep.subr.bf16.mxu0 0
    %2057 = vmatpush1.bf16.msra.mxu0 0
    %2058 = vmatprep.subr.bf16.mxu0 0
    %2059 = vmatpush1.bf16.msra.mxu0 0
    %2060 = vmatprep.subr.bf16.mxu0 0
    %2061 = vmatpush1.bf16.msra.mxu0 0
    %2062 = vmatprep.subr.bf16.mxu0 0
    %2063 = vmatpush1.bf16.msra.mxu0 0
    %2064 = vmatprep.subr.bf16.mxu0 0
    %2065 = vmatpush1.bf16.msra.mxu0 0
    %2066 = vmatprep.subr.bf16.mxu0 0
    %2067 = vmatpush1.bf16.msra.mxu0 0
    %2068 = vmatprep.subr.bf16.mxu0 0
    %2069 = vmatpush1.bf16.msra.mxu0 0
    %2070 = vmatprep.subr.bf16.mxu0 0
    %2071 = vmatpush1.bf16.msra.mxu0 0
    %2072 = vmatprep.subr.bf16.mxu0 0
    %2073 = vmatpush1.bf16.msra.mxu0 0
    %2074 = vmatprep.subr.bf16.mxu0 0
    %2075 = vmatpush1.bf16.msra.mxu0 0
    %2076 = vmatprep.subr.bf16.mxu0 0
    %2077 = vmatpush1.bf16.msra.mxu0 0
    %2078 = vmatprep.subr.bf16.mxu0 0
    %2079 = vmatpush1.bf16.msra.mxu0 0
    %2080 = vmatprep.subr.bf16.mxu0 0
    %2081 = vmatpush1.bf16.msra.mxu0 0
    %2082 = vmatprep.subr.bf16.mxu0 0
    %2083 = vmatpush1.bf16.msra.mxu0 0
    %2084 = vmatprep.mubr.bf16.mxu0 0
    %2085 = vmatmul.mubr.bf16.gmra.mrb[0].mxu0 %v2047
    %v2086 = vpop.f32.mrb[0].mxu0
    %v2087 = vadd.f32 0.0, %v2086
    %v2088 = vpop.f32.mrb[0].mxu0
    %v2089 = vpop.f32.mrb[0].mxu0
    %v2090 = vpop.f32.mrb[0].mxu0
    %2091 = vdwg.mxu0
    %2092 = vrot.lane.b32.xlu0 %v1880, 112
    %v2093 = vpop.permute.xlu0 %2092
    %2094 = vrot.lane.b32.xlu0 %v1880, 80
    %v2095 = vpop.permute.xlu0 %2094
    %v2097 = vsel %vm162, %v2093, 0
    %v2100 = vsel %vm162, %v2095, 0
    %2102 = vmatprep.subr.bf16.mxu0 0
    %2103 = vmatpush1.bf16.xpose.msra.mxu0 %v2100
    %2104 = vmatprep.subr.bf16.mxu0 0
    %2105 = vmatpush1.bf16.xpose.msra.mxu0 0
    %2106 = vmatprep.subr.bf16.mxu0 0
    %2107 = vmatpush1.bf16.xpose.msra.mxu0 0
    %2108 = vmatprep.subr.bf16.mxu0 0
    %2109 = vmatpush1.bf16.xpose.msra.mxu0 0
    %2110 = vmatprep.subr.bf16.mxu0 0
    %2111 = vmatpush1.bf16.xpose.msra.mxu0 0
    %2112 = vmatprep.subr.bf16.mxu0 0
    %2113 = vmatpush1.bf16.xpose.msra.mxu0 0
    %2114 = vmatprep.subr.bf16.mxu0 0
    %2115 = vmatpush1.bf16.xpose.msra.mxu0 0
    %2116 = vmatprep.subr.bf16.mxu0 0
    %2117 = vmatpush1.bf16.xpose.msra.mxu0 0
    %2118 = vmatprep.subr.bf16.mxu0 0
    %2119 = vmatpush1.bf16.xpose.msra.mxu0 0
    %2120 = vmatprep.subr.bf16.mxu0 0
    %2121 = vmatpush1.bf16.xpose.msra.mxu0 0
    %2122 = vmatprep.subr.bf16.mxu0 0
    %2123 = vmatpush1.bf16.xpose.msra.mxu0 0
    %2124 = vmatprep.subr.bf16.mxu0 0
    %2125 = vmatpush1.bf16.xpose.msra.mxu0 0
    %2126 = vmatprep.subr.bf16.mxu0 0
    %2127 = vmatpush1.bf16.xpose.msra.mxu0 0
    %2128 = vmatprep.subr.bf16.mxu0 0
    %2129 = vmatpush1.bf16.xpose.msra.mxu0 0
    %2130 = vmatprep.subr.bf16.mxu0 0
    %2131 = vmatpush1.bf16.xpose.msra.mxu0 0
    %2132 = vmatprep.subr.bf16.mxu0 0
    %2133 = vmatpush1.bf16.xpose.msra.mxu0 0
    %2134 = vmatprep.mubr.bf16.mxu0 0
    %2135 = vmatmul.mubr.bf16.gmra.mrb[0].mxu0 %v2097
    %v2136 = vpop.f32.mrb[0].mxu0
    %v2137 = vadd.f32 %v606, %v2136
    %v2138 = vpop.f32.mrb[0].mxu0
    %v2139 = vpop.f32.mrb[0].mxu0
    %v2140 = vpop.f32.mrb[0].mxu0
    %2141 = vdwg.mxu0
    %v2142 = vmul.f32 %v2137, 1.442695
    %v2143 = vpow.pop %v2142
    %v2144 = vsel %vm162, %v2143, 0.0
    %2145 = vadd.xlane.f32.xlu0 %v2144
    %v2146 = vpop.xlane.xlu0 %2145
    %v2147 = vrcp.pop %v2146
    %v2148 = vmul.f32 %v2143, %v2147
    %v2149 = vpack.c.bf16 %v2148, %v2148
    %2150 = vrot.lane.b32.xlu0 %v1880, 48
    %v2151 = vpop.permute.xlu0 %2150
    %v2153 = vsel %vm162, %v2149, 0
    %v2156 = vsel %vm222, %v2151, 0
    %2158 = vmatprep.subr.bf16.mxu0 0
    %2159 = vmatpush1.bf16.msra.mxu0 %v2156
    %2160 = vmatprep.subr.bf16.mxu0 0
    %2161 = vmatpush1.bf16.msra.mxu0 0
    %2162 = vmatprep.subr.bf16.mxu0 0
    %2163 = vmatpush1.bf16.msra.mxu0 0
    %2164 = vmatprep.subr.bf16.mxu0 0
    %2165 = vmatpush1.bf16.msra.mxu0 0
    %2166 = vmatprep.subr.bf16.mxu0 0
    %2167 = vmatpush1.bf16.msra.mxu0 0
    %2168 = vmatprep.subr.bf16.mxu0 0
    %2169 = vmatpush1.bf16.msra.mxu0 0
    %2170 = vmatprep.subr.bf16.mxu0 0
    %2171 = vmatpush1.bf16.msra.mxu0 0
    %2172 = vmatprep.subr.bf16.mxu0 0
    %2173 = vmatpush1.bf16.msra.mxu0 0
    %2174 = vmatprep.subr.bf16.mxu0 0
    %2175 = vmatpush1.bf16.msra.mxu0 0
    %2176 = vmatprep.subr.bf16.mxu0 0
    %2177 = vmatpush1.bf16.msra.mxu0 0
    %2178 = vmatprep.subr.bf16.mxu0 0
    %2179 = vmatpush1.bf16.msra.mxu0 0
    %2180 = vmatprep.subr.bf16.mxu0 0
    %2181 = vmatpush1.bf16.msra.mxu0 0
    %2182 = vmatprep.subr.bf16.mxu0 0
    %2183 = vmatpush1.bf16.msra.mxu0 0
    %2184 = vmatprep.subr.bf16.mxu0 0
    %2185 = vmatpush1.bf16.msra.mxu0 0
    %2186 = vmatprep.subr.bf16.mxu0 0
    %2187 = vmatpush1.bf16.msra.mxu0 0
    %2188 = vmatprep.subr.bf16.mxu0 0
    %2189 = vmatpush1.bf16.msra.mxu0 0
    %2190 = vmatprep.mubr.bf16.mxu0 0
    %2191 = vmatmul.mubr.bf16.gmra.mrb[0].mxu0 %v2153
    %v2192 = vpop.f32.mrb[0].mxu0
    %v2193 = vadd.f32 0.0, %v2192
    %v2194 = vpop.f32.mrb[0].mxu0
    %v2195 = vpop.f32.mrb[0].mxu0
    %v2196 = vpop.f32.mrb[0].mxu0
    %2197 = vdwg.mxu0
    %2198 = vrot.lane.b32.xlu0 %v1880, 104
    %v2199 = vpop.permute.xlu0 %2198
    %2200 = vrot.lane.b32.xlu0 %v1880, 72
    %v2201 = vpop.permute.xlu0 %2200
    %v2203 = vsel %vm162, %v2199, 0
    %v2206 = vsel %vm162, %v2201, 0
    %2208 = vmatprep.subr.bf16.mxu0 0
    %2209 = vmatpush1.bf16.xpose.msra.mxu0 %v2206
    %2210 = vmatprep.subr.bf16.mxu0 0
    %2211 = vmatpush1.bf16.xpose.msra.mxu0 0
    %2212 = vmatprep.subr.bf16.mxu0 0
    %2213 = vmatpush1.bf16.xpose.msra.mxu0 0
    %2214 = vmatprep.subr.bf16.mxu0 0
    %2215 = vmatpush1.bf16.xpose.msra.mxu0 0
    %2216 = vmatprep.subr.bf16.mxu0 0
    %2217 = vmatpush1.bf16.xpose.msra.mxu0 0
    %2218 = vmatprep.subr.bf16.mxu0 0
    %2219 = vmatpush1.bf16.xpose.msra.mxu0 0
    %2220 = vmatprep.subr.bf16.mxu0 0
    %2221 = vmatpush1.bf16.xpose.msra.mxu0 0
    %2222 = vmatprep.subr.bf16.mxu0 0
    %2223 = vmatpush1.bf16.xpose.msra.mxu0 0
    %2224 = vmatprep.subr.bf16.mxu0 0
    %2225 = vmatpush1.bf16.xpose.msra.mxu0 0
    %2226 = vmatprep.subr.bf16.mxu0 0
    %2227 = vmatpush1.bf16.xpose.msra.mxu0 0
    %2228 = vmatprep.subr.bf16.mxu0 0
    %2229 = vmatpush1.bf16.xpose.msra.mxu0 0
    %2230 = vmatprep.subr.bf16.mxu0 0
    %2231 = vmatpush1.bf16.xpose.msra.mxu0 0
    %2232 = vmatprep.subr.bf16.mxu0 0
    %2233 = vmatpush1.bf16.xpose.msra.mxu0 0
    %2234 = vmatprep.subr.bf16.mxu0 0
    %2235 = vmatpush1.bf16.xpose.msra.mxu0 0
    %2236 = vmatprep.subr.bf16.mxu0 0
    %2237 = vmatpush1.bf16.xpose.msra.mxu0 0
    %2238 = vmatprep.subr.bf16.mxu0 0
    %2239 = vmatpush1.bf16.xpose.msra.mxu0 0
    %2240 = vmatprep.mubr.bf16.mxu0 0
    %2241 = vmatmul.mubr.bf16.gmra.mrb[0].mxu0 %v2203
    %v2242 = vpop.f32.mrb[0].mxu0
    %v2243 = vadd.f32 %v606, %v2242
    %v2244 = vpop.f32.mrb[0].mxu0
    %v2245 = vpop.f32.mrb[0].mxu0
    %v2246 = vpop.f32.mrb[0].mxu0
    %2247 = vdwg.mxu0
    %v2248 = vmul.f32 %v2243, 1.442695
    %v2249 = vpow.pop %v2248
    %v2250 = vsel %vm162, %v2249, 0.0
    %2251 = vadd.xlane.f32.xlu0 %v2250
    %v2252 = vpop.xlane.xlu0 %2251
    %v2253 = vrcp.pop %v2252
    %v2254 = vmul.f32 %v2249, %v2253
    %v2255 = vpack.c.bf16 %v2254, %v2254
    %2256 = vrot.lane.b32.xlu0 %v1880, 40
    %v2257 = vpop.permute.xlu0 %2256
    %v2259 = vsel %vm162, %v2255, 0
    %v2262 = vsel %vm222, %v2257, 0
    %2264 = vmatprep.subr.bf16.mxu0 0
    %2265 = vmatpush1.bf16.msra.mxu0 %v2262
    %2266 = vmatprep.subr.bf16.mxu0 0
    %2267 = vmatpush1.bf16.msra.mxu0 0
    %2268 = vmatprep.subr.bf16.mxu0 0
    %2269 = vmatpush1.bf16.msra.mxu0 0
    %2270 = vmatprep.subr.bf16.mxu0 0
    %2271 = vmatpush1.bf16.msra.mxu0 0
    %2272 = vmatprep.subr.bf16.mxu0 0
    %2273 = vmatpush1.bf16.msra.mxu0 0
    %2274 = vmatprep.subr.bf16.mxu0 0
    %2275 = vmatpush1.bf16.msra.mxu0 0
    %2276 = vmatprep.subr.bf16.mxu0 0
    %2277 = vmatpush1.bf16.msra.mxu0 0
    %2278 = vmatprep.subr.bf16.mxu0 0
    %2279 = vmatpush1.bf16.msra.mxu0 0
    %2280 = vmatprep.subr.bf16.mxu0 0
    %2281 = vmatpush1.bf16.msra.mxu0 0
    %2282 = vmatprep.subr.bf16.mxu0 0
    %2283 = vmatpush1.bf16.msra.mxu0 0
    %2284 = vmatprep.subr.bf16.mxu0 0
    %2285 = vmatpush1.bf16.msra.mxu0 0
    %2286 = vmatprep.subr.bf16.mxu0 0
    %2287 = vmatpush1.bf16.msra.mxu0 0
    %2288 = vmatprep.subr.bf16.mxu0 0
    %2289 = vmatpush1.bf16.msra.mxu0 0
    %2290 = vmatprep.subr.bf16.mxu0 0
    %2291 = vmatpush1.bf16.msra.mxu0 0
    %2292 = vmatprep.subr.bf16.mxu0 0
    %2293 = vmatpush1.bf16.msra.mxu0 0
    %2294 = vmatprep.subr.bf16.mxu0 0
    %2295 = vmatpush1.bf16.msra.mxu0 0
    %2296 = vmatprep.mubr.bf16.mxu0 0
    %2297 = vmatmul.mubr.bf16.gmra.mrb[0].mxu0 %v2259
    %v2298 = vpop.f32.mrb[0].mxu0
    %v2299 = vadd.f32 0.0, %v2298
    %v2300 = vpop.f32.mrb[0].mxu0
    %v2301 = vpop.f32.mrb[0].mxu0
    %v2302 = vpop.f32.mrb[0].mxu0
    %2303 = vdwg.mxu0
    %2305 = vrot.lane.b32.xlu0 %v2087, 8
    %v2306 = vpop.permute.xlu0 %2305
    %2309 = vrot.lane.b32.xlu0 %v2193, 16
    %v2310 = vpop.permute.xlu0 %2309
    %2313 = vrot.lane.b32.xlu0 %v2299, 24
    %v2314 = vpop.permute.xlu0 %2313
    %v2316 = vsel %vm162, %v1981, %v2306
    %v2317 = vsel %vm597, %v2316, %v2310
    %v2318 = vsel %vm599, %v2317, %v2314
    %v2319 = vpack.c.bf16 %v2318, %v1879
    %s2320 = scalar_lea.vmem %s4, 16
    %v2321 = vld [vmem:[%s2320] sm:$0xf]
    %v2322 = vld [vmem:[%s2320 + $0x4] sm:$0xf]
    %v2323 = vld [vmem:[%s2320 + $0x8] sm:$0xf]
    %v2324 = vld [vmem:[%s2320 + $0xc] sm:$0xf]
    %v2325 = vld [vmem:[%s2 + $0xb] sm:$0x1]
    %v2326 = vlaneseq
    %v2327 = vshrl.u32 %v2326, 7
    %v2328 = vsub.s32 0, %v2327
    %v2329 = vrot.slane %v2325, %v2328
    %v2334 = vunpack.c.l.b16 %v2321
    %v2335 = vunpack.c.l.b16 %v2322
    %v2336 = vunpack.c.l.b16 %v2323
    %v2337 = vunpack.c.l.b16 %v2324
    %v2338 = vpack.c.b16 %v2335, %v2334
    %v2339 = vpack.c.b16 %v2337, %v2336
    %v2343 = vsel %vm41, %v2319, 0
    %2345 = vmatprep.subr.bf16.mxu0 0
    %2346 = vmatpush1.bf16.msra.mxu0 %v2338
    %2347 = vmatprep.subr.bf16.mxu0 0
    %2348 = vmatpush1.bf16.msra.mxu0 %v2339
    %2349 = vmatprep.subr.bf16.mxu0 0
    %2350 = vmatpush1.bf16.msra.mxu0 0
    %2351 = vmatprep.subr.bf16.mxu0 0
    %2352 = vmatpush1.bf16.msra.mxu0 0
    %2353 = vmatprep.subr.bf16.mxu0 0
    %2354 = vmatpush1.bf16.msra.mxu0 0
    %2355 = vmatprep.subr.bf16.mxu0 0
    %2356 = vmatpush1.bf16.msra.mxu0 0
    %2357 = vmatprep.subr.bf16.mxu0 0
    %2358 = vmatpush1.bf16.msra.mxu0 0
    %2359 = vmatprep.subr.bf16.mxu0 0
    %2360 = vmatpush1.bf16.msra.mxu0 0
    %2361 = vmatprep.subr.bf16.mxu0 0
    %2362 = vmatpush1.bf16.msra.mxu0 0
    %2363 = vmatprep.subr.bf16.mxu0 0
    %2364 = vmatpush1.bf16.msra.mxu0 0
    %2365 = vmatprep.subr.bf16.mxu0 0
    %2366 = vmatpush1.bf16.msra.mxu0 0
    %2367 = vmatprep.subr.bf16.mxu0 0
    %2368 = vmatpush1.bf16.msra.mxu0 0
    %2369 = vmatprep.subr.bf16.mxu0 0
    %2370 = vmatpush1.bf16.msra.mxu0 0
    %2371 = vmatprep.subr.bf16.mxu0 0
    %2372 = vmatpush1.bf16.msra.mxu0 0
    %2373 = vmatprep.subr.bf16.mxu0 0
    %2374 = vmatpush1.bf16.msra.mxu0 0
    %2375 = vmatprep.subr.bf16.mxu0 0
    %2376 = vmatpush1.bf16.msra.mxu0 0
    %2377 = vmatprep.mubr.bf16.mxu0 0
    %2378 = vmatmul.mubr.bf16.gmra.mrb[0].mxu0 %v2343
    %v2379 = vpop.f32.mrb[0].mxu0
    %v2380 = vadd.f32 %v2329, %v2379
    %v2381 = vpop.f32.mrb[0].mxu0
    %v2382 = vpop.f32.mrb[0].mxu0
    %v2383 = vadd.f32 %v2329, %v2382
    %v2384 = vpop.f32.mrb[0].mxu0
    %2385 = vdwg.mxu0
    %v2386 = vadd.f32 %v2380, %v1372
    %v2387 = vadd.f32 %v2383, %v1373
    %v2388 = vld [vmem:[%s2 + $0xc] sm:$0x1]
    %v2389 = vld [vmem:[%s2 + $0xd] sm:$0x1]
    %v2390 = vsel %vm41, %v2386, 0.0
    %2391 = vadd.xlane.f32.xlu0 %v2390
    %v2392 = vpop.xlane.xlu0 %2391
    %v2393 = vsel %vm41, %v2387, 0.0
    %2394 = vadd.xlane.f32.xlu0 %v2393
    %v2395 = vpop.xlane.xlu0 %2394
    %v2396 = vmul.f32 %v2392, %v48
    %v2397 = vmul.f32 %v2395, %v48
    %v2398 = vmul.f32 %v2386, %v2386
    %v2399 = vmul.f32 %v2387, %v2387
    %v2400 = vsel %vm41, %v2398, 0.0
    %2401 = vadd.xlane.f32.xlu0 %v2400
    %v2402 = vpop.xlane.xlu0 %2401
    %v2403 = vsel %vm41, %v2399, 0.0
    %2404 = vadd.xlane.f32.xlu0 %v2403
    %v2405 = vpop.xlane.xlu0 %2404
    %v2406 = vmul.f32 %v2402, %v48
    %v2407 = vmul.f32 %v2405, %v48
    %v2408 = vmul.f32 %v2396, %v2396
    %v2409 = vmul.f32 %v2397, %v2397
    %v2410 = vsub.f32 %v2406, %v2408
    %v2411 = vsub.f32 %v2407, %v2409
    %v2412 = vmax.f32 %v2410, 0.0
    %v2413 = vmax.f32 %v2411, 0.0
    %v2414 = vsub.f32 %v2386, %v2396
    %v2415 = vsub.f32 %v2387, %v2397
    %v2416 = vadd.f32 %v2412, 1e-12
    %v2417 = vadd.f32 %v2413, 1e-12
    %v2418 = vrsqrt.pop %v2416
    %v2419 = vrsqrt.pop %v2417
    %v2420 = vmul.f32 %v2414, %v2418
    %v2421 = vmul.f32 %v2415, %v2419
    %v2422 = vlaneseq
    %v2423 = vshrl.u32 %v2422, 7
    %v2424 = vsub.s32 0, %v2423
    %v2425 = vrot.slane %v2388, %v2424
    %v2426 = vmul.f32 %v2420, %v2425
    %v2427 = vmul.f32 %v2421, %v2425
    %v2428 = vlaneseq
    %v2429 = vshrl.u32 %v2428, 7
    %v2430 = vsub.s32 0, %v2429
    %v2431 = vrot.slane %v2389, %v2430
    %v2432 = vadd.f32 %v2426, %v2431
    %v2433 = vadd.f32 %v2427, %v2431
    %v2434 = vpack.c.bf16 %v2433, %v2432
    %s2435 = scalar_lea.vmem %s5, 16
    %v2436 = vld [vmem:[%s2435] sm:$0xf]
    %v2437 = vld [vmem:[%s2435 + $0x4] sm:$0xf]
    %v2438 = vld [vmem:[%s2435 + $0x8] sm:$0xf]
    %v2439 = vld [vmem:[%s2435 + $0xc] sm:$0xf]
    %v2440 = vld [vmem:[%s2 + $0xe] sm:$0x1]
    %v2441 = vlaneseq
    %v2442 = vshrl.u32 %v2441, 7
    %v2443 = vsub.s32 0, %v2442
    %v2444 = vrot.slane %v2440, %v2443
    %v2449 = vunpack.c.l.b16 %v2436
    %v2450 = vunpack.c.l.b16 %v2437
    %v2451 = vunpack.c.l.b16 %v2438
    %v2452 = vunpack.c.l.b16 %v2439
    %v2453 = vpack.c.b16 %v2450, %v2449
    %v2454 = vpack.c.b16 %v2452, %v2451
    %v2458 = vsel %vm41, %v2434, 0
    %2460 = vmatprep.subr.bf16.mxu0 0
    %2461 = vmatpush1.bf16.msra.mxu0 %v2453
    %2462 = vmatprep.subr.bf16.mxu0 0
    %2463 = vmatpush1.bf16.msra.mxu0 %v2454
    %2464 = vmatprep.subr.bf16.mxu0 0
    %2465 = vmatpush1.bf16.msra.mxu0 0
    %2466 = vmatprep.subr.bf16.mxu0 0
    %2467 = vmatpush1.bf16.msra.mxu0 0
    %2468 = vmatprep.subr.bf16.mxu0 0
    %2469 = vmatpush1.bf16.msra.mxu0 0
    %2470 = vmatprep.subr.bf16.mxu0 0
    %2471 = vmatpush1.bf16.msra.mxu0 0
    %2472 = vmatprep.subr.bf16.mxu0 0
    %2473 = vmatpush1.bf16.msra.mxu0 0
    %2474 = vmatprep.subr.bf16.mxu0 0
    %2475 = vmatpush1.bf16.msra.mxu0 0
    %2476 = vmatprep.subr.bf16.mxu0 0
    %2477 = vmatpush1.bf16.msra.mxu0 0
    %2478 = vmatprep.subr.bf16.mxu0 0
    %2479 = vmatpush1.bf16.msra.mxu0 0
    %2480 = vmatprep.subr.bf16.mxu0 0
    %2481 = vmatpush1.bf16.msra.mxu0 0
    %2482 = vmatprep.subr.bf16.mxu0 0
    %2483 = vmatpush1.bf16.msra.mxu0 0
    %2484 = vmatprep.subr.bf16.mxu0 0
    %2485 = vmatpush1.bf16.msra.mxu0 0
    %2486 = vmatprep.subr.bf16.mxu0 0
    %2487 = vmatpush1.bf16.msra.mxu0 0
    %2488 = vmatprep.subr.bf16.mxu0 0
    %2489 = vmatpush1.bf16.msra.mxu0 0
    %2490 = vmatprep.subr.bf16.mxu0 0
    %2491 = vmatpush1.bf16.msra.mxu0 0
    %2492 = vmatprep.mubr.bf16.mxu0 0
    %2493 = vmatmul.mubr.bf16.gmra.mrb[0].mxu0 %v2458
    %v2494 = vpop.f32.mrb[0].mxu0
    %v2495 = vadd.f32 %v2444, %v2494
    %v2496 = vpop.f32.mrb[0].mxu0
    %v2497 = vpop.f32.mrb[0].mxu0
    %v2498 = vadd.f32 %v2444, %v2497
    %v2499 = vpop.f32.mrb[0].mxu0
    %2500 = vdwg.mxu0
    %v2501 = vmul.f32 %v2495, 0.5
    %v2502 = vmul.f32 %v2498, 0.5
    %v2503 = vmul.f32 %v2495, 0.044715
    %v2504 = vmul.f32 %v2498, 0.044715
    %v2505 = vmul.f32 %v2503, %v2495
    %v2506 = vmul.f32 %v2504, %v2498
    %v2507 = vmul.f32 %v2505, %v2495
    %v2508 = vmul.f32 %v2506, %v2498
    %v2509 = vadd.f32 %v2495, %v2507
    %v2510 = vadd.f32 %v2498, %v2508
    %v2511 = vmul.f32 %v2509, 0.7978846
    %v2512 = vmul.f32 %v2510, 0.7978846
    %v2513 = vtanh.pop %v2511
    %v2514 = vtanh.pop %v2512
    %v2515 = vadd.f32 %v2513, 1.0
    %v2516 = vadd.f32 %v2514, 1.0
    %v2517 = vmul.f32 %v2501, %v2515
    %v2518 = vmul.f32 %v2502, %v2516
    %v2519 = vpack.c.bf16 %v2518, %v2517
    %s2520 = scalar_lea.vmem %s6, 32
    %v2521 = vld [vmem:[%s2520] sm:$0xf]
    %v2522 = vld [vmem:[%s2520 + $0x4] sm:$0xf]
    %v2523 = vld [vmem:[%s2520 + $0x8] sm:$0xf]
    %v2524 = vld [vmem:[%s2520 + $0xc] sm:$0xf]
    %v2525 = vld [vmem:[%s2520 + $0x10] sm:$0xf]
    %v2526 = vld [vmem:[%s2520 + $0x14] sm:$0xf]
    %v2527 = vld [vmem:[%s2520 + $0x18] sm:$0xf]
    %v2528 = vld [vmem:[%s2520 + $0x1c] sm:$0xf]
    %v2529 = vld [vmem:[%s2 + $0xf] sm:$0x1]
    %v2530 = vlaneseq
    %v2531 = vshrl.u32 %v2530, 7
    %v2532 = vsub.s32 0, %v2531
    %v2533 = vrot.slane %v2529, %v2532
    %v2542 = vunpack.c.l.b16 %v2521
    %v2543 = vunpack.c.l.b16 %v2522
    %v2544 = vunpack.c.l.b16 %v2523
    %v2545 = vunpack.c.l.b16 %v2524
    %v2546 = vunpack.c.l.b16 %v2525
    %v2547 = vunpack.c.l.b16 %v2526
    %v2548 = vunpack.c.l.b16 %v2527
    %v2549 = vunpack.c.l.b16 %v2528
    %v2550 = vpack.c.b16 %v2543, %v2542
    %v2551 = vpack.c.b16 %v2545, %v2544
    %v2552 = vpack.c.b16 %v2547, %v2546
    %v2553 = vpack.c.b16 %v2549, %v2548
    %v2559 = vsel %vm1281, %v2519, 0
    %2561 = vmatprep.subr.bf16.mxu0 0
    %2562 = vmatpush1.bf16.msra.mxu0 %v2550
    %2563 = vmatprep.subr.bf16.mxu0 0
    %2564 = vmatpush1.bf16.msra.mxu0 %v2551
    %2565 = vmatprep.subr.bf16.mxu0 0
    %2566 = vmatpush1.bf16.msra.mxu0 %v2552
    %2567 = vmatprep.subr.bf16.mxu0 0
    %2568 = vmatpush1.bf16.msra.mxu0 %v2553
    %2569 = vmatprep.subr.bf16.mxu0 0
    %2570 = vmatpush1.bf16.msra.mxu0 0
    %2571 = vmatprep.subr.bf16.mxu0 0
    %2572 = vmatpush1.bf16.msra.mxu0 0
    %2573 = vmatprep.subr.bf16.mxu0 0
    %2574 = vmatpush1.bf16.msra.mxu0 0
    %2575 = vmatprep.subr.bf16.mxu0 0
    %2576 = vmatpush1.bf16.msra.mxu0 0
    %2577 = vmatprep.subr.bf16.mxu0 0
    %2578 = vmatpush1.bf16.msra.mxu0 0
    %2579 = vmatprep.subr.bf16.mxu0 0
    %2580 = vmatpush1.bf16.msra.mxu0 0
    %2581 = vmatprep.subr.bf16.mxu0 0
    %2582 = vmatpush1.bf16.msra.mxu0 0
    %2583 = vmatprep.subr.bf16.mxu0 0
    %2584 = vmatpush1.bf16.msra.mxu0 0
    %2585 = vmatprep.subr.bf16.mxu0 0
    %2586 = vmatpush1.bf16.msra.mxu0 0
    %2587 = vmatprep.subr.bf16.mxu0 0
    %2588 = vmatpush1.bf16.msra.mxu0 0
    %2589 = vmatprep.subr.bf16.mxu0 0
    %2590 = vmatpush1.bf16.msra.mxu0 0
    %2591 = vmatprep.subr.bf16.mxu0 0
    %2592 = vmatpush1.bf16.msra.mxu0 0
    %2593 = vmatprep.mubr.bf16.mxu0 0
    %2594 = vmatmul.mubr.bf16.gmra.mrb[0].mxu0 %v2559
    %v2595 = vpop.f32.mrb[0].mxu0
    %v2596 = vadd.f32 %v2533, %v2595
    %v2597 = vpop.f32.mrb[0].mxu0
    %v2598 = vpop.f32.mrb[0].mxu0
    %v2599 = vadd.f32 %v2533, %v2598
    %v2600 = vpop.f32.mrb[0].mxu0
    %2601 = vdwg.mxu0
    %v2602 = vadd.f32 %v2596, %v2432
    %v2603 = vadd.f32 %v2599, %v2433
    %v2604 = vld [vmem:[%s2 + $0x10] sm:$0x1]
    %v2605 = vld [vmem:[%s2 + $0x11] sm:$0x1]
    %v2606 = vsel %vm41, %v2602, 0.0
    %2607 = vadd.xlane.f32.xlu0 %v2606
    %v2608 = vpop.xlane.xlu0 %2607
    %v2609 = vsel %vm41, %v2603, 0.0
    %2610 = vadd.xlane.f32.xlu0 %v2609
    %v2611 = vpop.xlane.xlu0 %2610
    %v2612 = vmul.f32 %v2608, %v48
    %v2613 = vmul.f32 %v2611, %v48
    %v2614 = vmul.f32 %v2602, %v2602
    %v2615 = vmul.f32 %v2603, %v2603
    %v2616 = vsel %vm41, %v2614, 0.0
    %2617 = vadd.xlane.f32.xlu0 %v2616
    %v2618 = vpop.xlane.xlu0 %2617
    %v2619 = vsel %vm41, %v2615, 0.0
    %2620 = vadd.xlane.f32.xlu0 %v2619
    %v2621 = vpop.xlane.xlu0 %2620
    %v2622 = vmul.f32 %v2618, %v48
    %v2623 = vmul.f32 %v2621, %v48
    %v2624 = vmul.f32 %v2612, %v2612
    %v2625 = vmul.f32 %v2613, %v2613
    %v2626 = vsub.f32 %v2622, %v2624
    %v2627 = vsub.f32 %v2623, %v2625
    %v2628 = vmax.f32 %v2626, 0.0
    %v2629 = vmax.f32 %v2627, 0.0
    %v2630 = vsub.f32 %v2602, %v2612
    %v2631 = vsub.f32 %v2603, %v2613
    %v2632 = vadd.f32 %v2628, 1e-12
    %v2633 = vadd.f32 %v2629, 1e-12
    %v2634 = vrsqrt.pop %v2632
    %v2635 = vrsqrt.pop %v2633
    %v2636 = vmul.f32 %v2630, %v2634
    %v2637 = vmul.f32 %v2631, %v2635
    %v2638 = vlaneseq
    %v2639 = vshrl.u32 %v2638, 7
    %v2640 = vsub.s32 0, %v2639
    %v2641 = vrot.slane %v2604, %v2640
    %v2642 = vmul.f32 %v2636, %v2641
    %v2643 = vmul.f32 %v2637, %v2641
    %v2644 = vlaneseq
    %v2645 = vshrl.u32 %v2644, 7
    %v2646 = vsub.s32 0, %v2645
    %v2647 = vrot.slane %v2605, %v2646
    %v2648 = vadd.f32 %v2642, %v2647
    %v2649 = vadd.f32 %v2643, %v2647
    %v2651 = vrot.slane %v2649, 7
    %vm2653 = vcmask 1040384
    %v2654 = vsel %vm2653, %v2648, %v2651
    %v2655 = vpack.c.bf16 %v2654, %v2654
    %v2656 = vld [vmem:[%s7] sm:$0xf]
    %v2657 = vld [vmem:[%s7 + $0x4] sm:$0xf]
    %v2658 = vld [vmem:[%s7 + $0x8] sm:$0xf]
    %v2659 = vld [vmem:[%s7 + $0xc] sm:$0xf]
    %v2660 = vld [vmem:[%s2 + $0x12] sm:$0x1]
    %v2661 = vlaneseq
    %v2662 = vshrl.u32 %v2661, 7
    %v2663 = vsub.s32 0, %v2662
    %v2664 = vrot.slane %v2660, %v2663
    %v2669 = vunpack.c.l.b16 %v2656
    %v2670 = vunpack.c.l.b16 %v2657
    %v2671 = vunpack.c.l.b16 %v2658
    %v2672 = vunpack.c.l.b16 %v2659
    %v2673 = vpack.c.b16 %v2670, %v2669
    %v2674 = vpack.c.b16 %v2672, %v2671
    %v2678 = vsel %vm41, %v2655, 0
    %2680 = vmatprep.subr.bf16.mxu0 0
    %2681 = vmatpush1.bf16.msra.mxu0 %v2673
    %2682 = vmatprep.subr.bf16.mxu0 0
    %2683 = vmatpush1.bf16.msra.mxu0 %v2674
    %2684 = vmatprep.subr.bf16.mxu0 0
    %2685 = vmatpush1.bf16.msra.mxu0 0
    %2686 = vmatprep.subr.bf16.mxu0 0
    %2687 = vmatpush1.bf16.msra.mxu0 0
    %2688 = vmatprep.subr.bf16.mxu0 0
    %2689 = vmatpush1.bf16.msra.mxu0 0
    %2690 = vmatprep.subr.bf16.mxu0 0
    %2691 = vmatpush1.bf16.msra.mxu0 0
    %2692 = vmatprep.subr.bf16.mxu0 0
    %2693 = vmatpush1.bf16.msra.mxu0 0
    %2694 = vmatprep.subr.bf16.mxu0 0
    %2695 = vmatpush1.bf16.msra.mxu0 0
    %2696 = vmatprep.subr.bf16.mxu0 0
    %2697 = vmatpush1.bf16.msra.mxu0 0
    %2698 = vmatprep.subr.bf16.mxu0 0
    %2699 = vmatpush1.bf16.msra.mxu0 0
    %2700 = vmatprep.subr.bf16.mxu0 0
    %2701 = vmatpush1.bf16.msra.mxu0 0
    %2702 = vmatprep.subr.bf16.mxu0 0
    %2703 = vmatpush1.bf16.msra.mxu0 0
    %2704 = vmatprep.subr.bf16.mxu0 0
    %2705 = vmatpush1.bf16.msra.mxu0 0
    %2706 = vmatprep.subr.bf16.mxu0 0
    %2707 = vmatpush1.bf16.msra.mxu0 0
    %2708 = vmatprep.subr.bf16.mxu0 0
    %2709 = vmatpush1.bf16.msra.mxu0 0
    %2710 = vmatprep.subr.bf16.mxu0 0
    %2711 = vmatpush1.bf16.msra.mxu0 0
    %2712 = vmatprep.mubr.bf16.mxu0 0
    %2713 = vmatmul.mubr.bf16.gmra.mrb[0].mxu0 %v2678
    %v2714 = vpop.f32.mrb[0].mxu0
    %v2715 = vadd.f32 %v2664, %v2714
    %v2716 = vpop.f32.mrb[0].mxu0
    %v2717 = vpop.f32.mrb[0].mxu0
    %v2718 = vpop.f32.mrb[0].mxu0
    %2719 = vdwg.mxu0
    %v2720 = vtanh.pop %v2715
    %v2721 = vld [vmem:[%s1] sm:$0x3]
    %v2722 = vpack.c.bf16 %v2720, %v2720
    %v2723 = vld [vmem:[%s8] sm:$0xf]
    %v2724 = vld [vmem:[%s8 + $0x4] sm:$0xf]
    %v2725 = vld [vmem:[%s8 + $0x8] sm:$0xf]
    %v2726 = vld [vmem:[%s8 + $0xc] sm:$0xf]
    %v2727 = vpack.c.bf16 %v2721, %v2721
    %v2728 = vld [vmem:[%s9] sm:$0xf]
    %2730 = vrot.lane.b32.xlu0 %v2727, 120
    %v2731 = vpop.permute.xlu0 %2730
    %v2733 = vsel %vm162, %v2731, 0
    %v2736 = vsel %vm222, %v2728, 0
    %2738 = vmatprep.subr.bf16.mxu0 0
    %2739 = vmatpush1.bf16.msra.mxu0 %v2736
    %2740 = vmatprep.subr.bf16.mxu0 0
    %2741 = vmatpush1.bf16.msra.mxu0 0
    %2742 = vmatprep.subr.bf16.mxu0 0
    %2743 = vmatpush1.bf16.msra.mxu0 0
    %2744 = vmatprep.subr.bf16.mxu0 0
    %2745 = vmatpush1.bf16.msra.mxu0 0
    %2746 = vmatprep.subr.bf16.mxu0 0
    %2747 = vmatpush1.bf16.msra.mxu0 0
    %2748 = vmatprep.subr.bf16.mxu0 0
    %2749 = vmatpush1.bf16.msra.mxu0 0
    %2750 = vmatprep.subr.bf16.mxu0 0
    %2751 = vmatpush1.bf16.msra.mxu0 0
    %2752 = vmatprep.subr.bf16.mxu0 0
    %2753 = vmatpush1.bf16.msra.mxu0 0
    %2754 = vmatprep.subr.bf16.mxu0 0
    %2755 = vmatpush1.bf16.msra.mxu0 0
    %2756 = vmatprep.subr.bf16.mxu0 0
    %2757 = vmatpush1.bf16.msra.mxu0 0
    %2758 = vmatprep.subr.bf16.mxu0 0
    %2759 = vmatpush1.bf16.msra.mxu0 0
    %2760 = vmatprep.subr.bf16.mxu0 0
    %2761 = vmatpush1.bf16.msra.mxu0 0
    %2762 = vmatprep.subr.bf16.mxu0 0
    %2763 = vmatpush1.bf16.msra.mxu0 0
    %2764 = vmatprep.subr.bf16.mxu0 0
    %2765 = vmatpush1.bf16.msra.mxu0 0
    %2766 = vmatprep.subr.bf16.mxu0 0
    %2767 = vmatpush1.bf16.msra.mxu0 0
    %2768 = vmatprep.subr.bf16.mxu0 0
    %2769 = vmatpush1.bf16.msra.mxu0 0
    %2770 = vmatprep.mubr.bf16.mxu0 0
    %2771 = vmatmul.mubr.bf16.gmra.mrb[0].mxu0 %v2733
    %v2772 = vpop.f32.mrb[0].mxu0
    %v2773 = vadd.f32 0.0, %v2772
    %v2774 = vpop.f32.mrb[0].mxu0
    %v2775 = vpop.f32.mrb[0].mxu0
    %v2776 = vpop.f32.mrb[0].mxu0
    %2777 = vdwg.mxu0
    %v2782 = vunpack.c.l.b16 %v2723
    %v2783 = vunpack.c.l.b16 %v2724
    %v2784 = vunpack.c.l.b16 %v2725
    %v2785 = vunpack.c.l.b16 %v2726
    %v2786 = vpack.c.b16 %v2783, %v2782
    %v2787 = vpack.c.b16 %v2785, %v2784
    %v2791 = vsel %vm41, %v2722, 0
    %2793 = vmatprep.subr.bf16.mxu0 0
    %2794 = vmatpush1.bf16.msra.mxu0 %v2786
    %2795 = vmatprep.subr.bf16.mxu0 0
    %2796 = vmatpush1.bf16.msra.mxu0 %v2787
    %2797 = vmatprep.subr.bf16.mxu0 0
    %2798 = vmatpush1.bf16.msra.mxu0 0
    %2799 = vmatprep.subr.bf16.mxu0 0
    %2800 = vmatpush1.bf16.msra.mxu0 0
    %2801 = vmatprep.subr.bf16.mxu0 0
    %2802 = vmatpush1.bf16.msra.mxu0 0
    %2803 = vmatprep.subr.bf16.mxu0 0
    %2804 = vmatpush1.bf16.msra.mxu0 0
    %2805 = vmatprep.subr.bf16.mxu0 0
    %2806 = vmatpush1.bf16.msra.mxu0 0
    %2807 = vmatprep.subr.bf16.mxu0 0
    %2808 = vmatpush1.bf16.msra.mxu0 0
    %2809 = vmatprep.subr.bf16.mxu0 0
    %2810 = vmatpush1.bf16.msra.mxu0 0
    %2811 = vmatprep.subr.bf16.mxu0 0
    %2812 = vmatpush1.bf16.msra.mxu0 0
    %2813 = vmatprep.subr.bf16.mxu0 0
    %2814 = vmatpush1.bf16.msra.mxu0 0
    %2815 = vmatprep.subr.bf16.mxu0 0
    %2816 = vmatpush1.bf16.msra.mxu0 0
    %2817 = vmatprep.subr.bf16.mxu0 0
    %2818 = vmatpush1.bf16.msra.mxu0 0
    %2819 = vmatprep.subr.bf16.mxu0 0
    %2820 = vmatpush1.bf16.msra.mxu0 0
    %2821 = vmatprep.subr.bf16.mxu0 0
    %2822 = vmatpush1.bf16.msra.mxu0 0
    %2823 = vmatprep.subr.bf16.mxu0 0
    %2824 = vmatpush1.bf16.msra.mxu0 0
    %2825 = vmatprep.mubr.bf16.mxu0 0
    %2826 = vmatmul.mubr.bf16.gmra.mrb[0].mxu0 %v2791
    %v2827 = vpop.f32.mrb[0].mxu0
    %v2828 = vadd.f32 %v2773, %v2827
    %v2829 = vpop.f32.mrb[0].mxu0
    %v2830 = vpop.f32.mrb[0].mxu0
    %v2831 = vpop.f32.mrb[0].mxu0
    %2832 = vdwg.mxu0
    %v2833 = vld [vmem:[%s2 + $0x13] sm:$0x1]
    %v2834 = vlaneseq
    %v2835 = vshrl.u32 %v2834, 7
    %v2836 = vsub.s32 0, %v2835
    %v2837 = vrot.slane %v2833, %v2836
    %v2838 = vadd.f32 %v2828, %v2837
    %2839 = vst [vmem:[#allocation2] sm:$0x3] %v2838
    // Predicated region
    $region42: #{bert_bias_classifier_forward.1} parent=1 // pred_check
      _
    $region43: #{bert_bias_classifier_forward.1} parent=1 // pred_check_branch
      %2841 = sbr.rel (0) target = $region45
    $region44: #{bert_bias_classifier_forward.1} parent=1 // pred_region
      %s2843 = ssub.s32 32, 32
      %2844 = vsyncadd [#allocation3], %s2843
      %s2846 = sshll.u32 [#allocation2], 4
      %s2847 = int_to_ptr.vmem [resolvable:$true] %s2846
      %2849 = dma.vmem_to_hbm [thread:$0]  %s2847, 32, %s10, [#allocation3]
    $region45: #{bert_bias_classifier_forward.1} parent=1 // pred_fallthru
      _
    // Predicated region
    $region46: #{bert_bias_classifier_forward.1} parent=1 // pred_check
      _
    $region47: #{bert_bias_classifier_forward.1} parent=1 // pred_check_branch
      %2851 = sbr.rel (0) target = $region49
    $region48: #{bert_bias_classifier_forward.1} parent=1 // pred_region
      %2852 = dma.done [#allocation3], 32
    $region49: #{bert_bias_classifier_forward.1} parent=1 // pred_fallthru
      _
    %2853 = vsyncpa [#allocation3], 1

</llo_original>
